<compile_context>
chip_gen: v7x
topology: tpu7x:2x2x1
jax: 0.10.0
libtpu: 0.0.40
codegen_flags: <defaults>
</compile_context>

<pallas_src>
import math
from functools import partial

import jax
import jax.numpy as jnp
from jax.experimental import pallas as pl
from jax.experimental.pallas import tpu as pltpu


_PARALLEL2 = pltpu.CompilerParams(
    dimension_semantics=("parallel", "parallel"))


def _round_up(n, m):
    return (n + m - 1) // m * m


# ---------------------------------------------------------------------------
# Window / halo construction (small XLA prep, L-independent per-tile shapes)
# ---------------------------------------------------------------------------

def _make_windows(x, lt, h):
    """x: (B, C, Lp) with Lp % lt == 0 -> (B, T, C, lt + 2h).

    Window t covers global columns [t*lt - h, t*lt + lt + h); columns outside
    [0, Lp) are zero.  Works for any halo h (may span several tiles).
    """
    B, C, Lp = x.shape
    T = Lp // lt
    xp = jnp.pad(x, ((0, 0), (0, 0), (h, h)))
    idx = (jnp.arange(T) * lt)[:, None] + jnp.arange(lt + 2 * h)[None, :]
    win = jnp.take(xp, idx, axis=2, mode="clip")     # (B, C, T, W)
    return jnp.transpose(win, (0, 2, 1, 3))          # (B, T, C, W)


def _make_halos(x, lt, h):
    """x: (B, C, Lp) -> (left, right) halo strips (B, T, C, h); zeros outside
    [0, Lp).  Requires h <= lt."""
    B, C, Lp = x.shape
    T = Lp // lt
    assert h <= lt
    xr = x.reshape(B, C, T, lt)
    z = jnp.zeros((B, C, 1, h), x.dtype)
    left = jnp.concatenate([z, xr[:, :, :-1, lt - h:]], axis=2)
    right = jnp.concatenate([xr[:, :, 1:, :h], z], axis=2)
    return (jnp.transpose(left, (0, 2, 1, 3)),
            jnp.transpose(right, (0, 2, 1, 3)))


# ---------------------------------------------------------------------------
# Stage A: head conv -> R residual blocks -> body conv -> outer skip
# ---------------------------------------------------------------------------

def _stage_a_kernel(win_ref, wh_ref, bh_ref, w1s_ref, b1s_ref, w2s_ref,
                    b2s_ref, wb_ref, bb_ref, o_ref, *,
                    K, LT, H0, R, L_true, res_scale, F, Cin, cdt):
    pad = (K - 1) // 2
    t = pl.program_id(1)

    def mask_cols(arr, g0):
        # Zero columns whose global index lies outside the true sequence
        # (this reproduces PyTorch's zero padding for the *next* conv).
        n = arr.shape[1]
        g = g0 + jax.lax.broadcasted_iota(jnp.int32, (1, n), 1)
        return jnp.where((g >= 0) & (g < L_true), arr, 0.0)

    def conv(x, w, b):
        # Valid conv: (Cout, K*Cx) x (K*Cx, n) with n (length) on the MXU
        # N axis; cols rows are k-major / channel-minor.
        n = x.shape[1] - 2 * pad
        cols = jnp.concatenate([x[:, k:k + n] for k in range(K)], axis=0)
        y = jnp.dot(w.astype(cdt), cols.astype(cdt),
                    preferred_element_type=jnp.float32)
        return y + b

    xin = win_ref[0, 0].astype(jnp.float32)           # (Cin, W0)
    W0 = xin.shape[1]
    wh = wh_ref[...].astype(jnp.float32)              # (F, K*Cin)
    bh = bh_ref[...].astype(jnp.float32)              # (F, 1)

    # ---- head conv --------------------------------------------------------
    n1 = W0 - 2 * pad
    if Cin == 1:
        # contraction depth 1 would starve the MXU -> VPU outer products
        acc = jnp.zeros((F, n1), jnp.float32)
        for k in range(K):
            acc = acc + wh[:, k:k + 1] * xin[:, k:k + n1]
        x_head = acc + bh
    else:
        x_head = conv(xin, wh, bh)
    g0 = t * LT - H0 + pad                            # global col of x_head[:,0]
    x_head = mask_cols(x_head, g0)

    # ---- residual blocks (all VMEM-resident, overlap-save) ----------------
    cur = x_head
    g = g0
    for i in range(R):
        h = conv(cur, w1s_ref[i], b1s_ref[i].astype(jnp.float32))
        h = jnp.where(h > 0, h, 0.2 * h)              # LeakyReLU(0.2)
        h = mask_cols(h, g + pad)
        y = conv(h, w2s_ref[i], b2s_ref[i].astype(jnp.float32))
        ny = y.shape[1]
        out = res_scale * y + cur[:, 2 * pad:2 * pad + ny]
        cur = mask_cols(out, g + 2 * pad)
        g = g + 2 * pad

    # ---- body conv + outer skip (x = head output) --------------------------
    yb = conv(cur, wb_ref[...], bb_ref[...].astype(jnp.float32))   # (F, LT)
    skip = x_head[:, H0 - pad:H0 - pad + LT]
    res = mask_cols(yb + skip, t * LT)   # zero past true L so stage B sees 0
    o_ref[0] = res.astype(o_ref.dtype)


def _fused_body(x_pad, p, *, K, R, F, res_scale, lt, L_true, compute_dtype):
    B, Cin, Lp = x_pad.shape
    pad = (K - 1) // 2
    H0 = pad * (2 * R + 2)
    T = Lp // lt
    W0 = lt + 2 * H0
    KF = K * F
    win = _make_windows(x_pad, lt, H0)                # (B, T, Cin, W0)

    kern = partial(_stage_a_kernel, K=K, LT=lt, H0=H0, R=R, L_true=L_true,
                   res_scale=res_scale, F=F, Cin=Cin, cdt=compute_dtype)
    return pl.pallas_call(
        kern,
        out_shape=jax.ShapeDtypeStruct((B, F, Lp), x_pad.dtype),
        grid_spec=pltpu.PrefetchScalarGridSpec(
            num_scalar_prefetch=0,
            grid=(B, T),
            in_specs=[
                pl.BlockSpec((1, 1, Cin, W0), lambda bi, ti: (bi, ti, 0, 0)),
                pl.BlockSpec((F, K * Cin), lambda bi, ti: (0, 0)),
                pl.BlockSpec((F, 1), lambda bi, ti: (0, 0)),
                pl.BlockSpec((R, F, KF), lambda bi, ti: (0, 0, 0)),
                pl.BlockSpec((R, F, 1), lambda bi, ti: (0, 0, 0)),
                pl.BlockSpec((R, F, KF), lambda bi, ti: (0, 0, 0)),
                pl.BlockSpec((R, F, 1), lambda bi, ti: (0, 0, 0)),
                pl.BlockSpec((F, KF), lambda bi, ti: (0, 0)),
                pl.BlockSpec((F, 1), lambda bi, ti: (0, 0)),
            ],
            out_specs=pl.BlockSpec((1, F, lt), lambda bi, ti: (bi, 0, ti)),
        ),
        compiler_params=_PARALLEL2,
    )(win, p["head_w"], p["head_b"], p["w1s"], p["b1s"], p["w2s"], p["b2s"],
      p["body_w"], p["body_b"])


# ---------------------------------------------------------------------------
# Stage B: up-conv -> 1-D pixel shuffle -> tail conv -> ReLU (polyphase)
# ---------------------------------------------------------------------------

def _stage_b_kernel(xl_ref, xm_ref, xr_ref, wu_ref, bu_ref, wt_ref, bt_ref,
                    o_ref, *, K, LT, H2, r, F, Cout, L_true, pad_s, cdt):
    pad = (K - 1) // 2
    t = pl.program_id(1)
    window = jnp.concatenate(
        [xl_ref[0, 0], xm_ref[0], xr_ref[0, 0]], axis=1).astype(jnp.float32)

    # up-conv over LT + 2*pad_s columns (pad_s = halo the tail needs, in
    # pre-upsample units), one MXU matmul with the length on the N axis.
    n_up = LT + 2 * pad_s
    cols = jnp.concatenate([window[:, k:k + n_up] for k in range(K)], axis=0)
    up = jnp.dot(wu_ref[...].astype(cdt), cols.astype(cdt),
                 preferred_element_type=jnp.float32)
    up = up + bu_ref[...].astype(jnp.float32)        # (r*F, n_up), phase-major

    # tail conv's zero padding in the upsampled domain <=> zero the up output
    # outside the true sequence.
    gcol = (t * LT - pad_s) + jax.lax.broadcasted_iota(jnp.int32, (1, n_up), 1)
    up = jnp.where((gcol >= 0) & (gcol < L_true), up, 0.0)

    wt = wt_ref[...]                                  # (Cout, K*F)
    bt = bt_ref[...].astype(jnp.float32)              # (Cout, 1)

    # Polyphase tail conv: no shuffled tensor is ever materialized; phase s of
    # the upsampled output is a K-tap conv over statically selected channel
    # groups / lane shifts of the (phase-major) up output.
    for s in range(r):
        pieces = []
        for k in range(K):
            a = s + k - pad
            s2 = a % r                                # phase group of up rows
            q = a // r                                # pre-upsample column shift
            start = pad_s + q
            pieces.append(up[s2 * F:(s2 + 1) * F, start:start + LT])
        cols_s = jnp.concatenate(pieces, axis=0)      # (K*F, LT)
        y = jnp.dot(wt.astype(cdt), cols_s.astype(cdt),
                    preferred_element_type=jnp.float32) + bt
        o_ref[0, s] = jnp.maximum(y, 0.0).astype(o_ref.dtype)


def _fused_up_tail(res, p, *, K, r, F, Cout, lt, L_true, compute_dtype):
    B, _, Lp = res.shape
    pad = (K - 1) // 2
    pad_s = -(-pad // r)                              # ceil(pad / r)
    H2 = pad + pad_s
    T = Lp // lt
    KF = K * F
    left, right = _make_halos(res, lt, H2)

    kern = partial(_stage_b_kernel, K=K, LT=lt, H2=H2, r=r, F=F, Cout=Cout,
                   L_true=L_true, pad_s=pad_s, cdt=compute_dtype)
    return pl.pallas_call(
        kern,
        out_shape=jax.ShapeDtypeStruct((B, r, Cout, Lp), res.dtype),
        grid_spec=pltpu.PrefetchScalarGridSpec(
            num_scalar_prefetch=0,
            grid=(B, T),
            in_specs=[
                pl.BlockSpec((1, 1, F, H2), lambda bi, ti: (bi, ti, 0, 0)),
                pl.BlockSpec((1, F, lt), lambda bi, ti: (bi, 0, ti)),
                pl.BlockSpec((1, 1, F, H2), lambda bi, ti: (bi, ti, 0, 0)),
                pl.BlockSpec((r * F, KF), lambda bi, ti: (0, 0)),
                pl.BlockSpec((r * F, 1), lambda bi, ti: (0, 0)),
                pl.BlockSpec((Cout, KF), lambda bi, ti: (0, 0)),
                pl.BlockSpec((Cout, 1), lambda bi, ti: (0, 0)),
            ],
            out_specs=pl.BlockSpec((1, r, Cout, lt),
                                   lambda bi, ti: (bi, 0, 0, ti)),
        ),
        compiler_params=_PARALLEL2,
    )(left, res, right, p["up_w"], p["up_b"], p["tail_w"], p["tail_b"])


# ---------------------------------------------------------------------------
# Parameters
# ---------------------------------------------------------------------------

def init_raw_params(key, *, in_channels, out_channels, num_features,
                    num_resblocks, upscale_factor, kernel_size):
    """Synthetic weights in PyTorch layout: Conv1d weight (Cout, Cin, K)."""
    F, r, K = num_features, upscale_factor, kernel_size

    def conv(k, cin, cout):
        kw, kb = jax.random.split(k)
        scale = 1.0 / math.sqrt(cin * K)
        w = scale * jax.random.normal(kw, (cout, cin, K), dtype=jnp.float32)
        b = 0.01 * jax.random.normal(kb, (cout,), dtype=jnp.float32)
        return w, b

    keys = jax.random.split(key, num_resblocks + 4)
    blocks = []
    for i in range(num_resblocks):
        k1, k2 = jax.random.split(keys[1 + i])
        blocks.append(conv(k1, F, F) + conv(k2, F, F))
    # TODO(synk): the Upsampler class was not provided; assumed to be the
    # standard EDSR sub-pixel upsampler: Conv1d(F, F*r, K) + 1-D pixel shuffle.
    return {
        "head": conv(keys[0], in_channels, F),
        "resblocks": blocks,
        "body": conv(keys[num_resblocks + 1], F, F),
        "up": conv(keys[num_resblocks + 2], F, F * r),
        "tail": conv(keys[num_resblocks + 3], F, out_channels),
    }


def prepare_params(raw):
    """One-time layout prep: im2col-flattened (Cout, K*Cin) weights, stacked
    resblock weights, phase-major-permuted up-conv channels."""

    def flat(w):                       # (Cout, Cin, K) -> (Cout, K*Cin)
        co, ci, k = w.shape
        return jnp.transpose(w, (0, 2, 1)).reshape(co, k * ci)

    head_w, head_b = raw["head"]
    body_w, body_b = raw["body"]
    tail_w, tail_b = raw["tail"]
    up_w, up_b = raw["up"]

    w1s = jnp.stack([flat(w1) for (w1, _, _, _) in raw["resblocks"]])
    b1s = jnp.stack([b1[:, None] for (_, b1, _, _) in raw["resblocks"]])
    w2s = jnp.stack([flat(w2) for (_, _, w2, _) in raw["resblocks"]])
    b2s = jnp.stack([b2[:, None] for (_, _, _, b2) in raw["resblocks"]])

    # Up-conv out channels: original order c*r + s -> phase-major s*F + c, so
    # the pixel shuffle becomes a contiguous row-group selection in-kernel.
    Fr, F, K = up_w.shape
    r = Fr // F
    up_w_p = up_w.reshape(F, r, F, K).transpose(1, 0, 2, 3).reshape(Fr, F, K)
    up_b_p = up_b.reshape(F, r).T.reshape(Fr)

    return {
        "head_w": flat(head_w), "head_b": head_b[:, None],
        "w1s": w1s, "b1s": b1s, "w2s": w2s, "b2s": b2s,
        "body_w": flat(body_w), "body_b": body_b[:, None],
        "up_w": flat(up_w_p), "up_b": up_b_p[:, None],
        "tail_w": flat(tail_w), "tail_b": tail_b[:, None],
    }


# ---------------------------------------------------------------------------
# Forward passes
# ---------------------------------------------------------------------------

def audio_edsr_forward(params, x_ncl, *, kernel_size, res_scale,
                       upscale_factor, l_tile=1024,
                       compute_dtype=jnp.float32):
    """x_ncl: (B, in_channels, L) -> (B, out_channels, L * upscale_factor).

    Set compute_dtype=jnp.bfloat16 to run the MXU matmuls in bf16 with f32
    accumulation (v5e/v6e/v7x); the validated default is f32.
    """
    K = kernel_size
    r = upscale_factor
    assert K % 2 == 1, "PyTorch 'same' conv only matches this kernel for odd K"
    B, Cin, L = x_ncl.shape
    F = params["body_w"].shape[0]
    R = params["w1s"].shape[0]
    Cout = params["tail_w"].shape[0]
    assert R >= 1

    # 128-aligned tile; pad L up to a tile multiple (no full-length fallback).
    lt = max(128, min(_round_up(l_tile, 128), _round_up(L, 128)))
    Lp = _round_up(L, lt)
    x_pad = x_ncl if Lp == L else jnp.pad(x_ncl, ((0, 0), (0, 0), (0, Lp - L)))

    res = _fused_body(x_pad, params, K=K, R=R, F=F, res_scale=res_scale,
                      lt=lt, L_true=L, compute_dtype=compute_dtype)
    o = _fused_up_tail(res, params, K=K, r=r, F=F, Cout=Cout, lt=lt,
                       L_true=L, compute_dtype=compute_dtype)
    # o[b, s, c, l] = out[b, c, l*r + s]; interleave the r phase rows with one
    # tiny XLA transpose/reshape of the (Cout) final output.
    o = o[:, :, :, :L]
    return jnp.transpose(o, (0, 2, 3, 1)).reshape(B, Cout, L * r)


def audio_edsr_reference(raw, x_ncl, *, kernel_size, res_scale,
                         upscale_factor):
    """Pure-XLA reference mirroring the PyTorch module (for validation)."""
    K, r = kernel_size, upscale_factor
    pad = (K - 1) // 2

    def conv(x, w, b):
        y = jax.lax.conv_general_dilated(
            x, w, (1,), [(pad, pad)],
            dimension_numbers=("NCH", "OIH", "NCH"),
            precision=jax.lax.Precision.HIGHEST)
        return y + b[None, :, None]

    hw, hb = raw["head"]
    x = conv(x_ncl, hw, hb)
    res = x
    for (w1, b1, w2, b2) in raw["resblocks"]:
        h = conv(res, w1, b1)
        h = jnp.where(h > 0, h, 0.2 * h)
        h = conv(h, w2, b2)
        res = res_scale * h + res
    bw, bb = raw["body"]
    res = conv(res, bw, bb) + x
    uw, ub = raw["up"]
    up = conv(res, uw, ub)                              # (B, F*r, L)
    B, FR, L = up.shape
    F = FR // r
    shuf = up.reshape(B, F, r, L).transpose(0, 1, 3, 2).reshape(B, F, L * r)
    tw, tb = raw["tail"]
    out = conv(shuf, tw, tb)
    return jnp.maximum(out, 0.0)


# ---------------------------------------------------------------------------
# Demo
# ---------------------------------------------------------------------------

if __name__ == "__main__":
    B = 2
    in_channels = 1
    out_channels = 1
    num_features = 32
    num_resblocks = 2        # NOTE: ResidualBlock in the spec always uses K=9
    res_scale = 0.1
    upscale_factor = 2
    kernel_size = 9
    L = 400                  # not a tile multiple -> exercises the padding path
    l_tile = 128             # small tile so the demo exercises multi-tile halos

    key = jax.random.PRNGKey(0)
    key, pkey, xkey = jax.random.split(key, 3)

    raw = init_raw_params(
        pkey, in_channels=in_channels, out_channels=out_channels,
        num_features=num_features, num_resblocks=num_resblocks,
        upscale_factor=upscale_factor, kernel_size=kernel_size)
    params = prepare_params(raw)

    x = jax.random.normal(xkey, (B, in_channels, L), dtype=jnp.float32)

    fwd = jax.jit(partial(audio_edsr_forward, kernel_size=kernel_size,
                          res_scale=res_scale, upscale_factor=upscale_factor,
                          l_tile=l_tile))
    y = fwd(params, x)
    jax.block_until_ready(y)

    assert y.shape == (B, out_channels, L * upscale_factor), y.shape
    assert bool(jnp.all(jnp.isfinite(y)))
    assert bool(jnp.all(y >= 0.0))          # final ReLU

    # Validate against a pure-XLA reference of the PyTorch forward.
    y_ref = jax.jit(partial(audio_edsr_reference, kernel_size=kernel_size,
                            res_scale=res_scale,
                            upscale_factor=upscale_factor))(raw, x)
    err = float(jnp.max(jnp.abs(y - y_ref)))
    assert err < 2e-3, f"max abs error vs reference = {err}"

    print("KERNEL_OK")
</pallas_src>

<mosaic_0001>
module attributes {stable_mosaic.version = 11 : i64} {
  func.func @_stage_a_kernel(%arg0: i32, %arg1: i32, %arg2: memref<1x1x1x176xf32, #tpu.memory_space<vmem>>, %arg3: memref<32x9xf32, #tpu.memory_space<vmem>>, %arg4: memref<32x1xf32, #tpu.memory_space<vmem>>, %arg5: memref<2x32x288xf32, #tpu.memory_space<vmem>>, %arg6: memref<2x32x1xf32, #tpu.memory_space<vmem>>, %arg7: memref<2x32x288xf32, #tpu.memory_space<vmem>>, %arg8: memref<2x32x1xf32, #tpu.memory_space<vmem>>, %arg9: memref<32x288xf32, #tpu.memory_space<vmem>>, %arg10: memref<32x1xf32, #tpu.memory_space<vmem>>, %arg11: memref<1x32x128xf32, #tpu.memory_space<vmem>>) attributes {dimension_semantics = [#tpu.dimension_semantics<parallel>, #tpu.dimension_semantics<parallel>], iteration_bounds = array<i64: 2, 4>, scalar_prefetch = 0 : i64, scratch_operands = 0 : i64, tpu.core_type = #tpu.core_type<tc>, window_params = [{transform_indices = @transform_0, window_bounds = array<i64: 1, 1, 1, 176>}, {pipeline_mode = #tpu.pipeline_mode<synchronous>, transform_indices = @transform_1, window_bounds = array<i64: 32, 9>}, {pipeline_mode = #tpu.pipeline_mode<synchronous>, transform_indices = @transform_2, window_bounds = array<i64: 32, 1>}, {pipeline_mode = #tpu.pipeline_mode<synchronous>, transform_indices = @transform_3, window_bounds = array<i64: 2, 32, 288>}, {pipeline_mode = #tpu.pipeline_mode<synchronous>, transform_indices = @transform_4, window_bounds = array<i64: 2, 32, 1>}, {pipeline_mode = #tpu.pipeline_mode<synchronous>, transform_indices = @transform_5, window_bounds = array<i64: 2, 32, 288>}, {pipeline_mode = #tpu.pipeline_mode<synchronous>, transform_indices = @transform_6, window_bounds = array<i64: 2, 32, 1>}, {pipeline_mode = #tpu.pipeline_mode<synchronous>, transform_indices = @transform_7, window_bounds = array<i64: 32, 288>}, {pipeline_mode = #tpu.pipeline_mode<synchronous>, transform_indices = @transform_8, window_bounds = array<i64: 32, 1>}, {transform_indices = @transform_9, window_bounds = array<i64: 1, 32, 128>}]} {
    %c0 = arith.constant 0 : index
    %c0_0 = arith.constant 0 : index
    %c0_1 = arith.constant 0 : index
    %c0_2 = arith.constant 0 : index
    %0 = vector.load %arg2[%c0, %c0_0, %c0_1, %c0_2] : memref<1x1x1x176xf32, #tpu.memory_space<vmem>>, vector<1x1x1x176xf32>
    %1 = vector.shape_cast %0 : vector<1x1x1x176xf32> to vector<1x176xf32>
    %c0_3 = arith.constant 0 : index
    %c0_4 = arith.constant 0 : index
    %2 = vector.load %arg3[%c0_3, %c0_4] : memref<32x9xf32, #tpu.memory_space<vmem>>, vector<32x9xf32>
    %c0_5 = arith.constant 0 : index
    %c0_6 = arith.constant 0 : index
    %3 = vector.load %arg4[%c0_5, %c0_6] : memref<32x1xf32, #tpu.memory_space<vmem>>, vector<32x1xf32>
    %cst = arith.constant 0.000000e+00 : f32
    %4 = vector.broadcast %cst : f32 to vector<32x168xf32>
    %5 = vector.extract_strided_slice %2 {offsets = [0, 0], sizes = [32, 1], strides = [1, 1]} : vector<32x9xf32> to vector<32x1xf32>
    %6 = vector.extract_strided_slice %1 {offsets = [0, 0], sizes = [1, 168], strides = [1, 1]} : vector<1x176xf32> to vector<1x168xf32>
    %7 = vector.broadcast %5 : vector<32x1xf32> to vector<32x168xf32>
    %8 = vector.broadcast %6 : vector<1x168xf32> to vector<32x168xf32>
    %9 = arith.mulf %7, %8 : vector<32x168xf32>
    %10 = arith.addf %4, %9 : vector<32x168xf32>
    %11 = vector.extract_strided_slice %2 {offsets = [0, 1], sizes = [32, 1], strides = [1, 1]} : vector<32x9xf32> to vector<32x1xf32>
    %12 = vector.extract_strided_slice %1 {offsets = [0, 1], sizes = [1, 168], strides = [1, 1]} : vector<1x176xf32> to vector<1x168xf32>
    %13 = vector.broadcast %11 : vector<32x1xf32> to vector<32x168xf32>
    %14 = vector.broadcast %12 : vector<1x168xf32> to vector<32x168xf32>
    %15 = arith.mulf %13, %14 : vector<32x168xf32>
    %16 = arith.addf %10, %15 : vector<32x168xf32>
    %17 = vector.extract_strided_slice %2 {offsets = [0, 2], sizes = [32, 1], strides = [1, 1]} : vector<32x9xf32> to vector<32x1xf32>
    %18 = vector.extract_strided_slice %1 {offsets = [0, 2], sizes = [1, 168], strides = [1, 1]} : vector<1x176xf32> to vector<1x168xf32>
    %19 = vector.broadcast %17 : vector<32x1xf32> to vector<32x168xf32>
    %20 = vector.broadcast %18 : vector<1x168xf32> to vector<32x168xf32>
    %21 = arith.mulf %19, %20 : vector<32x168xf32>
    %22 = arith.addf %16, %21 : vector<32x168xf32>
    %23 = vector.extract_strided_slice %2 {offsets = [0, 3], sizes = [32, 1], strides = [1, 1]} : vector<32x9xf32> to vector<32x1xf32>
    %24 = vector.extract_strided_slice %1 {offsets = [0, 3], sizes = [1, 168], strides = [1, 1]} : vector<1x176xf32> to vector<1x168xf32>
    %25 = vector.broadcast %23 : vector<32x1xf32> to vector<32x168xf32>
    %26 = vector.broadcast %24 : vector<1x168xf32> to vector<32x168xf32>
    %27 = arith.mulf %25, %26 : vector<32x168xf32>
    %28 = arith.addf %22, %27 : vector<32x168xf32>
    %29 = vector.extract_strided_slice %2 {offsets = [0, 4], sizes = [32, 1], strides = [1, 1]} : vector<32x9xf32> to vector<32x1xf32>
    %30 = vector.extract_strided_slice %1 {offsets = [0, 4], sizes = [1, 168], strides = [1, 1]} : vector<1x176xf32> to vector<1x168xf32>
    %31 = vector.broadcast %29 : vector<32x1xf32> to vector<32x168xf32>
    %32 = vector.broadcast %30 : vector<1x168xf32> to vector<32x168xf32>
    %33 = arith.mulf %31, %32 : vector<32x168xf32>
    %34 = arith.addf %28, %33 : vector<32x168xf32>
    %35 = vector.extract_strided_slice %2 {offsets = [0, 5], sizes = [32, 1], strides = [1, 1]} : vector<32x9xf32> to vector<32x1xf32>
    %36 = vector.extract_strided_slice %1 {offsets = [0, 5], sizes = [1, 168], strides = [1, 1]} : vector<1x176xf32> to vector<1x168xf32>
    %37 = vector.broadcast %35 : vector<32x1xf32> to vector<32x168xf32>
    %38 = vector.broadcast %36 : vector<1x168xf32> to vector<32x168xf32>
    %39 = arith.mulf %37, %38 : vector<32x168xf32>
    %40 = arith.addf %34, %39 : vector<32x168xf32>
    %41 = vector.extract_strided_slice %2 {offsets = [0, 6], sizes = [32, 1], strides = [1, 1]} : vector<32x9xf32> to vector<32x1xf32>
    %42 = vector.extract_strided_slice %1 {offsets = [0, 6], sizes = [1, 168], strides = [1, 1]} : vector<1x176xf32> to vector<1x168xf32>
    %43 = vector.broadcast %41 : vector<32x1xf32> to vector<32x168xf32>
    %44 = vector.broadcast %42 : vector<1x168xf32> to vector<32x168xf32>
    %45 = arith.mulf %43, %44 : vector<32x168xf32>
    %46 = arith.addf %40, %45 : vector<32x168xf32>
    %47 = vector.extract_strided_slice %2 {offsets = [0, 7], sizes = [32, 1], strides = [1, 1]} : vector<32x9xf32> to vector<32x1xf32>
    %48 = vector.extract_strided_slice %1 {offsets = [0, 7], sizes = [1, 168], strides = [1, 1]} : vector<1x176xf32> to vector<1x168xf32>
    %49 = vector.broadcast %47 : vector<32x1xf32> to vector<32x168xf32>
    %50 = vector.broadcast %48 : vector<1x168xf32> to vector<32x168xf32>
    %51 = arith.mulf %49, %50 : vector<32x168xf32>
    %52 = arith.addf %46, %51 : vector<32x168xf32>
    %53 = vector.extract_strided_slice %2 {offsets = [0, 8], sizes = [32, 1], strides = [1, 1]} : vector<32x9xf32> to vector<32x1xf32>
    %54 = vector.extract_strided_slice %1 {offsets = [0, 8], sizes = [1, 168], strides = [1, 1]} : vector<1x176xf32> to vector<1x168xf32>
    %55 = vector.broadcast %53 : vector<32x1xf32> to vector<32x168xf32>
    %56 = vector.broadcast %54 : vector<1x168xf32> to vector<32x168xf32>
    %57 = arith.mulf %55, %56 : vector<32x168xf32>
    %58 = arith.addf %52, %57 : vector<32x168xf32>
    %59 = vector.broadcast %3 : vector<32x1xf32> to vector<32x168xf32>
    %60 = arith.addf %58, %59 : vector<32x168xf32>
    %c128_i32 = arith.constant 128 : i32
    %61 = arith.muli %arg1, %c128_i32 : i32
    %c24_i32 = arith.constant 24 : i32
    %62 = arith.subi %61, %c24_i32 : i32
    %c4_i32 = arith.constant 4 : i32
    %63 = arith.addi %62, %c4_i32 : i32
    %64 = tpu.iota {dimensions = array<i32: 1>} : vector<1x168xi32>
    %65 = vector.broadcast %63 : i32 to vector<1x168xi32>
    %66 = arith.addi %65, %64 : vector<1x168xi32>
    %c0_i32 = arith.constant 0 : i32
    %67 = vector.broadcast %c0_i32 : i32 to vector<1x168xi32>
    %68 = arith.cmpi sge, %66, %67 : vector<1x168xi32>
    %c400_i32 = arith.constant 400 : i32
    %69 = vector.broadcast %c400_i32 : i32 to vector<1x168xi32>
    %70 = arith.cmpi slt, %66, %69 : vector<1x168xi32>
    %71 = arith.andi %68, %70 : vector<1x168xi1>
    %cst_7 = arith.constant 0.000000e+00 : f32
    %72 = vector.shape_cast %71 : vector<1x168xi1> to vector<1x168xi1>
    %73 = vector.broadcast %72 : vector<1x168xi1> to vector<32x168xi1>
    %74 = vector.broadcast %cst_7 : f32 to vector<32x168xf32>
    %75 = arith.select %73, %60, %74 : vector<32x168xi1>, vector<32x168xf32>
    %c0_8 = arith.constant 0 : index
    %c0_9 = arith.constant 0 : index
    %c0_10 = arith.constant 0 : index
    %76 = vector.load %arg5[%c0_8, %c0_9, %c0_10] : memref<2x32x288xf32, #tpu.memory_space<vmem>>, vector<1x32x288xf32>
    %77 = vector.shape_cast %76 : vector<1x32x288xf32> to vector<32x288xf32>
    %c0_11 = arith.constant 0 : index
    %c0_12 = arith.constant 0 : index
    %c0_13 = arith.constant 0 : index
    %78 = vector.load %arg6[%c0_11, %c0_12, %c0_13] : memref<2x32x1xf32, #tpu.memory_space<vmem>>, vector<1x32x1xf32>
    %79 = vector.shape_cast %78 : vector<1x32x1xf32> to vector<32x1xf32>
    %80 = vector.extract_strided_slice %75 {offsets = [0, 0], sizes = [32, 160], strides = [1, 1]} : vector<32x168xf32> to vector<32x160xf32>
    %81 = vector.extract_strided_slice %75 {offsets = [0, 1], sizes = [32, 160], strides = [1, 1]} : vector<32x168xf32> to vector<32x160xf32>
    %82 = vector.extract_strided_slice %75 {offsets = [0, 2], sizes = [32, 160], strides = [1, 1]} : vector<32x168xf32> to vector<32x160xf32>
    %83 = vector.extract_strided_slice %75 {offsets = [0, 3], sizes = [32, 160], strides = [1, 1]} : vector<32x168xf32> to vector<32x160xf32>
    %84 = vector.extract_strided_slice %75 {offsets = [0, 4], sizes = [32, 160], strides = [1, 1]} : vector<32x168xf32> to vector<32x160xf32>
    %85 = vector.extract_strided_slice %75 {offsets = [0, 5], sizes = [32, 160], strides = [1, 1]} : vector<32x168xf32> to vector<32x160xf32>
    %86 = vector.extract_strided_slice %75 {offsets = [0, 6], sizes = [32, 160], strides = [1, 1]} : vector<32x168xf32> to vector<32x160xf32>
    %87 = vector.extract_strided_slice %75 {offsets = [0, 7], sizes = [32, 160], strides = [1, 1]} : vector<32x168xf32> to vector<32x160xf32>
    %88 = vector.extract_strided_slice %75 {offsets = [0, 8], sizes = [32, 160], strides = [1, 1]} : vector<32x168xf32> to vector<32x160xf32>
    %89 = tpu.concatenate %80, %81, %82, %83, %84, %85, %86, %87, %88 in 0 : vector<32x160xf32>, vector<32x160xf32>, vector<32x160xf32>, vector<32x160xf32>, vector<32x160xf32>, vector<32x160xf32>, vector<32x160xf32>, vector<32x160xf32>, vector<32x160xf32> -> vector<288x160xf32>
    %cst_14 = arith.constant dense<0.000000e+00> : vector<32x160xf32>
    %90 = tpu.matmul %77, %89, %cst_14 {dimension_numbers = #tpu.dot_dimension_numbers<[1], [0], [0], [1], [0, 0, 1, 1], [], []>} : vector<32x288xf32>, vector<288x160xf32>, vector<32x160xf32> -> vector<32x160xf32>
    %91 = vector.broadcast %79 : vector<32x1xf32> to vector<32x160xf32>
    %92 = arith.addf %90, %91 : vector<32x160xf32>
    %cst_15 = arith.constant 0.000000e+00 : f32
    %93 = vector.broadcast %cst_15 : f32 to vector<32x160xf32>
    %94 = arith.cmpf ogt, %92, %93 : vector<32x160xf32>
    %cst_16 = arith.constant 2.000000e-01 : f32
    %95 = vector.broadcast %cst_16 : f32 to vector<32x160xf32>
    %96 = arith.mulf %95, %92 : vector<32x160xf32>
    %97 = arith.select %94, %92, %96 : vector<32x160xi1>, vector<32x160xf32>
    %c4_i32_17 = arith.constant 4 : i32
    %98 = arith.addi %63, %c4_i32_17 : i32
    %99 = tpu.iota {dimensions = array<i32: 1>} : vector<1x160xi32>
    %100 = vector.broadcast %98 : i32 to vector<1x160xi32>
    %101 = arith.addi %100, %99 : vector<1x160xi32>
    %c0_i32_18 = arith.constant 0 : i32
    %102 = vector.broadcast %c0_i32_18 : i32 to vector<1x160xi32>
    %103 = arith.cmpi sge, %101, %102 : vector<1x160xi32>
    %c400_i32_19 = arith.constant 400 : i32
    %104 = vector.broadcast %c400_i32_19 : i32 to vector<1x160xi32>
    %105 = arith.cmpi slt, %101, %104 : vector<1x160xi32>
    %106 = arith.andi %103, %105 : vector<1x160xi1>
    %cst_20 = arith.constant 0.000000e+00 : f32
    %107 = vector.shape_cast %106 : vector<1x160xi1> to vector<1x160xi1>
    %108 = vector.broadcast %107 : vector<1x160xi1> to vector<32x160xi1>
    %109 = vector.broadcast %cst_20 : f32 to vector<32x160xf32>
    %110 = arith.select %108, %97, %109 : vector<32x160xi1>, vector<32x160xf32>
    %c0_21 = arith.constant 0 : index
    %c0_22 = arith.constant 0 : index
    %c0_23 = arith.constant 0 : index
    %111 = vector.load %arg7[%c0_21, %c0_22, %c0_23] : memref<2x32x288xf32, #tpu.memory_space<vmem>>, vector<1x32x288xf32>
    %112 = vector.shape_cast %111 : vector<1x32x288xf32> to vector<32x288xf32>
    %c0_24 = arith.constant 0 : index
    %c0_25 = arith.constant 0 : index
    %c0_26 = arith.constant 0 : index
    %113 = vector.load %arg8[%c0_24, %c0_25, %c0_26] : memref<2x32x1xf32, #tpu.memory_space<vmem>>, vector<1x32x1xf32>
    %114 = vector.shape_cast %113 : vector<1x32x1xf32> to vector<32x1xf32>
    %115 = vector.extract_strided_slice %110 {offsets = [0, 0], sizes = [32, 152], strides = [1, 1]} : vector<32x160xf32> to vector<32x152xf32>
    %116 = vector.extract_strided_slice %110 {offsets = [0, 1], sizes = [32, 152], strides = [1, 1]} : vector<32x160xf32> to vector<32x152xf32>
    %117 = vector.extract_strided_slice %110 {offsets = [0, 2], sizes = [32, 152], strides = [1, 1]} : vector<32x160xf32> to vector<32x152xf32>
    %118 = vector.extract_strided_slice %110 {offsets = [0, 3], sizes = [32, 152], strides = [1, 1]} : vector<32x160xf32> to vector<32x152xf32>
    %119 = vector.extract_strided_slice %110 {offsets = [0, 4], sizes = [32, 152], strides = [1, 1]} : vector<32x160xf32> to vector<32x152xf32>
    %120 = vector.extract_strided_slice %110 {offsets = [0, 5], sizes = [32, 152], strides = [1, 1]} : vector<32x160xf32> to vector<32x152xf32>
    %121 = vector.extract_strided_slice %110 {offsets = [0, 6], sizes = [32, 152], strides = [1, 1]} : vector<32x160xf32> to vector<32x152xf32>
    %122 = vector.extract_strided_slice %110 {offsets = [0, 7], sizes = [32, 152], strides = [1, 1]} : vector<32x160xf32> to vector<32x152xf32>
    %123 = vector.extract_strided_slice %110 {offsets = [0, 8], sizes = [32, 152], strides = [1, 1]} : vector<32x160xf32> to vector<32x152xf32>
    %124 = tpu.concatenate %115, %116, %117, %118, %119, %120, %121, %122, %123 in 0 : vector<32x152xf32>, vector<32x152xf32>, vector<32x152xf32>, vector<32x152xf32>, vector<32x152xf32>, vector<32x152xf32>, vector<32x152xf32>, vector<32x152xf32>, vector<32x152xf32> -> vector<288x152xf32>
    %cst_27 = arith.constant dense<0.000000e+00> : vector<32x152xf32>
    %125 = tpu.matmul %112, %124, %cst_27 {dimension_numbers = #tpu.dot_dimension_numbers<[1], [0], [0], [1], [0, 0, 1, 1], [], []>} : vector<32x288xf32>, vector<288x152xf32>, vector<32x152xf32> -> vector<32x152xf32>
    %126 = vector.broadcast %114 : vector<32x1xf32> to vector<32x152xf32>
    %127 = arith.addf %125, %126 : vector<32x152xf32>
    %cst_28 = arith.constant 1.000000e-01 : f32
    %128 = vector.broadcast %cst_28 : f32 to vector<32x152xf32>
    %129 = arith.mulf %128, %127 : vector<32x152xf32>
    %130 = vector.extract_strided_slice %75 {offsets = [0, 8], sizes = [32, 152], strides = [1, 1]} : vector<32x168xf32> to vector<32x152xf32>
    %131 = arith.addf %129, %130 : vector<32x152xf32>
    %c8_i32 = arith.constant 8 : i32
    %132 = arith.addi %63, %c8_i32 : i32
    %133 = tpu.iota {dimensions = array<i32: 1>} : vector<1x152xi32>
    %134 = vector.broadcast %132 : i32 to vector<1x152xi32>
    %135 = arith.addi %134, %133 : vector<1x152xi32>
    %c0_i32_29 = arith.constant 0 : i32
    %136 = vector.broadcast %c0_i32_29 : i32 to vector<1x152xi32>
    %137 = arith.cmpi sge, %135, %136 : vector<1x152xi32>
    %c400_i32_30 = arith.constant 400 : i32
    %138 = vector.broadcast %c400_i32_30 : i32 to vector<1x152xi32>
    %139 = arith.cmpi slt, %135, %138 : vector<1x152xi32>
    %140 = arith.andi %137, %139 : vector<1x152xi1>
    %cst_31 = arith.constant 0.000000e+00 : f32
    %141 = vector.shape_cast %140 : vector<1x152xi1> to vector<1x152xi1>
    %142 = vector.broadcast %141 : vector<1x152xi1> to vector<32x152xi1>
    %143 = vector.broadcast %cst_31 : f32 to vector<32x152xf32>
    %144 = arith.select %142, %131, %143 : vector<32x152xi1>, vector<32x152xf32>
    %c8_i32_32 = arith.constant 8 : i32
    %145 = arith.addi %63, %c8_i32_32 : i32
    %c1 = arith.constant 1 : index
    %c0_33 = arith.constant 0 : index
    %c0_34 = arith.constant 0 : index
    %146 = vector.load %arg5[%c1, %c0_33, %c0_34] : memref<2x32x288xf32, #tpu.memory_space<vmem>>, vector<1x32x288xf32>
    %147 = vector.shape_cast %146 : vector<1x32x288xf32> to vector<32x288xf32>
    %c1_35 = arith.constant 1 : index
    %c0_36 = arith.constant 0 : index
    %c0_37 = arith.constant 0 : index
    %148 = vector.load %arg6[%c1_35, %c0_36, %c0_37] : memref<2x32x1xf32, #tpu.memory_space<vmem>>, vector<1x32x1xf32>
    %149 = vector.shape_cast %148 : vector<1x32x1xf32> to vector<32x1xf32>
    %150 = vector.extract_strided_slice %144 {offsets = [0, 0], sizes = [32, 144], strides = [1, 1]} : vector<32x152xf32> to vector<32x144xf32>
    %151 = vector.extract_strided_slice %144 {offsets = [0, 1], sizes = [32, 144], strides = [1, 1]} : vector<32x152xf32> to vector<32x144xf32>
    %152 = vector.extract_strided_slice %144 {offsets = [0, 2], sizes = [32, 144], strides = [1, 1]} : vector<32x152xf32> to vector<32x144xf32>
    %153 = vector.extract_strided_slice %144 {offsets = [0, 3], sizes = [32, 144], strides = [1, 1]} : vector<32x152xf32> to vector<32x144xf32>
    %154 = vector.extract_strided_slice %144 {offsets = [0, 4], sizes = [32, 144], strides = [1, 1]} : vector<32x152xf32> to vector<32x144xf32>
    %155 = vector.extract_strided_slice %144 {offsets = [0, 5], sizes = [32, 144], strides = [1, 1]} : vector<32x152xf32> to vector<32x144xf32>
    %156 = vector.extract_strided_slice %144 {offsets = [0, 6], sizes = [32, 144], strides = [1, 1]} : vector<32x152xf32> to vector<32x144xf32>
    %157 = vector.extract_strided_slice %144 {offsets = [0, 7], sizes = [32, 144], strides = [1, 1]} : vector<32x152xf32> to vector<32x144xf32>
    %158 = vector.extract_strided_slice %144 {offsets = [0, 8], sizes = [32, 144], strides = [1, 1]} : vector<32x152xf32> to vector<32x144xf32>
    %159 = tpu.concatenate %150, %151, %152, %153, %154, %155, %156, %157, %158 in 0 : vector<32x144xf32>, vector<32x144xf32>, vector<32x144xf32>, vector<32x144xf32>, vector<32x144xf32>, vector<32x144xf32>, vector<32x144xf32>, vector<32x144xf32>, vector<32x144xf32> -> vector<288x144xf32>
    %cst_38 = arith.constant dense<0.000000e+00> : vector<32x144xf32>
    %160 = tpu.matmul %147, %159, %cst_38 {dimension_numbers = #tpu.dot_dimension_numbers<[1], [0], [0], [1], [0, 0, 1, 1], [], []>} : vector<32x288xf32>, vector<288x144xf32>, vector<32x144xf32> -> vector<32x144xf32>
    %161 = vector.broadcast %149 : vector<32x1xf32> to vector<32x144xf32>
    %162 = arith.addf %160, %161 : vector<32x144xf32>
    %cst_39 = arith.constant 0.000000e+00 : f32
    %163 = vector.broadcast %cst_39 : f32 to vector<32x144xf32>
    %164 = arith.cmpf ogt, %162, %163 : vector<32x144xf32>
    %cst_40 = arith.constant 2.000000e-01 : f32
    %165 = vector.broadcast %cst_40 : f32 to vector<32x144xf32>
    %166 = arith.mulf %165, %162 : vector<32x144xf32>
    %167 = arith.select %164, %162, %166 : vector<32x144xi1>, vector<32x144xf32>
    %c4_i32_41 = arith.constant 4 : i32
    %168 = arith.addi %145, %c4_i32_41 : i32
    %169 = tpu.iota {dimensions = array<i32: 1>} : vector<1x144xi32>
    %170 = vector.broadcast %168 : i32 to vector<1x144xi32>
    %171 = arith.addi %170, %169 : vector<1x144xi32>
    %c0_i32_42 = arith.constant 0 : i32
    %172 = vector.broadcast %c0_i32_42 : i32 to vector<1x144xi32>
    %173 = arith.cmpi sge, %171, %172 : vector<1x144xi32>
    %c400_i32_43 = arith.constant 400 : i32
    %174 = vector.broadcast %c400_i32_43 : i32 to vector<1x144xi32>
    %175 = arith.cmpi slt, %171, %174 : vector<1x144xi32>
    %176 = arith.andi %173, %175 : vector<1x144xi1>
    %cst_44 = arith.constant 0.000000e+00 : f32
    %177 = vector.shape_cast %176 : vector<1x144xi1> to vector<1x144xi1>
    %178 = vector.broadcast %177 : vector<1x144xi1> to vector<32x144xi1>
    %179 = vector.broadcast %cst_44 : f32 to vector<32x144xf32>
    %180 = arith.select %178, %167, %179 : vector<32x144xi1>, vector<32x144xf32>
    %c1_45 = arith.constant 1 : index
    %c0_46 = arith.constant 0 : index
    %c0_47 = arith.constant 0 : index
    %181 = vector.load %arg7[%c1_45, %c0_46, %c0_47] : memref<2x32x288xf32, #tpu.memory_space<vmem>>, vector<1x32x288xf32>
    %182 = vector.shape_cast %181 : vector<1x32x288xf32> to vector<32x288xf32>
    %c1_48 = arith.constant 1 : index
    %c0_49 = arith.constant 0 : index
    %c0_50 = arith.constant 0 : index
    %183 = vector.load %arg8[%c1_48, %c0_49, %c0_50] : memref<2x32x1xf32, #tpu.memory_space<vmem>>, vector<1x32x1xf32>
    %184 = vector.shape_cast %183 : vector<1x32x1xf32> to vector<32x1xf32>
    %185 = vector.extract_strided_slice %180 {offsets = [0, 0], sizes = [32, 136], strides = [1, 1]} : vector<32x144xf32> to vector<32x136xf32>
    %186 = vector.extract_strided_slice %180 {offsets = [0, 1], sizes = [32, 136], strides = [1, 1]} : vector<32x144xf32> to vector<32x136xf32>
    %187 = vector.extract_strided_slice %180 {offsets = [0, 2], sizes = [32, 136], strides = [1, 1]} : vector<32x144xf32> to vector<32x136xf32>
    %188 = vector.extract_strided_slice %180 {offsets = [0, 3], sizes = [32, 136], strides = [1, 1]} : vector<32x144xf32> to vector<32x136xf32>
    %189 = vector.extract_strided_slice %180 {offsets = [0, 4], sizes = [32, 136], strides = [1, 1]} : vector<32x144xf32> to vector<32x136xf32>
    %190 = vector.extract_strided_slice %180 {offsets = [0, 5], sizes = [32, 136], strides = [1, 1]} : vector<32x144xf32> to vector<32x136xf32>
    %191 = vector.extract_strided_slice %180 {offsets = [0, 6], sizes = [32, 136], strides = [1, 1]} : vector<32x144xf32> to vector<32x136xf32>
    %192 = vector.extract_strided_slice %180 {offsets = [0, 7], sizes = [32, 136], strides = [1, 1]} : vector<32x144xf32> to vector<32x136xf32>
    %193 = vector.extract_strided_slice %180 {offsets = [0, 8], sizes = [32, 136], strides = [1, 1]} : vector<32x144xf32> to vector<32x136xf32>
    %194 = tpu.concatenate %185, %186, %187, %188, %189, %190, %191, %192, %193 in 0 : vector<32x136xf32>, vector<32x136xf32>, vector<32x136xf32>, vector<32x136xf32>, vector<32x136xf32>, vector<32x136xf32>, vector<32x136xf32>, vector<32x136xf32>, vector<32x136xf32> -> vector<288x136xf32>
    %cst_51 = arith.constant dense<0.000000e+00> : vector<32x136xf32>
    %195 = tpu.matmul %182, %194, %cst_51 {dimension_numbers = #tpu.dot_dimension_numbers<[1], [0], [0], [1], [0, 0, 1, 1], [], []>} : vector<32x288xf32>, vector<288x136xf32>, vector<32x136xf32> -> vector<32x136xf32>
    %196 = vector.broadcast %184 : vector<32x1xf32> to vector<32x136xf32>
    %197 = arith.addf %195, %196 : vector<32x136xf32>
    %cst_52 = arith.constant 1.000000e-01 : f32
    %198 = vector.broadcast %cst_52 : f32 to vector<32x136xf32>
    %199 = arith.mulf %198, %197 : vector<32x136xf32>
    %200 = vector.extract_strided_slice %144 {offsets = [0, 8], sizes = [32, 136], strides = [1, 1]} : vector<32x152xf32> to vector<32x136xf32>
    %201 = arith.addf %199, %200 : vector<32x136xf32>
    %c8_i32_53 = arith.constant 8 : i32
    %202 = arith.addi %145, %c8_i32_53 : i32
    %203 = tpu.iota {dimensions = array<i32: 1>} : vector<1x136xi32>
    %204 = vector.broadcast %202 : i32 to vector<1x136xi32>
    %205 = arith.addi %204, %203 : vector<1x136xi32>
    %c0_i32_54 = arith.constant 0 : i32
    %206 = vector.broadcast %c0_i32_54 : i32 to vector<1x136xi32>
    %207 = arith.cmpi sge, %205, %206 : vector<1x136xi32>
    %c400_i32_55 = arith.constant 400 : i32
    %208 = vector.broadcast %c400_i32_55 : i32 to vector<1x136xi32>
    %209 = arith.cmpi slt, %205, %208 : vector<1x136xi32>
    %210 = arith.andi %207, %209 : vector<1x136xi1>
    %cst_56 = arith.constant 0.000000e+00 : f32
    %211 = vector.shape_cast %210 : vector<1x136xi1> to vector<1x136xi1>
    %212 = vector.broadcast %211 : vector<1x136xi1> to vector<32x136xi1>
    %213 = vector.broadcast %cst_56 : f32 to vector<32x136xf32>
    %214 = arith.select %212, %201, %213 : vector<32x136xi1>, vector<32x136xf32>
    %c0_57 = arith.constant 0 : index
    %c0_58 = arith.constant 0 : index
    %215 = vector.load %arg9[%c0_57, %c0_58] : memref<32x288xf32, #tpu.memory_space<vmem>>, vector<32x288xf32>
    %c0_59 = arith.constant 0 : index
    %c0_60 = arith.constant 0 : index
    %216 = vector.load %arg10[%c0_59, %c0_60] : memref<32x1xf32, #tpu.memory_space<vmem>>, vector<32x1xf32>
    %217 = vector.extract_strided_slice %214 {offsets = [0, 0], sizes = [32, 128], strides = [1, 1]} : vector<32x136xf32> to vector<32x128xf32>
    %218 = vector.extract_strided_slice %214 {offsets = [0, 1], sizes = [32, 128], strides = [1, 1]} : vector<32x136xf32> to vector<32x128xf32>
    %219 = vector.extract_strided_slice %214 {offsets = [0, 2], sizes = [32, 128], strides = [1, 1]} : vector<32x136xf32> to vector<32x128xf32>
    %220 = vector.extract_strided_slice %214 {offsets = [0, 3], sizes = [32, 128], strides = [1, 1]} : vector<32x136xf32> to vector<32x128xf32>
    %221 = vector.extract_strided_slice %214 {offsets = [0, 4], sizes = [32, 128], strides = [1, 1]} : vector<32x136xf32> to vector<32x128xf32>
    %222 = vector.extract_strided_slice %214 {offsets = [0, 5], sizes = [32, 128], strides = [1, 1]} : vector<32x136xf32> to vector<32x128xf32>
    %223 = vector.extract_strided_slice %214 {offsets = [0, 6], sizes = [32, 128], strides = [1, 1]} : vector<32x136xf32> to vector<32x128xf32>
    %224 = vector.extract_strided_slice %214 {offsets = [0, 7], sizes = [32, 128], strides = [1, 1]} : vector<32x136xf32> to vector<32x128xf32>
    %225 = vector.extract_strided_slice %214 {offsets = [0, 8], sizes = [32, 128], strides = [1, 1]} : vector<32x136xf32> to vector<32x128xf32>
    %226 = tpu.concatenate %217, %218, %219, %220, %221, %222, %223, %224, %225 in 0 : vector<32x128xf32>, vector<32x128xf32>, vector<32x128xf32>, vector<32x128xf32>, vector<32x128xf32>, vector<32x128xf32>, vector<32x128xf32>, vector<32x128xf32>, vector<32x128xf32> -> vector<288x128xf32>
    %cst_61 = arith.constant dense<0.000000e+00> : vector<32x128xf32>
    %227 = tpu.matmul %215, %226, %cst_61 {dimension_numbers = #tpu.dot_dimension_numbers<[1], [0], [0], [1], [0, 0, 1, 1], [], []>} : vector<32x288xf32>, vector<288x128xf32>, vector<32x128xf32> -> vector<32x128xf32>
    %228 = vector.broadcast %216 : vector<32x1xf32> to vector<32x128xf32>
    %229 = arith.addf %227, %228 : vector<32x128xf32>
    %230 = vector.extract_strided_slice %75 {offsets = [0, 20], sizes = [32, 128], strides = [1, 1]} : vector<32x168xf32> to vector<32x128xf32>
    %231 = arith.addf %229, %230 : vector<32x128xf32>
    %c128_i32_62 = arith.constant 128 : i32
    %232 = arith.muli %arg1, %c128_i32_62 : i32
    %233 = tpu.iota {dimensions = array<i32: 1>} : vector<1x128xi32>
    %234 = vector.broadcast %232 : i32 to vector<1x128xi32>
    %235 = arith.addi %234, %233 : vector<1x128xi32>
    %c0_i32_63 = arith.constant 0 : i32
    %236 = vector.broadcast %c0_i32_63 : i32 to vector<1x128xi32>
    %237 = arith.cmpi sge, %235, %236 : vector<1x128xi32>
    %c400_i32_64 = arith.constant 400 : i32
    %238 = vector.broadcast %c400_i32_64 : i32 to vector<1x128xi32>
    %239 = arith.cmpi slt, %235, %238 : vector<1x128xi32>
    %240 = arith.andi %237, %239 : vector<1x128xi1>
    %cst_65 = arith.constant 0.000000e+00 : f32
    %241 = vector.shape_cast %240 : vector<1x128xi1> to vector<1x128xi1>
    %242 = vector.broadcast %241 : vector<1x128xi1> to vector<32x128xi1>
    %243 = vector.broadcast %cst_65 : f32 to vector<32x128xf32>
    %244 = arith.select %242, %231, %243 : vector<32x128xi1>, vector<32x128xf32>
    %c0_66 = arith.constant 0 : index
    %c0_67 = arith.constant 0 : index
    %c0_68 = arith.constant 0 : index
    %245 = vector.load %arg11[%c0_66, %c0_67, %c0_68] : memref<1x32x128xf32, #tpu.memory_space<vmem>>, vector<1x32x128xf32>
    %246 = vector.shape_cast %245 : vector<1x32x128xf32> to vector<32x128xf32>
    %247 = vector.shape_cast %244 : vector<32x128xf32> to vector<1x32x128xf32>
    tpu.vector_store %arg11[%c0_66, %c0_67, %c0_68], %247 {strides = array<i32>} : memref<1x32x128xf32, #tpu.memory_space<vmem>>, vector<1x32x128xf32>,
    return
  }
  func.func @transform_0(%arg0: i32, %arg1: i32) -> (i32, i32, i32, i32) {
    %c0_i32 = arith.constant 0 : i32
    %c0_i32_0 = arith.constant 0 : i32
    %c0_i32_1 = arith.constant 0 : i32
    return %arg0, %arg1, %c0_i32, %c0_i32_0 : i32, i32, i32, i32
  }
  func.func @transform_1(%arg0: i32, %arg1: i32) -> (i32, i32) {
    %c0_i32 = arith.constant 0 : i32
    %c0_i32_0 = arith.constant 0 : i32
    %c0_i32_1 = arith.constant 0 : i32
    return %c0_i32, %c0_i32_0 : i32, i32
  }
  func.func @transform_2(%arg0: i32, %arg1: i32) -> (i32, i32) {
    %c0_i32 = arith.constant 0 : i32
    %c0_i32_0 = arith.constant 0 : i32
    %c0_i32_1 = arith.constant 0 : i32
    return %c0_i32, %c0_i32_0 : i32, i32
  }
  func.func @transform_3(%arg0: i32, %arg1: i32) -> (i32, i32, i32) {
    %c0_i32 = arith.constant 0 : i32
    %c0_i32_0 = arith.constant 0 : i32
    %c0_i32_1 = arith.constant 0 : i32
    %c0_i32_2 = arith.constant 0 : i32
    return %c0_i32, %c0_i32_0, %c0_i32_1 : i32, i32, i32
  }
  func.func @transform_4(%arg0: i32, %arg1: i32) -> (i32, i32, i32) {
    %c0_i32 = arith.constant 0 : i32
    %c0_i32_0 = arith.constant 0 : i32
    %c0_i32_1 = arith.constant 0 : i32
    %c0_i32_2 = arith.constant 0 : i32
    return %c0_i32, %c0_i32_0, %c0_i32_1 : i32, i32, i32
  }
  func.func @transform_5(%arg0: i32, %arg1: i32) -> (i32, i32, i32) {
    %c0_i32 = arith.constant 0 : i32
    %c0_i32_0 = arith.constant 0 : i32
    %c0_i32_1 = arith.constant 0 : i32
    %c0_i32_2 = arith.constant 0 : i32
    return %c0_i32, %c0_i32_0, %c0_i32_1 : i32, i32, i32
  }
  func.func @transform_6(%arg0: i32, %arg1: i32) -> (i32, i32, i32) {
    %c0_i32 = arith.constant 0 : i32
    %c0_i32_0 = arith.constant 0 : i32
    %c0_i32_1 = arith.constant 0 : i32
    %c0_i32_2 = arith.constant 0 : i32
    return %c0_i32, %c0_i32_0, %c0_i32_1 : i32, i32, i32
  }
  func.func @transform_7(%arg0: i32, %arg1: i32) -> (i32, i32) {
    %c0_i32 = arith.constant 0 : i32
    %c0_i32_0 = arith.constant 0 : i32
    %c0_i32_1 = arith.constant 0 : i32
    return %c0_i32, %c0_i32_0 : i32, i32
  }
  func.func @transform_8(%arg0: i32, %arg1: i32) -> (i32, i32) {
    %c0_i32 = arith.constant 0 : i32
    %c0_i32_0 = arith.constant 0 : i32
    %c0_i32_1 = arith.constant 0 : i32
    return %c0_i32, %c0_i32_0 : i32, i32
  }
  func.func @transform_9(%arg0: i32, %arg1: i32) -> (i32, i32, i32) {
    %c0_i32 = arith.constant 0 : i32
    %c0_i32_0 = arith.constant 0 : i32
    return %arg0, %c0_i32, %arg1 : i32, i32, i32
  }
}

module attributes {stable_mosaic.version = 11 : i64} {
  func.func @_stage_b_kernel(%arg0: i32, %arg1: i32, %arg2: memref<1x1x32x6xf32, #tpu.memory_space<vmem>>, %arg3: memref<1x32x128xf32, #tpu.memory_space<vmem>>, %arg4: memref<1x1x32x6xf32, #tpu.memory_space<vmem>>, %arg5: memref<64x288xf32, #tpu.memory_space<vmem>>, %arg6: memref<64x1xf32, #tpu.memory_space<vmem>>, %arg7: memref<1x288xf32, #tpu.memory_space<vmem>>, %arg8: memref<1x1xf32, #tpu.memory_space<vmem>>, %arg9: memref<1x2x1x128xf32, #tpu.memory_space<vmem>>) attributes {dimension_semantics = [#tpu.dimension_semantics<parallel>, #tpu.dimension_semantics<parallel>], iteration_bounds = array<i64: 2, 4>, scalar_prefetch = 0 : i64, scratch_operands = 0 : i64, tpu.core_type = #tpu.core_type<tc>, window_params = [{transform_indices = @transform_0, window_bounds = array<i64: 1, 1, 32, 6>}, {transform_indices = @transform_1, window_bounds = array<i64: 1, 32, 128>}, {transform_indices = @transform_2, window_bounds = array<i64: 1, 1, 32, 6>}, {pipeline_mode = #tpu.pipeline_mode<synchronous>, transform_indices = @transform_3, window_bounds = array<i64: 64, 288>}, {pipeline_mode = #tpu.pipeline_mode<synchronous>, transform_indices = @transform_4, window_bounds = array<i64: 64, 1>}, {pipeline_mode = #tpu.pipeline_mode<synchronous>, transform_indices = @transform_5, window_bounds = array<i64: 1, 288>}, {pipeline_mode = #tpu.pipeline_mode<synchronous>, transform_indices = @transform_6, window_bounds = array<i64: 1, 1>}, {transform_indices = @transform_7, window_bounds = array<i64: 1, 2, 1, 128>}]} {
    %c0 = arith.constant 0 : index
    %c0_0 = arith.constant 0 : index
    %c0_1 = arith.constant 0 : index
    %c0_2 = arith.constant 0 : index
    %0 = vector.load %arg2[%c0, %c0_0, %c0_1, %c0_2] : memref<1x1x32x6xf32, #tpu.memory_space<vmem>>, vector<1x1x32x6xf32>
    %1 = vector.shape_cast %0 : vector<1x1x32x6xf32> to vector<32x6xf32>
    %c0_3 = arith.constant 0 : index
    %c0_4 = arith.constant 0 : index
    %c0_5 = arith.constant 0 : index
    %2 = vector.load %arg3[%c0_3, %c0_4, %c0_5] : memref<1x32x128xf32, #tpu.memory_space<vmem>>, vector<1x32x128xf32>
    %3 = vector.shape_cast %2 : vector<1x32x128xf32> to vector<32x128xf32>
    %c0_6 = arith.constant 0 : index
    %c0_7 = arith.constant 0 : index
    %c0_8 = arith.constant 0 : index
    %c0_9 = arith.constant 0 : index
    %4 = vector.load %arg4[%c0_6, %c0_7, %c0_8, %c0_9] : memref<1x1x32x6xf32, #tpu.memory_space<vmem>>, vector<1x1x32x6xf32>
    %5 = vector.shape_cast %4 : vector<1x1x32x6xf32> to vector<32x6xf32>
    %6 = tpu.concatenate %1, %3, %5 in 1 : vector<32x6xf32>, vector<32x128xf32>, vector<32x6xf32> -> vector<32x140xf32>
    %7 = vector.extract_strided_slice %6 {offsets = [0, 0], sizes = [32, 132], strides = [1, 1]} : vector<32x140xf32> to vector<32x132xf32>
    %8 = vector.extract_strided_slice %6 {offsets = [0, 1], sizes = [32, 132], strides = [1, 1]} : vector<32x140xf32> to vector<32x132xf32>
    %9 = vector.extract_strided_slice %6 {offsets = [0, 2], sizes = [32, 132], strides = [1, 1]} : vector<32x140xf32> to vector<32x132xf32>
    %10 = vector.extract_strided_slice %6 {offsets = [0, 3], sizes = [32, 132], strides = [1, 1]} : vector<32x140xf32> to vector<32x132xf32>
    %11 = vector.extract_strided_slice %6 {offsets = [0, 4], sizes = [32, 132], strides = [1, 1]} : vector<32x140xf32> to vector<32x132xf32>
    %12 = vector.extract_strided_slice %6 {offsets = [0, 5], sizes = [32, 132], strides = [1, 1]} : vector<32x140xf32> to vector<32x132xf32>
    %13 = vector.extract_strided_slice %6 {offsets = [0, 6], sizes = [32, 132], strides = [1, 1]} : vector<32x140xf32> to vector<32x132xf32>
    %14 = vector.extract_strided_slice %6 {offsets = [0, 7], sizes = [32, 132], strides = [1, 1]} : vector<32x140xf32> to vector<32x132xf32>
    %15 = vector.extract_strided_slice %6 {offsets = [0, 8], sizes = [32, 132], strides = [1, 1]} : vector<32x140xf32> to vector<32x132xf32>
    %16 = tpu.concatenate %7, %8, %9, %10, %11, %12, %13, %14, %15 in 0 : vector<32x132xf32>, vector<32x132xf32>, vector<32x132xf32>, vector<32x132xf32>, vector<32x132xf32>, vector<32x132xf32>, vector<32x132xf32>, vector<32x132xf32>, vector<32x132xf32> -> vector<288x132xf32>
    %c0_10 = arith.constant 0 : index
    %c0_11 = arith.constant 0 : index
    %17 = vector.load %arg5[%c0_10, %c0_11] : memref<64x288xf32, #tpu.memory_space<vmem>>, vector<64x288xf32>
    %cst = arith.constant dense<0.000000e+00> : vector<64x132xf32>
    %18 = tpu.matmul %17, %16, %cst {dimension_numbers = #tpu.dot_dimension_numbers<[1], [0], [0], [1], [0, 0, 1, 1], [], []>} : vector<64x288xf32>, vector<288x132xf32>, vector<64x132xf32> -> vector<64x132xf32>
    %c0_12 = arith.constant 0 : index
    %c0_13 = arith.constant 0 : index
    %19 = vector.load %arg6[%c0_12, %c0_13] : memref<64x1xf32, #tpu.memory_space<vmem>>, vector<64x1xf32>
    %20 = vector.broadcast %19 : vector<64x1xf32> to vector<64x132xf32>
    %21 = arith.addf %18, %20 : vector<64x132xf32>
    %c128_i32 = arith.constant 128 : i32
    %22 = arith.muli %arg1, %c128_i32 : i32
    %c2_i32 = arith.constant 2 : i32
    %23 = arith.subi %22, %c2_i32 : i32
    %24 = tpu.iota {dimensions = array<i32: 1>} : vector<1x132xi32>
    %25 = vector.broadcast %23 : i32 to vector<1x132xi32>
    %26 = arith.addi %25, %24 : vector<1x132xi32>
    %c0_i32 = arith.constant 0 : i32
    %27 = vector.broadcast %c0_i32 : i32 to vector<1x132xi32>
    %28 = arith.cmpi sge, %26, %27 : vector<1x132xi32>
    %c400_i32 = arith.constant 400 : i32
    %29 = vector.broadcast %c400_i32 : i32 to vector<1x132xi32>
    %30 = arith.cmpi slt, %26, %29 : vector<1x132xi32>
    %31 = arith.andi %28, %30 : vector<1x132xi1>
    %cst_14 = arith.constant 0.000000e+00 : f32
    %32 = vector.shape_cast %31 : vector<1x132xi1> to vector<1x132xi1>
    %33 = vector.broadcast %32 : vector<1x132xi1> to vector<64x132xi1>
    %34 = vector.broadcast %cst_14 : f32 to vector<64x132xf32>
    %35 = arith.select %33, %21, %34 : vector<64x132xi1>, vector<64x132xf32>
    %c0_15 = arith.constant 0 : index
    %c0_16 = arith.constant 0 : index
    %36 = vector.load %arg7[%c0_15, %c0_16] : memref<1x288xf32, #tpu.memory_space<vmem>>, vector<1x288xf32>
    %c0_17 = arith.constant 0 : index
    %c0_18 = arith.constant 0 : index
    %37 = vector.load %arg8[%c0_17, %c0_18] : memref<1x1xf32, #tpu.memory_space<vmem>>, vector<1x1xf32>
    %38 = vector.extract_strided_slice %35 {offsets = [0, 0], sizes = [32, 128], strides = [1, 1]} : vector<64x132xf32> to vector<32x128xf32>
    %39 = vector.extract_strided_slice %35 {offsets = [32, 0], sizes = [32, 128], strides = [1, 1]} : vector<64x132xf32> to vector<32x128xf32>
    %40 = vector.extract_strided_slice %35 {offsets = [0, 1], sizes = [32, 128], strides = [1, 1]} : vector<64x132xf32> to vector<32x128xf32>
    %41 = vector.extract_strided_slice %35 {offsets = [32, 1], sizes = [32, 128], strides = [1, 1]} : vector<64x132xf32> to vector<32x128xf32>
    %42 = vector.extract_strided_slice %35 {offsets = [0, 2], sizes = [32, 128], strides = [1, 1]} : vector<64x132xf32> to vector<32x128xf32>
    %43 = vector.extract_strided_slice %35 {offsets = [32, 2], sizes = [32, 128], strides = [1, 1]} : vector<64x132xf32> to vector<32x128xf32>
    %44 = vector.extract_strided_slice %35 {offsets = [0, 3], sizes = [32, 128], strides = [1, 1]} : vector<64x132xf32> to vector<32x128xf32>
    %45 = vector.extract_strided_slice %35 {offsets = [32, 3], sizes = [32, 128], strides = [1, 1]} : vector<64x132xf32> to vector<32x128xf32>
    %46 = vector.extract_strided_slice %35 {offsets = [0, 4], sizes = [32, 128], strides = [1, 1]} : vector<64x132xf32> to vector<32x128xf32>
    %47 = tpu.concatenate %38, %39, %40, %41, %42, %43, %44, %45, %46 in 0 : vector<32x128xf32>, vector<32x128xf32>, vector<32x128xf32>, vector<32x128xf32>, vector<32x128xf32>, vector<32x128xf32>, vector<32x128xf32>, vector<32x128xf32>, vector<32x128xf32> -> vector<288x128xf32>
    %cst_19 = arith.constant dense<0.000000e+00> : vector<1x128xf32>
    %48 = tpu.matmul %36, %47, %cst_19 {dimension_numbers = #tpu.dot_dimension_numbers<[1], [0], [0], [1], [0, 0, 1, 1], [], []>} : vector<1x288xf32>, vector<288x128xf32>, vector<1x128xf32> -> vector<1x128xf32>
    %49 = vector.broadcast %37 : vector<1x1xf32> to vector<1x128xf32>
    %50 = arith.addf %48, %49 : vector<1x128xf32>
    %cst_20 = arith.constant 0.000000e+00 : f32
    %51 = vector.broadcast %cst_20 : f32 to vector<1x128xf32>
    %52 = arith.maximumf %50, %51 : vector<1x128xf32>
    %c0_21 = arith.constant 0 : index
    %c0_22 = arith.constant 0 : index
    %c0_23 = arith.constant 0 : index
    %c0_24 = arith.constant 0 : index
    %53 = vector.load %arg9[%c0_21, %c0_22, %c0_23, %c0_24] : memref<1x2x1x128xf32, #tpu.memory_space<vmem>>, vector<1x1x1x128xf32>
    %54 = vector.shape_cast %53 : vector<1x1x1x128xf32> to vector<1x128xf32>
    %55 = vector.shape_cast %52 : vector<1x128xf32> to vector<1x1x1x128xf32>
    tpu.vector_store %arg9[%c0_21, %c0_22, %c0_23, %c0_24], %55 {strides = array<i32>} : memref<1x2x1x128xf32, #tpu.memory_space<vmem>>, vector<1x1x1x128xf32>,
    %56 = vector.extract_strided_slice %35 {offsets = [32, 0], sizes = [32, 128], strides = [1, 1]} : vector<64x132xf32> to vector<32x128xf32>
    %57 = vector.extract_strided_slice %35 {offsets = [0, 1], sizes = [32, 128], strides = [1, 1]} : vector<64x132xf32> to vector<32x128xf32>
    %58 = vector.extract_strided_slice %35 {offsets = [32, 1], sizes = [32, 128], strides = [1, 1]} : vector<64x132xf32> to vector<32x128xf32>
    %59 = vector.extract_strided_slice %35 {offsets = [0, 2], sizes = [32, 128], strides = [1, 1]} : vector<64x132xf32> to vector<32x128xf32>
    %60 = vector.extract_strided_slice %35 {offsets = [32, 2], sizes = [32, 128], strides = [1, 1]} : vector<64x132xf32> to vector<32x128xf32>
    %61 = vector.extract_strided_slice %35 {offsets = [0, 3], sizes = [32, 128], strides = [1, 1]} : vector<64x132xf32> to vector<32x128xf32>
    %62 = vector.extract_strided_slice %35 {offsets = [32, 3], sizes = [32, 128], strides = [1, 1]} : vector<64x132xf32> to vector<32x128xf32>
    %63 = vector.extract_strided_slice %35 {offsets = [0, 4], sizes = [32, 128], strides = [1, 1]} : vector<64x132xf32> to vector<32x128xf32>
    %64 = vector.extract_strided_slice %35 {offsets = [32, 4], sizes = [32, 128], strides = [1, 1]} : vector<64x132xf32> to vector<32x128xf32>
    %65 = tpu.concatenate %56, %57, %58, %59, %60, %61, %62, %63, %64 in 0 : vector<32x128xf32>, vector<32x128xf32>, vector<32x128xf32>, vector<32x128xf32>, vector<32x128xf32>, vector<32x128xf32>, vector<32x128xf32>, vector<32x128xf32>, vector<32x128xf32> -> vector<288x128xf32>
    %cst_25 = arith.constant dense<0.000000e+00> : vector<1x128xf32>
    %66 = tpu.matmul %36, %65, %cst_25 {dimension_numbers = #tpu.dot_dimension_numbers<[1], [0], [0], [1], [0, 0, 1, 1], [], []>} : vector<1x288xf32>, vector<288x128xf32>, vector<1x128xf32> -> vector<1x128xf32>
    %67 = vector.broadcast %37 : vector<1x1xf32> to vector<1x128xf32>
    %68 = arith.addf %66, %67 : vector<1x128xf32>
    %cst_26 = arith.constant 0.000000e+00 : f32
    %69 = vector.broadcast %cst_26 : f32 to vector<1x128xf32>
    %70 = arith.maximumf %68, %69 : vector<1x128xf32>
    %c0_27 = arith.constant 0 : index
    %c1 = arith.constant 1 : index
    %c0_28 = arith.constant 0 : index
    %c0_29 = arith.constant 0 : index
    %71 = vector.load %arg9[%c0_27, %c1, %c0_28, %c0_29] : memref<1x2x1x128xf32, #tpu.memory_space<vmem>>, vector<1x1x1x128xf32>
    %72 = vector.shape_cast %71 : vector<1x1x1x128xf32> to vector<1x128xf32>
    %73 = vector.shape_cast %70 : vector<1x128xf32> to vector<1x1x1x128xf32>
    tpu.vector_store %arg9[%c0_27, %c1, %c0_28, %c0_29], %73 {strides = array<i32>} : memref<1x2x1x128xf32, #tpu.memory_space<vmem>>, vector<1x1x1x128xf32>,
    return
  }
  func.func @transform_0(%arg0: i32, %arg1: i32) -> (i32, i32, i32, i32) {
    %c0_i32 = arith.constant 0 : i32
    %c0_i32_0 = arith.constant 0 : i32
    %c0_i32_1 = arith.constant 0 : i32
    return %arg0, %arg1, %c0_i32, %c0_i32_0 : i32, i32, i32, i32
  }
  func.func @transform_1(%arg0: i32, %arg1: i32) -> (i32, i32, i32) {
    %c0_i32 = arith.constant 0 : i32
    %c0_i32_0 = arith.constant 0 : i32
    return %arg0, %c0_i32, %arg1 : i32, i32, i32
  }
  func.func @transform_2(%arg0: i32, %arg1: i32) -> (i32, i32, i32, i32) {
    %c0_i32 = arith.constant 0 : i32
    %c0_i32_0 = arith.constant 0 : i32
    %c0_i32_1 = arith.constant 0 : i32
    return %arg0, %arg1, %c0_i32, %c0_i32_0 : i32, i32, i32, i32
  }
  func.func @transform_3(%arg0: i32, %arg1: i32) -> (i32, i32) {
    %c0_i32 = arith.constant 0 : i32
    %c0_i32_0 = arith.constant 0 : i32
    %c0_i32_1 = arith.constant 0 : i32
    return %c0_i32, %c0_i32_0 : i32, i32
  }
  func.func @transform_4(%arg0: i32, %arg1: i32) -> (i32, i32) {
    %c0_i32 = arith.constant 0 : i32
    %c0_i32_0 = arith.constant 0 : i32
    %c0_i32_1 = arith.constant 0 : i32
    return %c0_i32, %c0_i32_0 : i32, i32
  }
  func.func @transform_5(%arg0: i32, %arg1: i32) -> (i32, i32) {
    %c0_i32 = arith.constant 0 : i32
    %c0_i32_0 = arith.constant 0 : i32
    %c0_i32_1 = arith.constant 0 : i32
    return %c0_i32, %c0_i32_0 : i32, i32
  }
  func.func @transform_6(%arg0: i32, %arg1: i32) -> (i32, i32) {
    %c0_i32 = arith.constant 0 : i32
    %c0_i32_0 = arith.constant 0 : i32
    %c0_i32_1 = arith.constant 0 : i32
    return %c0_i32, %c0_i32_0 : i32, i32
  }
  func.func @transform_7(%arg0: i32, %arg1: i32) -> (i32, i32, i32, i32) {
    %c0_i32 = arith.constant 0 : i32
    %c0_i32_0 = arith.constant 0 : i32
    %c0_i32_1 = arith.constant 0 : i32
    return %arg0, %c0_i32, %c0_i32_0, %arg1 : i32, i32, i32, i32
  }
}

</mosaic_0001>

<llo_original>
// kernel: audio_edsr_forward.3
$region0: #{audio_edsr_forward.3}
  #allocation0 [shape = 'u32[]', space=smem, size = 0x4, offset = 0x4, fixed_abs, tag = 'smem constant byte address 0x4 - core index']
  #allocation1 [shape = 'u32[144,128]{1,0:T(1,128)}', space=vmem, size = 0x12000, scoped, tag = 'internal scratch']
  #allocation2 [shape = 'f32[1,1]{1,0:T(1,128)S(1)}', space=vmem, size = 0x200, scoped, tag = 'scoped memory for audio_edsr_forward.3']
  %s0 = inlined_call_operand.vmem [shape: f32[2,4,32,6], index: 0, kind: input, shape index: {}]
  %s1 = inlined_call_operand.vmem [shape: f32[2,32,512], index: 1, kind: input, shape index: {}]
  %s2 = inlined_call_operand.vmem [shape: f32[2,4,32,6], index: 2, kind: input, shape index: {}]
  %s3 = inlined_call_operand.vmem [shape: f32[64,288], index: 3, kind: input, shape index: {}]
  %s4 = inlined_call_operand.vmem [shape: f32[64,1], index: 4, kind: input, shape index: {}]
  %s5 = inlined_call_operand.vmem [shape: f32[1,288], index: 5, kind: input, shape index: {}]
  %s6 = inlined_call_operand.<no memory space> [shape: f32[1,1], index: 6, kind: input, shape index: {}]
  %s7 = inlined_call_operand.vmem [shape: f32[2,2,1,512], index: 7, kind: output, shape index: {}]
  %s8 = sld [smem:[#allocation0]]
  $region129: #{audio_edsr_forward.3} parent=0
    _
  %s10 = ssub.s32 1, %s8
  %s11 = scalar_select 0, %s10, %s8
  %v12 = vstv %s6
  %13 = vst [vmem:[#allocation2] sm:$0x1] %v12
  $region1: #{audio_edsr_forward.3} parent=0
    #allocation3 [shape = 'u8[32768]{0}', space=vmem, size = 0x8000, scoped, tag = 'input window, operand 1']
    #allocation4 [shape = 'u8[2048]{0}', space=vmem, size = 0x800, scoped, tag = 'output window, operand 0']
    loop: start=0, step=1, limit=10
    $region2: #{audio_edsr_forward.3} parent=1 // loop_pre_header
      _
    $region3: #{audio_edsr_forward.3} parent=1 // loop_header
      %s15 = sphi 0, %s19
      %p16 = scmp.ge.s32.totalorder %s15, 10
      %s22 = sphi 0, %s34
      %s23 = sphi 0, %s30
      %s24 = sphi 0, %s22
      %s25 = sphi 0, %s23
      %s26 = sphi 0, %s24
      %s27 = sphi 0, %s25
      %s39 = sphi 0, %s41
      %s42 = sphi 0, %s39
      %s43 = sphi 0, %s42
      %s59 = sphi 0, %s43
      %s67 = sphi 0, %s69
      %s70 = sphi 0, %s67
      %s71 = sphi 0, %s70
      %s87 = sphi 0, %s71
      %s95 = sphi 0, %s97
      %s98 = sphi 0, %s95
      %s99 = sphi 0, %s98
      %s115 = sphi 0, %s99
      %s119 = sphi 0, %s119
      %s121 = sphi 0, %s119
      %s122 = sphi 0, %s121
      %s136 = sphi 0, %s122
      %s140 = sphi 0, %s140
      %s142 = sphi 0, %s140
      %s143 = sphi 0, %s142
      %s157 = sphi 0, %s143
      %s161 = sphi 0, %s161
      %s163 = sphi 0, %s161
      %s164 = sphi 0, %s163
      %s178 = sphi 0, %s164
      %s182 = sphi 0, %s182
      %s184 = sphi 0, %s182
      %s185 = sphi 0, %s184
      %s199 = sphi 0, %s185
      %s207 = sphi 0, %s209
      %s210 = sphi 0, %s207
      %s211 = sphi 0, %s210
      %s227 = sphi 0, %s211
    $region4: #{audio_edsr_forward.3} parent=1 // loop_header_branch
      %18 = sbr.rel (%p16) target = $region8
    $region5: #{audio_edsr_forward.3} parent=1 // loop_body
      %s20 = ssub.s32 %s15, 1
      %s21 = ssub.s32 %s15, 2
      %s28 = sadd.s32 1, %s23
      %p29 = scmp.ge.s32.totalorder %s28, 4
      %s30 = scalar_select %p29, 0, %s28
      %s31 = sadd.s32 1, %s22
      %s32 = scalar_select %p29, %s31, %s22
      %p33 = scmp.ge.s32.totalorder %s32, 2
      %s34 = scalar_select %p33, 0, %s32
      %s35 = ssub.s32 %s22, %s34
      %s36 = ssub.s32 %s23, %s30
      %s37 = sor.u32 %s35, %s36
      %p38 = scmp.eq.s32.totalorder %s37, 0
      %s40 = sadd.s32 %s39, 1
      %s41 = scalar_select %p38, %s39, %s40
      %p44 = pneg %p38
      %p45 = scmp.eq.s32.totalorder %s15, 7
      %p46 = por %p44, %p45
      %p47 = scmp.ne.s32.totalorder %s39, %s42
      %p48 = scmp.eq.s32.totalorder %s15, 0
      %p49 = por %p47, %p48
      %p50 = scmp.ne.s32.totalorder %s39, %s42
      %p51 = scmp.eq.s32.totalorder %s20, 7
      %p52 = por %p50, %p51
      %p53 = scmp.ne.s32.totalorder %s42, %s43
      %p54 = scmp.eq.s32.totalorder %s20, 0
      %p55 = por %p53, %p54
      %p56 = scmp.ne.s32.totalorder %s42, %s43
      %p57 = scmp.eq.s32.totalorder %s21, 7
      %p58 = por %p56, %p57
      %p60 = scmp.ne.s32.totalorder %s43, %s59
      %p61 = scmp.eq.s32.totalorder %s21, 0
      %p62 = por %p60, %p61
      %s63 = ssub.s32 %s22, %s34
      %s64 = ssub.s32 %s23, %s30
      %s65 = sor.u32 %s63, %s64
      %p66 = scmp.eq.s32.totalorder %s65, 0
      %s68 = sadd.s32 %s67, 1
      %s69 = scalar_select %p66, %s67, %s68
      %p72 = pneg %p66
      %p73 = scmp.eq.s32.totalorder %s15, 7
      %p74 = por %p72, %p73
      %p75 = scmp.ne.s32.totalorder %s67, %s70
      %p76 = scmp.eq.s32.totalorder %s15, 0
      %p77 = por %p75, %p76
      %p78 = scmp.ne.s32.totalorder %s67, %s70
      %p79 = scmp.eq.s32.totalorder %s20, 7
      %p80 = por %p78, %p79
      %p81 = scmp.ne.s32.totalorder %s70, %s71
      %p82 = scmp.eq.s32.totalorder %s20, 0
      %p83 = por %p81, %p82
      %p84 = scmp.ne.s32.totalorder %s70, %s71
      %p85 = scmp.eq.s32.totalorder %s21, 7
      %p86 = por %p84, %p85
      %p88 = scmp.ne.s32.totalorder %s71, %s87
      %p89 = scmp.eq.s32.totalorder %s21, 0
      %p90 = por %p88, %p89
      %s91 = ssub.s32 %s22, %s34
      %s92 = ssub.s32 %s23, %s30
      %s93 = sor.u32 %s91, %s92
      %p94 = scmp.eq.s32.totalorder %s93, 0
      %s96 = sadd.s32 %s95, 1
      %s97 = scalar_select %p94, %s95, %s96
      %p100 = pneg %p94
      %p101 = scmp.eq.s32.totalorder %s15, 7
      %p102 = por %p100, %p101
      %p103 = scmp.ne.s32.totalorder %s95, %s98
      %p104 = scmp.eq.s32.totalorder %s15, 0
      %p105 = por %p103, %p104
      %p106 = scmp.ne.s32.totalorder %s95, %s98
      %p107 = scmp.eq.s32.totalorder %s20, 7
      %p108 = por %p106, %p107
      %p109 = scmp.ne.s32.totalorder %s98, %s99
      %p110 = scmp.eq.s32.totalorder %s20, 0
      %p111 = por %p109, %p110
      %p112 = scmp.ne.s32.totalorder %s98, %s99
      %p113 = scmp.eq.s32.totalorder %s21, 7
      %p114 = por %p112, %p113
      %p116 = scmp.ne.s32.totalorder %s99, %s115
      %p117 = scmp.eq.s32.totalorder %s21, 0
      %p118 = por %p116, %p117
      %s120 = sadd.s32 %s119, 1
      %p123 = scmp.eq.s32.totalorder %s15, 7
      %p124 = scmp.ne.s32.totalorder %s119, %s121
      %p125 = scmp.eq.s32.totalorder %s15, 0
      %p126 = por %p124, %p125
      %p127 = scmp.ne.s32.totalorder %s119, %s121
      %p128 = scmp.eq.s32.totalorder %s20, 7
      %p129 = por %p127, %p128
      %p130 = scmp.ne.s32.totalorder %s121, %s122
      %p131 = scmp.eq.s32.totalorder %s20, 0
      %p132 = por %p130, %p131
      %p133 = scmp.ne.s32.totalorder %s121, %s122
      %p134 = scmp.eq.s32.totalorder %s21, 7
      %p135 = por %p133, %p134
      %p137 = scmp.ne.s32.totalorder %s122, %s136
      %p138 = scmp.eq.s32.totalorder %s21, 0
      %p139 = por %p137, %p138
      %s141 = sadd.s32 %s140, 1
      %p144 = scmp.eq.s32.totalorder %s15, 7
      %p145 = scmp.ne.s32.totalorder %s140, %s142
      %p146 = scmp.eq.s32.totalorder %s15, 0
      %p147 = por %p145, %p146
      %p148 = scmp.ne.s32.totalorder %s140, %s142
      %p149 = scmp.eq.s32.totalorder %s20, 7
      %p150 = por %p148, %p149
      %p151 = scmp.ne.s32.totalorder %s142, %s143
      %p152 = scmp.eq.s32.totalorder %s20, 0
      %p153 = por %p151, %p152
      %p154 = scmp.ne.s32.totalorder %s142, %s143
      %p155 = scmp.eq.s32.totalorder %s21, 7
      %p156 = por %p154, %p155
      %p158 = scmp.ne.s32.totalorder %s143, %s157
      %p159 = scmp.eq.s32.totalorder %s21, 0
      %p160 = por %p158, %p159
      %s162 = sadd.s32 %s161, 1
      %p165 = scmp.eq.s32.totalorder %s15, 7
      %p166 = scmp.ne.s32.totalorder %s161, %s163
      %p167 = scmp.eq.s32.totalorder %s15, 0
      %p168 = por %p166, %p167
      %p169 = scmp.ne.s32.totalorder %s161, %s163
      %p170 = scmp.eq.s32.totalorder %s20, 7
      %p171 = por %p169, %p170
      %p172 = scmp.ne.s32.totalorder %s163, %s164
      %p173 = scmp.eq.s32.totalorder %s20, 0
      %p174 = por %p172, %p173
      %p175 = scmp.ne.s32.totalorder %s163, %s164
      %p176 = scmp.eq.s32.totalorder %s21, 7
      %p177 = por %p175, %p176
      %p179 = scmp.ne.s32.totalorder %s164, %s178
      %p180 = scmp.eq.s32.totalorder %s21, 0
      %p181 = por %p179, %p180
      %s183 = sadd.s32 %s182, 1
      %p186 = scmp.eq.s32.totalorder %s15, 7
      %p187 = scmp.ne.s32.totalorder %s182, %s184
      %p188 = scmp.eq.s32.totalorder %s15, 0
      %p189 = por %p187, %p188
      %p190 = scmp.ne.s32.totalorder %s182, %s184
      %p191 = scmp.eq.s32.totalorder %s20, 7
      %p192 = por %p190, %p191
      %p193 = scmp.ne.s32.totalorder %s184, %s185
      %p194 = scmp.eq.s32.totalorder %s20, 0
      %p195 = por %p193, %p194
      %p196 = scmp.ne.s32.totalorder %s184, %s185
      %p197 = scmp.eq.s32.totalorder %s21, 7
      %p198 = por %p196, %p197
      %p200 = scmp.ne.s32.totalorder %s185, %s199
      %p201 = scmp.eq.s32.totalorder %s21, 0
      %p202 = por %p200, %p201
      %s203 = ssub.s32 %s22, %s34
      %s204 = ssub.s32 %s23, %s30
      %s205 = sor.u32 %s203, %s204
      %p206 = scmp.eq.s32.totalorder %s205, 0
      %s208 = sadd.s32 %s207, 1
      %s209 = scalar_select %p206, %s207, %s208
      %p212 = pneg %p206
      %p213 = scmp.eq.s32.totalorder %s15, 7
      %p214 = por %p212, %p213
      %p215 = scmp.ne.s32.totalorder %s207, %s210
      %p216 = scmp.eq.s32.totalorder %s15, 0
      %p217 = por %p215, %p216
      %p218 = scmp.ne.s32.totalorder %s207, %s210
      %p219 = scmp.eq.s32.totalorder %s20, 7
      %p220 = por %p218, %p219
      %p221 = scmp.ne.s32.totalorder %s210, %s211
      %p222 = scmp.eq.s32.totalorder %s20, 0
      %p223 = por %p221, %p222
      %p224 = scmp.ne.s32.totalorder %s210, %s211
      %p225 = scmp.eq.s32.totalorder %s21, 7
      %p226 = por %p224, %p225
      %p228 = scmp.ne.s32.totalorder %s211, %s227
      %p229 = scmp.eq.s32.totalorder %s21, 0
      %p230 = por %p228, %p229
      %p231 = scmp.le.s32.totalorder 1, %s15
      %p232 = scmp.lt.s32.totalorder %s15, 9
      %p233 = pnand %p231, %p232
      %p234 = pneg %p233
      // Predicated region
      $region9: #{audio_edsr_forward.3} parent=5 // pred_check
        _
      $region10: #{audio_edsr_forward.3} parent=5 // pred_check_branch
        %236 = sbr.rel (%p233) target = $region12
      $region11: #{audio_edsr_forward.3} parent=5 // pred_region
        %s237 = ssub.s32 %s15, 1
        // Predicated region
        $region13: #{audio_edsr_forward.3} parent=11 // pred_check
          %p238 = pneg %p132
        $region14: #{audio_edsr_forward.3} parent=11 // pred_check_branch
          %240 = sbr.rel (%p238) target = $region16
        $region15: #{audio_edsr_forward.3} parent=11 // pred_region
          _
        $region16: #{audio_edsr_forward.3} parent=11 // pred_fallthru
          _
        // Predicated region
        $region17: #{audio_edsr_forward.3} parent=11 // pred_check
          %p241 = pneg %p153
        $region18: #{audio_edsr_forward.3} parent=11 // pred_check_branch
          %243 = sbr.rel (%p241) target = $region20
        $region19: #{audio_edsr_forward.3} parent=11 // pred_region
          _
        $region20: #{audio_edsr_forward.3} parent=11 // pred_fallthru
          _
        // Predicated region
        $region21: #{audio_edsr_forward.3} parent=11 // pred_check
          %p244 = pneg %p174
        $region22: #{audio_edsr_forward.3} parent=11 // pred_check_branch
          %246 = sbr.rel (%p244) target = $region24
        $region23: #{audio_edsr_forward.3} parent=11 // pred_region
          _
        $region24: #{audio_edsr_forward.3} parent=11 // pred_fallthru
          _
        // Predicated region
        $region25: #{audio_edsr_forward.3} parent=11 // pred_check
          %p247 = pneg %p195
        $region26: #{audio_edsr_forward.3} parent=11 // pred_check_branch
          %249 = sbr.rel (%p247) target = $region28
        $region27: #{audio_edsr_forward.3} parent=11 // pred_region
          _
        $region28: #{audio_edsr_forward.3} parent=11 // pred_fallthru
          _
      $region12: #{audio_edsr_forward.3} parent=5 // pred_fallthru
        _
      %p250 = scmp.lt.s32.totalorder %s15, 8
      // Predicated region
      $region29: #{audio_edsr_forward.3} parent=5 // pred_check
        %p251 = pneg %p250
      $region30: #{audio_edsr_forward.3} parent=5 // pred_check_branch
        %253 = sbr.rel (%p251) target = $region32
      $region31: #{audio_edsr_forward.3} parent=5 // pred_region
        // Predicated region
        $region33: #{audio_edsr_forward.3} parent=31 // pred_check
          %p254 = pneg %p49
        $region34: #{audio_edsr_forward.3} parent=31 // pred_check_branch
          %256 = sbr.rel (%p254) target = $region36
        $region35: #{audio_edsr_forward.3} parent=31 // pred_region
          %p257 = scmp.lt.s32.totalorder %s22, 1
          %s258 = scalar_select %p257, %s22, 1
          %p259 = scmp.lt.s32.totalorder %s23, 3
          %s260 = scalar_select %p259, %s23, 3
          %s261 = smul.addr %s260, 4
          %s262 = smul.addr %s258, 16
          %s263 = sadd.s32 %s261, %s262
          %s264 = smul.addr %s263, 8
          %s265 = scalar_lea.vmem %s0, %s264
        $region36: #{audio_edsr_forward.3} parent=31 // pred_fallthru
          _
        // Predicated region
        $region37: #{audio_edsr_forward.3} parent=31 // pred_check
          %p266 = pneg %p77
        $region38: #{audio_edsr_forward.3} parent=31 // pred_check_branch
          %268 = sbr.rel (%p266) target = $region40
        $region39: #{audio_edsr_forward.3} parent=31 // pred_region
          %s269 = sand.u32 %s67, 1
          %s270 = sand.u32 %s67, 1
          %s271 = smul.addr %s270, 32
          %s272 = scalar_lea.vmem [#allocation3], %s271
          %s273 = smul.addr %s22, 16
          %s274 = sadd.s32 %s23, %s273
          %s275 = smul.addr %s274, 8
          %s276 = scalar_lea.vmem %s1, %s275
          // Predicated region
          $region41: #{audio_edsr_forward.3} parent=39 // pred_check
            _
          $region42: #{audio_edsr_forward.3} parent=39 // pred_check_branch
            %278 = sbr.rel (0) target = $region44
          $region43: #{audio_edsr_forward.3} parent=39 // pred_region
            // Predicated region
            $region45: #{audio_edsr_forward.3} parent=43 // pred_check
              _
            $region46: #{audio_edsr_forward.3} parent=43 // pred_check_branch
              %280 = sbr.rel (0) target = $region48
            $region47: #{audio_edsr_forward.3} parent=43 // pred_region
              // Predicated region
              $region60: #{audio_edsr_forward.3} parent=47 // pred_check
                _
              $region61: #{audio_edsr_forward.3} parent=47 // pred_check_branch
                %301 = sbr.rel (0) target = $region63
              $region62: #{audio_edsr_forward.3} parent=47 // pred_region
                loop: start=0, step=1, limit=1
                $region64: #{audio_edsr_forward.3} parent=62 // loop_pre_header
                  _
                $region65: #{audio_edsr_forward.3} parent=62 // loop_header
                  %s303 = sphi 0, %s307
                  %p304 = scmp.ge.s32.totalorder %s303, 1
                  %s308 = sphi %s276, %s276
                  %s309 = sphi %s272, %s272
                $region66: #{audio_edsr_forward.3} parent=62 // loop_header_branch
                  %306 = sbr.rel (%p304) target = $region70
                $region67: #{audio_edsr_forward.3} parent=62 // loop_body
                  %v310 = vld [vmem:[%s308] sm:$0xff]
                  %311 = vst [vmem:[%s309] sm:$0xff] %v310
                  %v312 = vld [vmem:[%s308 + $0x20] sm:$0xff]
                  %313 = vst [vmem:[%s309 + $0x8] sm:$0xff] %v312
                  %v314 = vld [vmem:[%s308 + $0x40] sm:$0xff]
                  %315 = vst [vmem:[%s309 + $0x10] sm:$0xff] %v314
                  %v316 = vld [vmem:[%s308 + $0x60] sm:$0xff]
                  %317 = vst [vmem:[%s309 + $0x18] sm:$0xff] %v316
                $region68: #{audio_edsr_forward.3} parent=62 // loop_footer
                  %s307 = sadd.s32 1, %s303
                $region69: #{audio_edsr_forward.3} parent=62 // loop_footer_branch
                  %302 = sbr.rel target = $region65
                $region70: #{audio_edsr_forward.3} parent=62 // loop_exit
                  _
              $region63: #{audio_edsr_forward.3} parent=47 // pred_fallthru
                _
              // Predicated region
              $region71: #{audio_edsr_forward.3} parent=47 // pred_check
                _
              $region72: #{audio_edsr_forward.3} parent=47 // pred_check_branch
                %319 = sbr.rel target = $region74
              $region73: #{audio_edsr_forward.3} parent=47 // pred_region
                _
              $region74: #{audio_edsr_forward.3} parent=47 // pred_fallthru
                _
            $region48: #{audio_edsr_forward.3} parent=43 // pred_fallthru
              _
            // Predicated region
            $region49: #{audio_edsr_forward.3} parent=43 // pred_check
              _
            $region50: #{audio_edsr_forward.3} parent=43 // pred_check_branch
              %282 = sbr.rel target = $region52
            $region51: #{audio_edsr_forward.3} parent=43 // pred_region
              loop: start=0, step=1, limit=1
              $region53: #{audio_edsr_forward.3} parent=51 // loop_pre_header
                _
              $region54: #{audio_edsr_forward.3} parent=51 // loop_header
                %s285 = sphi 0, %s289
                %p286 = scmp.ge.s32.totalorder %s285, 1
                %s290 = sphi %s276, %s276
                %s291 = sphi %s272, %s272
              $region55: #{audio_edsr_forward.3} parent=51 // loop_header_branch
                %288 = sbr.rel (%p286) target = $region59
              $region56: #{audio_edsr_forward.3} parent=51 // loop_body
                %v292 = vld [vmem:[%s290] sm:$0xff]
                %293 = vst [vmem:[%s291] sm:$0xff] %v292
                %v294 = vld [vmem:[%s290 + $0x20] sm:$0xff]
                %295 = vst [vmem:[%s291 + $0x8] sm:$0xff] %v294
                %v296 = vld [vmem:[%s290 + $0x40] sm:$0xff]
                %297 = vst [vmem:[%s291 + $0x10] sm:$0xff] %v296
                %v298 = vld [vmem:[%s290 + $0x60] sm:$0xff]
                %299 = vst [vmem:[%s291 + $0x18] sm:$0xff] %v298
              $region57: #{audio_edsr_forward.3} parent=51 // loop_footer
                %s289 = sadd.s32 1, %s285
              $region58: #{audio_edsr_forward.3} parent=51 // loop_footer_branch
                %284 = sbr.rel target = $region54
              $region59: #{audio_edsr_forward.3} parent=51 // loop_exit
                _
            $region52: #{audio_edsr_forward.3} parent=43 // pred_fallthru
              _
          $region44: #{audio_edsr_forward.3} parent=39 // pred_fallthru
            _
          %320 = vnop
        $region40: #{audio_edsr_forward.3} parent=31 // pred_fallthru
          _
        // Predicated region
        $region75: #{audio_edsr_forward.3} parent=31 // pred_check
          %p321 = pneg %p105
        $region76: #{audio_edsr_forward.3} parent=31 // pred_check_branch
          %323 = sbr.rel (%p321) target = $region78
        $region77: #{audio_edsr_forward.3} parent=31 // pred_region
          %p324 = scmp.lt.s32.totalorder %s22, 1
          %s325 = scalar_select %p324, %s22, 1
          %p326 = scmp.lt.s32.totalorder %s23, 3
          %s327 = scalar_select %p326, %s23, 3
          %s328 = smul.addr %s327, 4
          %s329 = smul.addr %s325, 16
          %s330 = sadd.s32 %s328, %s329
          %s331 = smul.addr %s330, 8
          %s332 = scalar_lea.vmem %s2, %s331
        $region78: #{audio_edsr_forward.3} parent=31 // pred_fallthru
          _
      $region32: #{audio_edsr_forward.3} parent=5 // pred_fallthru
        _
      %p333 = scmp.le.s32.totalorder 1, %s15
      %p334 = scmp.lt.s32.totalorder %s15, 9
      %p335 = pnand %p333, %p334
      %p336 = pneg %p335
      // Predicated region
      $region79: #{audio_edsr_forward.3} parent=5 // pred_check
        _
      $region80: #{audio_edsr_forward.3} parent=5 // pred_check_branch
        %338 = sbr.rel (%p335) target = $region82
      $region81: #{audio_edsr_forward.3} parent=5 // pred_region
        %s339 = ssub.s32 %s15, 1
        %s340 = sand.u32 %s70, 1
        %s341 = sand.u32 %s70, 1
        %s342 = smul.addr %s341, 32
        %s343 = scalar_lea.vmem [#allocation3], %s342
        // Predicated region
        $region83: #{audio_edsr_forward.3} parent=81 // pred_check
          %p344 = pneg %p83
        $region84: #{audio_edsr_forward.3} parent=81 // pred_check_branch
          %346 = sbr.rel (%p344) target = $region86
        $region85: #{audio_edsr_forward.3} parent=81 // pred_region
          _
        $region86: #{audio_edsr_forward.3} parent=81 // pred_fallthru
          _
        %p347 = scmp.lt.s32.totalorder %s24, 1
        %s348 = scalar_select %p347, %s24, 1
        %p349 = scmp.lt.s32.totalorder %s25, 3
        %s350 = scalar_select %p349, %s25, 3
        %s351 = smul.addr %s350, 4
        %s352 = smul.addr %s348, 16
        %s353 = sadd.s32 %s351, %s352
        %s354 = smul.addr %s353, 8
        %s355 = scalar_lea.vmem %s0, %s354
        %p356 = pneg %p55
        %p357 = pneg %p52
        %s358 = sand.u32 %s70, 1
        %s359 = sand.u32 %s70, 1
        %s360 = smul.addr %s359, 32
        %s361 = scalar_lea.vmem [#allocation3], %s360
        %p362 = pneg %p83
        %p363 = pneg %p80
        %p364 = scmp.lt.s32.totalorder %s24, 1
        %s365 = scalar_select %p364, %s24, 1
        %p366 = scmp.lt.s32.totalorder %s25, 3
        %s367 = scalar_select %p366, %s25, 3
        %s368 = smul.addr %s367, 4
        %s369 = smul.addr %s365, 16
        %s370 = sadd.s32 %s368, %s369
        %s371 = smul.addr %s370, 8
        %s372 = scalar_lea.vmem %s2, %s371
        %p373 = pneg %p111
        %p374 = pneg %p108
        %p375 = pneg %p132
        %p376 = pneg %p129
        %p377 = pneg %p153
        %p378 = pneg %p150
        %p379 = pneg %p174
        %p380 = pneg %p171
        %p381 = pneg %p195
        %p382 = pneg %p192
        %p383 = pneg %p223
        %p384 = pneg %p220
        %s385 = sand.u32 %s210, 1
        %s386 = sand.u32 %s210, 1
        %s387 = smul.addr %s386, 2
        %s388 = scalar_lea.vmem [#allocation4], %s387
        %p389 = scmp.lt.s32.totalorder %s24, 1
        %s390 = scalar_select %p389, %s24, 1
        %p391 = scmp.lt.s32.totalorder %s25, 3
        %s392 = scalar_select %p391, %s25, 3
        %s393 = smul.addr %s392, 4
        %s394 = smul.addr %s390, 16
        %s395 = sadd.s32 %s393, %s394
        %s396 = smul.addr %s395, 8
        %s397 = scalar_lea.vmem %s0, %s396
        %p398 = scmp.lt.s32.totalorder %s24, 1
        %s399 = scalar_select %p398, %s24, 1
        %p400 = scmp.lt.s32.totalorder %s25, 3
        %s401 = scalar_select %p400, %s25, 3
        %s402 = smul.addr %s401, 4
        %s403 = smul.addr %s399, 16
        %s404 = sadd.s32 %s402, %s403
        %s405 = smul.addr %s404, 8
        %s406 = scalar_lea.vmem %s2, %s405
        %v407 = vld [vmem:[%s397] sm:$0xff]
        %v408 = vld [vmem:[%s397 + $0x8] sm:$0xff]
        %v409 = vld [vmem:[%s397 + $0x10] sm:$0xff]
        %v410 = vld [vmem:[%s397 + $0x18] sm:$0xff]
        %v411 = vld [vmem:[%s343] sm:$0xff]
        %v412 = vld [vmem:[%s343 + $0x8] sm:$0xff]
        %v413 = vld [vmem:[%s343 + $0x10] sm:$0xff]
        %v414 = vld [vmem:[%s343 + $0x18] sm:$0xff]
        %v415 = vld [vmem:[%s406] sm:$0xff]
        %v416 = vld [vmem:[%s406 + $0x8] sm:$0xff]
        %v417 = vld [vmem:[%s406 + $0x10] sm:$0xff]
        %v418 = vld [vmem:[%s406 + $0x18] sm:$0xff]
        %423 = vrot.lane.b32.xlu0 %v411, 6
        %v424 = vpop.permute.xlu0 %423
        %425 = vrot.lane.b32.xlu0 %v412, 6
        %v426 = vpop.permute.xlu0 %425
        %427 = vrot.lane.b32.xlu0 %v413, 6
        %v428 = vpop.permute.xlu0 %427
        %429 = vrot.lane.b32.xlu0 %v414, 6
        %v430 = vpop.permute.xlu0 %429
        %439 = vrot.lane.b32.xlu0 %v415, 6
        %v440 = vpop.permute.xlu0 %439
        %441 = vrot.lane.b32.xlu0 %v416, 6
        %v442 = vpop.permute.xlu0 %441
        %443 = vrot.lane.b32.xlu0 %v417, 6
        %v444 = vpop.permute.xlu0 %443
        %445 = vrot.lane.b32.xlu0 %v418, 6
        %v446 = vpop.permute.xlu0 %445
        %vm451 = vcmask 48128
        %v452 = vsel %vm451, %v407, %v424
        %v453 = vsel %vm451, %v408, %v426
        %v454 = vsel %vm451, %v409, %v428
        %v455 = vsel %vm451, %v410, %v430
        %v456 = vsel %vm451, %v424, %v440
        %v457 = vsel %vm451, %v426, %v442
        %v458 = vsel %vm451, %v428, %v444
        %v459 = vsel %vm451, %v430, %v446
        %468 = vrot.lane.b32.xlu0 %v452, 127
        %v469 = vpop.permute.xlu0 %468
        %470 = vrot.lane.b32.xlu0 %v456, 127
        %v471 = vpop.permute.xlu0 %470
        %472 = vrot.lane.b32.xlu0 %v453, 127
        %v473 = vpop.permute.xlu0 %472
        %474 = vrot.lane.b32.xlu0 %v457, 127
        %v475 = vpop.permute.xlu0 %474
        %476 = vrot.lane.b32.xlu0 %v454, 127
        %v477 = vpop.permute.xlu0 %476
        %478 = vrot.lane.b32.xlu0 %v458, 127
        %v479 = vpop.permute.xlu0 %478
        %480 = vrot.lane.b32.xlu0 %v455, 127
        %v481 = vpop.permute.xlu0 %480
        %482 = vrot.lane.b32.xlu0 %v459, 127
        %v483 = vpop.permute.xlu0 %482
        %vm484 = vcmask 1039360
        %v485 = vsel %vm484, %v469, %v471
        %v486 = vsel %vm484, %v473, %v475
        %v487 = vsel %vm484, %v477, %v479
        %v488 = vsel %vm484, %v481, %v483
        %497 = vrot.lane.b32.xlu0 %v452, 126
        %v498 = vpop.permute.xlu0 %497
        %499 = vrot.lane.b32.xlu0 %v456, 126
        %v500 = vpop.permute.xlu0 %499
        %501 = vrot.lane.b32.xlu0 %v453, 126
        %v502 = vpop.permute.xlu0 %501
        %503 = vrot.lane.b32.xlu0 %v457, 126
        %v504 = vpop.permute.xlu0 %503
        %505 = vrot.lane.b32.xlu0 %v454, 126
        %v506 = vpop.permute.xlu0 %505
        %507 = vrot.lane.b32.xlu0 %v458, 126
        %v508 = vpop.permute.xlu0 %507
        %509 = vrot.lane.b32.xlu0 %v455, 126
        %v510 = vpop.permute.xlu0 %509
        %511 = vrot.lane.b32.xlu0 %v459, 126
        %v512 = vpop.permute.xlu0 %511
        %vm513 = vcmask 1031168
        %v514 = vsel %vm513, %v498, %v500
        %v515 = vsel %vm513, %v502, %v504
        %v516 = vsel %vm513, %v506, %v508
        %v517 = vsel %vm513, %v510, %v512
        %526 = vrot.lane.b32.xlu0 %v452, 125
        %v527 = vpop.permute.xlu0 %526
        %528 = vrot.lane.b32.xlu0 %v456, 125
        %v529 = vpop.permute.xlu0 %528
        %530 = vrot.lane.b32.xlu0 %v453, 125
        %v531 = vpop.permute.xlu0 %530
        %532 = vrot.lane.b32.xlu0 %v457, 125
        %v533 = vpop.permute.xlu0 %532
        %534 = vrot.lane.b32.xlu0 %v454, 125
        %v535 = vpop.permute.xlu0 %534
        %536 = vrot.lane.b32.xlu0 %v458, 125
        %v537 = vpop.permute.xlu0 %536
        %538 = vrot.lane.b32.xlu0 %v455, 125
        %v539 = vpop.permute.xlu0 %538
        %540 = vrot.lane.b32.xlu0 %v459, 125
        %v541 = vpop.permute.xlu0 %540
        %vm542 = vcmask 1022976
        %v543 = vsel %vm542, %v527, %v529
        %v544 = vsel %vm542, %v531, %v533
        %v545 = vsel %vm542, %v535, %v537
        %v546 = vsel %vm542, %v539, %v541
        %555 = vrot.lane.b32.xlu0 %v452, 124
        %v556 = vpop.permute.xlu0 %555
        %557 = vrot.lane.b32.xlu0 %v456, 124
        %v558 = vpop.permute.xlu0 %557
        %559 = vrot.lane.b32.xlu0 %v453, 124
        %v560 = vpop.permute.xlu0 %559
        %561 = vrot.lane.b32.xlu0 %v457, 124
        %v562 = vpop.permute.xlu0 %561
        %563 = vrot.lane.b32.xlu0 %v454, 124
        %v564 = vpop.permute.xlu0 %563
        %565 = vrot.lane.b32.xlu0 %v458, 124
        %v566 = vpop.permute.xlu0 %565
        %567 = vrot.lane.b32.xlu0 %v455, 124
        %v568 = vpop.permute.xlu0 %567
        %569 = vrot.lane.b32.xlu0 %v459, 124
        %v570 = vpop.permute.xlu0 %569
        %vm571 = vcmask 1014784
        %v572 = vsel %vm571, %v556, %v558
        %v573 = vsel %vm571, %v560, %v562
        %v574 = vsel %vm571, %v564, %v566
        %v575 = vsel %vm571, %v568, %v570
        %584 = vrot.lane.b32.xlu0 %v452, 123
        %v585 = vpop.permute.xlu0 %584
        %586 = vrot.lane.b32.xlu0 %v456, 123
        %v587 = vpop.permute.xlu0 %586
        %588 = vrot.lane.b32.xlu0 %v453, 123
        %v589 = vpop.permute.xlu0 %588
        %590 = vrot.lane.b32.xlu0 %v457, 123
        %v591 = vpop.permute.xlu0 %590
        %592 = vrot.lane.b32.xlu0 %v454, 123
        %v593 = vpop.permute.xlu0 %592
        %594 = vrot.lane.b32.xlu0 %v458, 123
        %v595 = vpop.permute.xlu0 %594
        %596 = vrot.lane.b32.xlu0 %v455, 123
        %v597 = vpop.permute.xlu0 %596
        %598 = vrot.lane.b32.xlu0 %v459, 123
        %v599 = vpop.permute.xlu0 %598
        %vm600 = vcmask 1006592
        %v601 = vsel %vm600, %v585, %v587
        %v602 = vsel %vm600, %v589, %v591
        %v603 = vsel %vm600, %v593, %v595
        %v604 = vsel %vm600, %v597, %v599
        %613 = vrot.lane.b32.xlu0 %v452, 122
        %v614 = vpop.permute.xlu0 %613
        %615 = vrot.lane.b32.xlu0 %v456, 122
        %v616 = vpop.permute.xlu0 %615
        %617 = vrot.lane.b32.xlu0 %v453, 122
        %v618 = vpop.permute.xlu0 %617
        %619 = vrot.lane.b32.xlu0 %v457, 122
        %v620 = vpop.permute.xlu0 %619
        %621 = vrot.lane.b32.xlu0 %v454, 122
        %v622 = vpop.permute.xlu0 %621
        %623 = vrot.lane.b32.xlu0 %v458, 122
        %v624 = vpop.permute.xlu0 %623
        %625 = vrot.lane.b32.xlu0 %v455, 122
        %v626 = vpop.permute.xlu0 %625
        %627 = vrot.lane.b32.xlu0 %v459, 122
        %v628 = vpop.permute.xlu0 %627
        %vm629 = vcmask 998400
        %v630 = vsel %vm629, %v614, %v616
        %v631 = vsel %vm629, %v618, %v620
        %v632 = vsel %vm629, %v622, %v624
        %v633 = vsel %vm629, %v626, %v628
        %642 = vrot.lane.b32.xlu0 %v452, 121
        %v643 = vpop.permute.xlu0 %642
        %644 = vrot.lane.b32.xlu0 %v456, 121
        %v645 = vpop.permute.xlu0 %644
        %646 = vrot.lane.b32.xlu0 %v453, 121
        %v647 = vpop.permute.xlu0 %646
        %648 = vrot.lane.b32.xlu0 %v457, 121
        %v649 = vpop.permute.xlu0 %648
        %650 = vrot.lane.b32.xlu0 %v454, 121
        %v651 = vpop.permute.xlu0 %650
        %652 = vrot.lane.b32.xlu0 %v458, 121
        %v653 = vpop.permute.xlu0 %652
        %654 = vrot.lane.b32.xlu0 %v455, 121
        %v655 = vpop.permute.xlu0 %654
        %656 = vrot.lane.b32.xlu0 %v459, 121
        %v657 = vpop.permute.xlu0 %656
        %vm658 = vcmask 990208
        %v659 = vsel %vm658, %v643, %v645
        %v660 = vsel %vm658, %v647, %v649
        %v661 = vsel %vm658, %v651, %v653
        %v662 = vsel %vm658, %v655, %v657
        %671 = vrot.lane.b32.xlu0 %v452, 120
        %v672 = vpop.permute.xlu0 %671
        %673 = vrot.lane.b32.xlu0 %v456, 120
        %v674 = vpop.permute.xlu0 %673
        %675 = vrot.lane.b32.xlu0 %v453, 120
        %v676 = vpop.permute.xlu0 %675
        %677 = vrot.lane.b32.xlu0 %v457, 120
        %v678 = vpop.permute.xlu0 %677
        %679 = vrot.lane.b32.xlu0 %v454, 120
        %v680 = vpop.permute.xlu0 %679
        %681 = vrot.lane.b32.xlu0 %v458, 120
        %v682 = vpop.permute.xlu0 %681
        %683 = vrot.lane.b32.xlu0 %v455, 120
        %v684 = vpop.permute.xlu0 %683
        %685 = vrot.lane.b32.xlu0 %v459, 120
        %v686 = vpop.permute.xlu0 %685
        %vm687 = vcmask 982016
        %v688 = vsel %vm687, %v672, %v674
        %v689 = vsel %vm687, %v676, %v678
        %v690 = vsel %vm687, %v680, %v682
        %v691 = vsel %vm687, %v684, %v686
        %v700 = vld [vmem:[%s3] sm:$0xff]
        %v701 = vld [vmem:[%s3 + $0x8] sm:$0xff]
        %v702 = vld [vmem:[%s3 + $0x10] sm:$0xff]
        %v703 = vld [vmem:[%s3 + $0x18] sm:$0xff]
        %v704 = vld [vmem:[%s3 + $0x20] sm:$0xff]
        %v705 = vld [vmem:[%s3 + $0x28] sm:$0xff]
        %v706 = vld [vmem:[%s3 + $0x30] sm:$0xff]
        %v707 = vld [vmem:[%s3 + $0x38] sm:$0xff]
        %v708 = vld [vmem:[%s3 + $0x40] sm:$0xff]
        %v709 = vld [vmem:[%s3 + $0x48] sm:$0xff]
        %v710 = vld [vmem:[%s3 + $0x50] sm:$0xff]
        %v711 = vld [vmem:[%s3 + $0x58] sm:$0xff]
        %v712 = vld [vmem:[%s3 + $0x60] sm:$0xff]
        %v713 = vld [vmem:[%s3 + $0x68] sm:$0xff]
        %v714 = vld [vmem:[%s3 + $0x70] sm:$0xff]
        %v715 = vld [vmem:[%s3 + $0x78] sm:$0xff]
        %v716 = vld [vmem:[%s3 + $0x80] sm:$0xff]
        %v717 = vld [vmem:[%s3 + $0x88] sm:$0xff]
        %v718 = vld [vmem:[%s3 + $0x90] sm:$0xff]
        %v719 = vld [vmem:[%s3 + $0x98] sm:$0xff]
        %v720 = vld [vmem:[%s3 + $0xa0] sm:$0xff]
        %v721 = vld [vmem:[%s3 + $0xa8] sm:$0xff]
        %v722 = vld [vmem:[%s3 + $0xb0] sm:$0xff]
        %v723 = vld [vmem:[%s3 + $0xb8] sm:$0xff]
        %v724 = vld [vmem:[%s4] sm:$0xff]
        %v725 = vld [vmem:[%s4 + $0x8] sm:$0xff]
        %v726 = vld [vmem:[%s4 + $0x10] sm:$0xff]
        %v727 = vld [vmem:[%s4 + $0x18] sm:$0xff]
        %v728 = vld [vmem:[%s4 + $0x20] sm:$0xff]
        %v729 = vld [vmem:[%s4 + $0x28] sm:$0xff]
        %v730 = vld [vmem:[%s4 + $0x30] sm:$0xff]
        %v731 = vld [vmem:[%s4 + $0x38] sm:$0xff]
        %733 = vset.pattern.permute.xlu0 0
        %734 = vperm.xlu0 %733, %v724
        %v735 = vpop.permute.xlu0 %734
        %738 = vset.pattern.permute.xlu0 0
        %739 = vperm.xlu0 %738, %v725
        %v740 = vpop.permute.xlu0 %739
        %743 = vset.pattern.permute.xlu0 0
        %744 = vperm.xlu0 %743, %v726
        %v745 = vpop.permute.xlu0 %744
        %748 = vset.pattern.permute.xlu0 0
        %749 = vperm.xlu0 %748, %v727
        %v750 = vpop.permute.xlu0 %749
        %753 = vset.pattern.permute.xlu0 0
        %754 = vperm.xlu0 %753, %v728
        %v755 = vpop.permute.xlu0 %754
        %758 = vset.pattern.permute.xlu0 0
        %759 = vperm.xlu0 %758, %v729
        %v760 = vpop.permute.xlu0 %759
        %763 = vset.pattern.permute.xlu0 0
        %764 = vperm.xlu0 %763, %v730
        %v765 = vpop.permute.xlu0 %764
        %768 = vset.pattern.permute.xlu0 0
        %769 = vperm.xlu0 %768, %v731
        %v770 = vpop.permute.xlu0 %769
        %vm772 = vcmask 261120
        %v774 = vsel %vm772, %v702, 0
        %v777 = vsel %vm772, %v705, 0
        %v780 = vsel %vm772, %v708, 0
        %v783 = vsel %vm772, %v711, 0
        %v786 = vsel %vm772, %v714, 0
        %v789 = vsel %vm772, %v717, 0
        %v792 = vsel %vm772, %v720, 0
        %v795 = vsel %vm772, %v723, 0
        %797 = vmatprep.subr.mxu0 %v456
        %798 = vmatpush1.msra.mxu0 %v452
        %799 = vmatprep.subr.mxu0 %v457
        %800 = vmatpush1.msra.mxu0 %v453
        %801 = vmatprep.subr.mxu0 %v458
        %802 = vmatpush1.msra.mxu0 %v454
        %803 = vmatprep.subr.mxu0 %v459
        %804 = vmatpush1.msra.mxu0 %v455
        %805 = vmatprep.subr.mxu0 %v471
        %806 = vmatpush1.msra.mxu0 %v485
        %807 = vmatprep.subr.mxu0 %v475
        %808 = vmatpush1.msra.mxu0 %v486
        %809 = vmatprep.subr.mxu0 %v479
        %810 = vmatpush1.msra.mxu0 %v487
        %811 = vmatprep.subr.mxu0 %v483
        %812 = vmatpush1.msra.mxu0 %v488
        %813 = vmatprep.subr.mxu0 %v500
        %814 = vmatpush1.msra.mxu0 %v514
        %815 = vmatprep.subr.mxu0 %v504
        %816 = vmatpush1.msra.mxu0 %v515
        %817 = vmatprep.subr.mxu0 %v508
        %818 = vmatpush1.msra.mxu0 %v516
        %819 = vmatprep.subr.mxu0 %v512
        %820 = vmatpush1.msra.mxu0 %v517
        %821 = vmatprep.subr.mxu0 %v529
        %822 = vmatpush1.msra.mxu0 %v543
        %823 = vmatprep.subr.mxu0 %v533
        %824 = vmatpush1.msra.mxu0 %v544
        %825 = vmatprep.subr.mxu0 %v537
        %826 = vmatpush1.msra.mxu0 %v545
        %827 = vmatprep.subr.mxu0 %v541
        %828 = vmatpush1.msra.mxu0 %v546
        %829 = vmatprep.subr.mxu0 %v558
        %830 = vmatpush1.msra.mxu0 %v572
        %831 = vmatprep.subr.mxu0 %v562
        %832 = vmatpush1.msra.mxu0 %v573
        %833 = vmatprep.subr.mxu0 %v566
        %834 = vmatpush1.msra.mxu0 %v574
        %835 = vmatprep.subr.mxu0 %v570
        %836 = vmatpush1.msra.mxu0 %v575
        %837 = vmatprep.subr.mxu0 %v587
        %838 = vmatpush1.msra.mxu0 %v601
        %839 = vmatprep.subr.mxu0 %v591
        %840 = vmatpush1.msra.mxu0 %v602
        %841 = vmatprep.subr.mxu0 %v595
        %842 = vmatpush1.msra.mxu0 %v603
        %843 = vmatprep.subr.mxu0 %v599
        %844 = vmatpush1.msra.mxu0 %v604
        %845 = vmatprep.subr.mxu0 %v616
        %846 = vmatpush1.msra.mxu0 %v630
        %847 = vmatprep.subr.mxu0 %v620
        %848 = vmatpush1.msra.mxu0 %v631
        %849 = vmatprep.subr.mxu0 %v624
        %850 = vmatpush1.msra.mxu0 %v632
        %851 = vmatprep.subr.mxu0 %v628
        %852 = vmatpush1.msra.mxu0 %v633
        %853 = vmatprep.subr.mxu0 %v645
        %854 = vmatpush1.msra.mxu0 %v659
        %855 = vmatprep.subr.mxu0 %v649
        %856 = vmatpush1.msra.mxu0 %v660
        %857 = vmatprep.subr.mxu0 %v653
        %858 = vmatpush1.msra.mxu0 %v661
        %859 = vmatprep.subr.mxu0 %v657
        %860 = vmatpush1.msra.mxu0 %v662
        %861 = vmatprep.mubr.f32.mxu0 %v701
        %862 = vmatmul.mubr.f32.gmra.mrb[0].mxu0 %v700
        %v863 = vpop.f32.mrb[0].mxu0
        %v864 = vadd.f32 %v735, %v863
        %v865 = vpop.f32.mrb[0].mxu0
        %v866 = vadd.f32 %v735, %v865
        %867 = vmatprep.mubr.f32.mxu0 %v704
        %868 = vmatmul.mubr.f32.gmra.mrb[0].mxu0 %v703
        %v869 = vpop.f32.mrb[0].mxu0
        %v870 = vadd.f32 %v740, %v869
        %v871 = vpop.f32.mrb[0].mxu0
        %v872 = vadd.f32 %v740, %v871
        %873 = vmatprep.mubr.f32.mxu0 %v707
        %874 = vmatmul.mubr.f32.gmra.mrb[0].mxu0 %v706
        %v875 = vpop.f32.mrb[0].mxu0
        %v876 = vadd.f32 %v745, %v875
        %v877 = vpop.f32.mrb[0].mxu0
        %v878 = vadd.f32 %v745, %v877
        %879 = vmatprep.mubr.f32.mxu0 %v710
        %880 = vmatmul.mubr.f32.gmra.mrb[0].mxu0 %v709
        %v881 = vpop.f32.mrb[0].mxu0
        %v882 = vadd.f32 %v750, %v881
        %v883 = vpop.f32.mrb[0].mxu0
        %v884 = vadd.f32 %v750, %v883
        %885 = vmatprep.mubr.f32.mxu0 %v713
        %886 = vmatmul.mubr.f32.gmra.mrb[0].mxu0 %v712
        %v887 = vpop.f32.mrb[0].mxu0
        %v888 = vadd.f32 %v755, %v887
        %v889 = vpop.f32.mrb[0].mxu0
        %v890 = vadd.f32 %v755, %v889
        %891 = vmatprep.mubr.f32.mxu0 %v716
        %892 = vmatmul.mubr.f32.gmra.mrb[0].mxu0 %v715
        %v893 = vpop.f32.mrb[0].mxu0
        %v894 = vadd.f32 %v760, %v893
        %v895 = vpop.f32.mrb[0].mxu0
        %v896 = vadd.f32 %v760, %v895
        %897 = vmatprep.mubr.f32.mxu0 %v719
        %898 = vmatmul.mubr.f32.gmra.mrb[0].mxu0 %v718
        %v899 = vpop.f32.mrb[0].mxu0
        %v900 = vadd.f32 %v765, %v899
        %v901 = vpop.f32.mrb[0].mxu0
        %v902 = vadd.f32 %v765, %v901
        %903 = vmatprep.mubr.f32.mxu0 %v722
        %904 = vmatmul.mubr.f32.gmra.mrb[0].mxu0 %v721
        %v905 = vpop.f32.mrb[0].mxu0
        %v906 = vadd.f32 %v770, %v905
        %v907 = vpop.f32.mrb[0].mxu0
        %v908 = vadd.f32 %v770, %v907
        %909 = vdwg.mxu0
        %910 = vmatprep.subr.mxu0 %v674
        %911 = vmatpush1.msra.mxu0 %v688
        %912 = vmatprep.subr.mxu0 %v678
        %913 = vmatpush1.msra.mxu0 %v689
        %914 = vmatprep.subr.mxu0 %v682
        %915 = vmatpush1.msra.mxu0 %v690
        %916 = vmatprep.subr.mxu0 %v686
        %917 = vmatpush1.msra.mxu0 %v691
        %918 = vmatprep.subr.mxu0 0.0
        %919 = vmatpush1.msra.mxu0 0.0
        %920 = vmatprep.subr.mxu0 0.0
        %921 = vmatpush1.msra.mxu0 0.0
        %922 = vmatprep.subr.mxu0 0.0
        %923 = vmatpush1.msra.mxu0 0.0
        %924 = vmatprep.subr.mxu0 0.0
        %925 = vmatpush1.msra.mxu0 0.0
        %926 = vmatprep.subr.mxu0 0.0
        %927 = vmatpush1.msra.mxu0 0.0
        %928 = vmatprep.subr.mxu0 0.0
        %929 = vmatpush1.msra.mxu0 0.0
        %930 = vmatprep.subr.mxu0 0.0
        %931 = vmatpush1.msra.mxu0 0.0
        %932 = vmatprep.subr.mxu0 0.0
        %933 = vmatpush1.msra.mxu0 0.0
        %934 = vmatprep.subr.mxu0 0.0
        %935 = vmatpush1.msra.mxu0 0.0
        %936 = vmatprep.subr.mxu0 0.0
        %937 = vmatpush1.msra.mxu0 0.0
        %938 = vmatprep.subr.mxu0 0.0
        %939 = vmatpush1.msra.mxu0 0.0
        %940 = vmatprep.subr.mxu0 0.0
        %941 = vmatpush1.msra.mxu0 0.0
        %942 = vmatprep.subr.mxu0 0.0
        %943 = vmatpush1.msra.mxu0 0.0
        %944 = vmatprep.subr.mxu0 0.0
        %945 = vmatpush1.msra.mxu0 0.0
        %946 = vmatprep.subr.mxu0 0.0
        %947 = vmatpush1.msra.mxu0 0.0
        %948 = vmatprep.subr.mxu0 0.0
        %949 = vmatpush1.msra.mxu0 0.0
        %950 = vmatprep.subr.mxu0 0.0
        %951 = vmatpush1.msra.mxu0 0.0
        %952 = vmatprep.subr.mxu0 0.0
        %953 = vmatpush1.msra.mxu0 0.0
        %954 = vmatprep.subr.mxu0 0.0
        %955 = vmatpush1.msra.mxu0 0.0
        %956 = vmatprep.subr.mxu0 0.0
        %957 = vmatpush1.msra.mxu0 0.0
        %958 = vmatprep.subr.mxu0 0.0
        %959 = vmatpush1.msra.mxu0 0.0
        %960 = vmatprep.subr.mxu0 0.0
        %961 = vmatpush1.msra.mxu0 0.0
        %962 = vmatprep.subr.mxu0 0.0
        %963 = vmatpush1.msra.mxu0 0.0
        %964 = vmatprep.subr.mxu0 0.0
        %965 = vmatpush1.msra.mxu0 0.0
        %966 = vmatprep.subr.mxu0 0.0
        %967 = vmatpush1.msra.mxu0 0.0
        %968 = vmatprep.subr.mxu0 0.0
        %969 = vmatpush1.msra.mxu0 0.0
        %970 = vmatprep.subr.mxu0 0.0
        %971 = vmatpush1.msra.mxu0 0.0
        %972 = vmatprep.subr.mxu0 0.0
        %973 = vmatpush1.msra.mxu0 0.0
        %974 = vmatprep.mubr.f32.mxu0 0.0
        %975 = vmatmul.mubr.f32.gmra.mrb[0].mxu0 %v774
        %v976 = vpop.f32.mrb[0].mxu0
        %v977 = vadd.f32 %v864, %v976
        %v978 = vpop.f32.mrb[0].mxu0
        %v979 = vadd.f32 %v866, %v978
        %980 = vmatprep.mubr.f32.mxu0 0.0
        %981 = vmatmul.mubr.f32.gmra.mrb[0].mxu0 %v777
        %v982 = vpop.f32.mrb[0].mxu0
        %v983 = vadd.f32 %v870, %v982
        %v984 = vpop.f32.mrb[0].mxu0
        %v985 = vadd.f32 %v872, %v984
        %986 = vmatprep.mubr.f32.mxu0 0.0
        %987 = vmatmul.mubr.f32.gmra.mrb[0].mxu0 %v780
        %v988 = vpop.f32.mrb[0].mxu0
        %v989 = vadd.f32 %v876, %v988
        %v990 = vpop.f32.mrb[0].mxu0
        %v991 = vadd.f32 %v878, %v990
        %992 = vmatprep.mubr.f32.mxu0 0.0
        %993 = vmatmul.mubr.f32.gmra.mrb[0].mxu0 %v783
        %v994 = vpop.f32.mrb[0].mxu0
        %v995 = vadd.f32 %v882, %v994
        %v996 = vpop.f32.mrb[0].mxu0
        %v997 = vadd.f32 %v884, %v996
        %998 = vmatprep.mubr.f32.mxu0 0.0
        %999 = vmatmul.mubr.f32.gmra.mrb[0].mxu0 %v786
        %v1000 = vpop.f32.mrb[0].mxu0
        %v1001 = vadd.f32 %v888, %v1000
        %v1002 = vpop.f32.mrb[0].mxu0
        %v1003 = vadd.f32 %v890, %v1002
        %1004 = vmatprep.mubr.f32.mxu0 0.0
        %1005 = vmatmul.mubr.f32.gmra.mrb[0].mxu0 %v789
        %v1006 = vpop.f32.mrb[0].mxu0
        %v1007 = vadd.f32 %v894, %v1006
        %v1008 = vpop.f32.mrb[0].mxu0
        %v1009 = vadd.f32 %v896, %v1008
        %1010 = vmatprep.mubr.f32.mxu0 0.0
        %1011 = vmatmul.mubr.f32.gmra.mrb[0].mxu0 %v792
        %v1012 = vpop.f32.mrb[0].mxu0
        %v1013 = vadd.f32 %v900, %v1012
        %v1014 = vpop.f32.mrb[0].mxu0
        %v1015 = vadd.f32 %v902, %v1014
        %1016 = vmatprep.mubr.f32.mxu0 0.0
        %1017 = vmatmul.mubr.f32.gmra.mrb[0].mxu0 %v795
        %v1018 = vpop.f32.mrb[0].mxu0
        %v1019 = vadd.f32 %v906, %v1018
        %v1020 = vpop.f32.mrb[0].mxu0
        %v1021 = vadd.f32 %v908, %v1020
        %1022 = vdwg.mxu0
        %s1023 = smul.u32 %s25, 128
        %s1024 = ssub.s32 %s1023, 2
        %v1025 = vlaneseq
        %v1026 = vand.u32 %v1025, 127
        %v1027 = vadd.s32 %v1026, 128
        %v1028 = vstv %s1024
        %v1029 = vadd.s32 %v1028, %v1026
        %v1030 = vadd.s32 %v1028, %v1027
        %vm1031 = vcmp.ge.s32.totalorder %v1029, 0
        %vm1032 = vcmp.ge.s32.totalorder %v1030, 0
        %vm1033 = vcmp.lt.s32.totalorder %v1029, 400
        %vm1034 = vcmp.lt.s32.totalorder %v1030, 400
        %vm1035 = vmand %vm1031, %vm1033
        %vm1036 = vmand %vm1032, %vm1034
        %v1037 = vsel %vm1035, 1, 0
        %v1038 = vsel %vm1036, 1, 0
        %vm1039 = vcmp.eq.s32.totalorder %v1037, 1
        %vm1040 = vcmp.eq.s32.totalorder %v1038, 1
        %v1041 = vsel %vm1039, %v977, 0.0
        %v1042 = vsel %vm1040, %v979, 0.0
        %v1043 = vsel %vm1039, %v983, 0.0
        %v1044 = vsel %vm1040, %v985, 0.0
        %v1045 = vsel %vm1039, %v989, 0.0
        %v1046 = vsel %vm1040, %v991, 0.0
        %v1047 = vsel %vm1039, %v995, 0.0
        %v1048 = vsel %vm1040, %v997, 0.0
        %v1049 = vsel %vm1039, %v1001, 0.0
        %v1050 = vsel %vm1040, %v1003, 0.0
        %v1051 = vsel %vm1039, %v1007, 0.0
        %v1052 = vsel %vm1040, %v1009, 0.0
        %v1053 = vsel %vm1039, %v1013, 0.0
        %v1054 = vsel %vm1040, %v1015, 0.0
        %v1055 = vsel %vm1039, %v1019, 0.0
        %v1056 = vsel %vm1040, %v1021, 0.0
        %v1057 = vld [vmem:[%s5] sm:$0x7]
        %v1058 = vld [vmem:[#allocation2] sm:$0x1]
        %1067 = vrot.lane.b32.xlu0 %v1041, 127
        %v1068 = vpop.permute.xlu0 %1067
        %1069 = vrot.lane.b32.xlu0 %v1042, 127
        %v1070 = vpop.permute.xlu0 %1069
        %1071 = vrot.lane.b32.xlu0 %v1043, 127
        %v1072 = vpop.permute.xlu0 %1071
        %1073 = vrot.lane.b32.xlu0 %v1044, 127
        %v1074 = vpop.permute.xlu0 %1073
        %1075 = vrot.lane.b32.xlu0 %v1045, 127
        %v1076 = vpop.permute.xlu0 %1075
        %1077 = vrot.lane.b32.xlu0 %v1046, 127
        %v1078 = vpop.permute.xlu0 %1077
        %1079 = vrot.lane.b32.xlu0 %v1047, 127
        %v1080 = vpop.permute.xlu0 %1079
        %1081 = vrot.lane.b32.xlu0 %v1048, 127
        %v1082 = vpop.permute.xlu0 %1081
        %v1083 = vsel %vm484, %v1068, %v1070
        %v1084 = vsel %vm484, %v1072, %v1074
        %v1085 = vsel %vm484, %v1076, %v1078
        %v1086 = vsel %vm484, %v1080, %v1082
        %1099 = vrot.lane.b32.xlu0 %v1049, 127
        %v1100 = vpop.permute.xlu0 %1099
        %1101 = vrot.lane.b32.xlu0 %v1050, 127
        %v1102 = vpop.permute.xlu0 %1101
        %1103 = vrot.lane.b32.xlu0 %v1051, 127
        %v1104 = vpop.permute.xlu0 %1103
        %1105 = vrot.lane.b32.xlu0 %v1052, 127
        %v1106 = vpop.permute.xlu0 %1105
        %1107 = vrot.lane.b32.xlu0 %v1053, 127
        %v1108 = vpop.permute.xlu0 %1107
        %1109 = vrot.lane.b32.xlu0 %v1054, 127
        %v1110 = vpop.permute.xlu0 %1109
        %1111 = vrot.lane.b32.xlu0 %v1055, 127
        %v1112 = vpop.permute.xlu0 %1111
        %1113 = vrot.lane.b32.xlu0 %v1056, 127
        %v1114 = vpop.permute.xlu0 %1113
        %v1115 = vsel %vm484, %v1100, %v1102
        %v1116 = vsel %vm484, %v1104, %v1106
        %v1117 = vsel %vm484, %v1108, %v1110
        %v1118 = vsel %vm484, %v1112, %v1114
        %1123 = vrot.lane.b32.xlu0 %v1041, 126
        %v1124 = vpop.permute.xlu0 %1123
        %1125 = vrot.lane.b32.xlu0 %v1042, 126
        %v1126 = vpop.permute.xlu0 %1125
        %1127 = vrot.lane.b32.xlu0 %v1043, 126
        %v1128 = vpop.permute.xlu0 %1127
        %1129 = vrot.lane.b32.xlu0 %v1044, 126
        %v1130 = vpop.permute.xlu0 %1129
        %1131 = vrot.lane.b32.xlu0 %v1045, 126
        %v1132 = vpop.permute.xlu0 %1131
        %1133 = vrot.lane.b32.xlu0 %v1046, 126
        %v1134 = vpop.permute.xlu0 %1133
        %1135 = vrot.lane.b32.xlu0 %v1047, 126
        %v1136 = vpop.permute.xlu0 %1135
        %1137 = vrot.lane.b32.xlu0 %v1048, 126
        %v1138 = vpop.permute.xlu0 %1137
        %v1139 = vsel %vm513, %v1124, %v1126
        %v1140 = vsel %vm513, %v1128, %v1130
        %v1141 = vsel %vm513, %v1132, %v1134
        %v1142 = vsel %vm513, %v1136, %v1138
        %1147 = vrot.lane.b32.xlu0 %v1049, 126
        %v1148 = vpop.permute.xlu0 %1147
        %1149 = vrot.lane.b32.xlu0 %v1050, 126
        %v1150 = vpop.permute.xlu0 %1149
        %1151 = vrot.lane.b32.xlu0 %v1051, 126
        %v1152 = vpop.permute.xlu0 %1151
        %1153 = vrot.lane.b32.xlu0 %v1052, 126
        %v1154 = vpop.permute.xlu0 %1153
        %1155 = vrot.lane.b32.xlu0 %v1053, 126
        %v1156 = vpop.permute.xlu0 %1155
        %1157 = vrot.lane.b32.xlu0 %v1054, 126
        %v1158 = vpop.permute.xlu0 %1157
        %1159 = vrot.lane.b32.xlu0 %v1055, 126
        %v1160 = vpop.permute.xlu0 %1159
        %1161 = vrot.lane.b32.xlu0 %v1056, 126
        %v1162 = vpop.permute.xlu0 %1161
        %v1163 = vsel %vm513, %v1148, %v1150
        %v1164 = vsel %vm513, %v1152, %v1154
        %v1165 = vsel %vm513, %v1156, %v1158
        %v1166 = vsel %vm513, %v1160, %v1162
        %1171 = vrot.lane.b32.xlu0 %v1041, 125
        %v1172 = vpop.permute.xlu0 %1171
        %1173 = vrot.lane.b32.xlu0 %v1042, 125
        %v1174 = vpop.permute.xlu0 %1173
        %1175 = vrot.lane.b32.xlu0 %v1043, 125
        %v1176 = vpop.permute.xlu0 %1175
        %1177 = vrot.lane.b32.xlu0 %v1044, 125
        %v1178 = vpop.permute.xlu0 %1177
        %1179 = vrot.lane.b32.xlu0 %v1045, 125
        %v1180 = vpop.permute.xlu0 %1179
        %1181 = vrot.lane.b32.xlu0 %v1046, 125
        %v1182 = vpop.permute.xlu0 %1181
        %1183 = vrot.lane.b32.xlu0 %v1047, 125
        %v1184 = vpop.permute.xlu0 %1183
        %1185 = vrot.lane.b32.xlu0 %v1048, 125
        %v1186 = vpop.permute.xlu0 %1185
        %v1187 = vsel %vm542, %v1172, %v1174
        %v1188 = vsel %vm542, %v1176, %v1178
        %v1189 = vsel %vm542, %v1180, %v1182
        %v1190 = vsel %vm542, %v1184, %v1186
        %1195 = vrot.lane.b32.xlu0 %v1049, 125
        %v1196 = vpop.permute.xlu0 %1195
        %1197 = vrot.lane.b32.xlu0 %v1050, 125
        %v1198 = vpop.permute.xlu0 %1197
        %1199 = vrot.lane.b32.xlu0 %v1051, 125
        %v1200 = vpop.permute.xlu0 %1199
        %1201 = vrot.lane.b32.xlu0 %v1052, 125
        %v1202 = vpop.permute.xlu0 %1201
        %1203 = vrot.lane.b32.xlu0 %v1053, 125
        %v1204 = vpop.permute.xlu0 %1203
        %1205 = vrot.lane.b32.xlu0 %v1054, 125
        %v1206 = vpop.permute.xlu0 %1205
        %1207 = vrot.lane.b32.xlu0 %v1055, 125
        %v1208 = vpop.permute.xlu0 %1207
        %1209 = vrot.lane.b32.xlu0 %v1056, 125
        %v1210 = vpop.permute.xlu0 %1209
        %v1211 = vsel %vm542, %v1196, %v1198
        %v1212 = vsel %vm542, %v1200, %v1202
        %v1213 = vsel %vm542, %v1204, %v1206
        %v1214 = vsel %vm542, %v1208, %v1210
        %1219 = vrot.lane.b32.xlu0 %v1041, 124
        %v1220 = vpop.permute.xlu0 %1219
        %1221 = vrot.lane.b32.xlu0 %v1042, 124
        %v1222 = vpop.permute.xlu0 %1221
        %1223 = vrot.lane.b32.xlu0 %v1043, 124
        %v1224 = vpop.permute.xlu0 %1223
        %1225 = vrot.lane.b32.xlu0 %v1044, 124
        %v1226 = vpop.permute.xlu0 %1225
        %1227 = vrot.lane.b32.xlu0 %v1045, 124
        %v1228 = vpop.permute.xlu0 %1227
        %1229 = vrot.lane.b32.xlu0 %v1046, 124
        %v1230 = vpop.permute.xlu0 %1229
        %1231 = vrot.lane.b32.xlu0 %v1047, 124
        %v1232 = vpop.permute.xlu0 %1231
        %1233 = vrot.lane.b32.xlu0 %v1048, 124
        %v1234 = vpop.permute.xlu0 %1233
        %v1235 = vsel %vm571, %v1220, %v1222
        %v1236 = vsel %vm571, %v1224, %v1226
        %v1237 = vsel %vm571, %v1228, %v1230
        %v1238 = vsel %vm571, %v1232, %v1234
        %1244 = vset.pattern.permute.xlu0 0
        %1245 = vperm.xlu0 %1244, %v1058
        %v1246 = vpop.permute.xlu0 %1245
        %v1248 = vlaneseq
        %v1249 = vshrl.u32 %v1248, 7
        %v1250 = vsub.s32 0, %v1249
        %v1251 = vrot.slane %v1246, %v1250
        %v1253 = vlaneseq
        %v1254 = vshrl.u32 %v1253, 7
        %v1255 = vsub.s32 0, %v1254
        %v1256 = vrot.slane %v1057, %v1255
        %v1257 = vlaneseq
        %v1258 = vshrl.u32 %v1257, 7
        %v1259 = vsub.s32 1, %v1258
        %v1260 = vrot.slane %v1057, %v1259
        %v1261 = vlaneseq
        %v1262 = vshrl.u32 %v1261, 7
        %v1263 = vsub.s32 2, %v1262
        %v1264 = vrot.slane %v1057, %v1263
        %v1267 = vsel %vm772, %v1264, 0
        %1269 = vmatprep.subr.mxu0 0.0
        %1270 = vmatpush1.msra.mxu0 %v1041
        %1271 = vmatprep.subr.mxu0 0.0
        %1272 = vmatpush1.msra.mxu0 %v1043
        %1273 = vmatprep.subr.mxu0 0.0
        %1274 = vmatpush1.msra.mxu0 %v1045
        %1275 = vmatprep.subr.mxu0 0.0
        %1276 = vmatpush1.msra.mxu0 %v1047
        %1277 = vmatprep.subr.mxu0 0.0
        %1278 = vmatpush1.msra.mxu0 %v1049
        %1279 = vmatprep.subr.mxu0 0.0
        %1280 = vmatpush1.msra.mxu0 %v1051
        %1281 = vmatprep.subr.mxu0 0.0
        %1282 = vmatpush1.msra.mxu0 %v1053
        %1283 = vmatprep.subr.mxu0 0.0
        %1284 = vmatpush1.msra.mxu0 %v1055
        %1285 = vmatprep.subr.mxu0 0.0
        %1286 = vmatpush1.msra.mxu0 %v1083
        %1287 = vmatprep.subr.mxu0 0.0
        %1288 = vmatpush1.msra.mxu0 %v1084
        %1289 = vmatprep.subr.mxu0 0.0
        %1290 = vmatpush1.msra.mxu0 %v1085
        %1291 = vmatprep.subr.mxu0 0.0
        %1292 = vmatpush1.msra.mxu0 %v1086
        %1293 = vmatprep.subr.mxu0 0.0
        %1294 = vmatpush1.msra.mxu0 %v1115
        %1295 = vmatprep.subr.mxu0 0.0
        %1296 = vmatpush1.msra.mxu0 %v1116
        %1297 = vmatprep.subr.mxu0 0.0
        %1298 = vmatpush1.msra.mxu0 %v1117
        %1299 = vmatprep.subr.mxu0 0.0
        %1300 = vmatpush1.msra.mxu0 %v1118
        %1301 = vmatprep.subr.mxu0 0.0
        %1302 = vmatpush1.msra.mxu0 %v1139
        %1303 = vmatprep.subr.mxu0 0.0
        %1304 = vmatpush1.msra.mxu0 %v1140
        %1305 = vmatprep.subr.mxu0 0.0
        %1306 = vmatpush1.msra.mxu0 %v1141
        %1307 = vmatprep.subr.mxu0 0.0
        %1308 = vmatpush1.msra.mxu0 %v1142
        %1309 = vmatprep.subr.mxu0 0.0
        %1310 = vmatpush1.msra.mxu0 %v1163
        %1311 = vmatprep.subr.mxu0 0.0
        %1312 = vmatpush1.msra.mxu0 %v1164
        %1313 = vmatprep.subr.mxu0 0.0
        %1314 = vmatpush1.msra.mxu0 %v1165
        %1315 = vmatprep.subr.mxu0 0.0
        %1316 = vmatpush1.msra.mxu0 %v1166
        %1317 = vmatprep.subr.mxu0 0.0
        %1318 = vmatpush1.msra.mxu0 %v1187
        %1319 = vmatprep.subr.mxu0 0.0
        %1320 = vmatpush1.msra.mxu0 %v1188
        %1321 = vmatprep.subr.mxu0 0.0
        %1322 = vmatpush1.msra.mxu0 %v1189
        %1323 = vmatprep.subr.mxu0 0.0
        %1324 = vmatpush1.msra.mxu0 %v1190
        %1325 = vmatprep.subr.mxu0 0.0
        %1326 = vmatpush1.msra.mxu0 %v1211
        %1327 = vmatprep.subr.mxu0 0.0
        %1328 = vmatpush1.msra.mxu0 %v1212
        %1329 = vmatprep.subr.mxu0 0.0
        %1330 = vmatpush1.msra.mxu0 %v1213
        %1331 = vmatprep.subr.mxu0 0.0
        %1332 = vmatpush1.msra.mxu0 %v1214
        %1333 = vmatprep.mubr.f32.mxu0 %v1260
        %1334 = vmatmul.mubr.f32.gmra.mrb[0].mxu0 %v1256
        %v1335 = vpop.f32.mrb[0].mxu0
        %v1336 = vadd.f32 %v1251, %v1335
        %v1337 = vpop.f32.mrb[0].mxu0
        %1338 = vdwg.mxu0
        %1339 = vmatprep.subr.mxu0 0.0
        %1340 = vmatpush1.msra.mxu0 %v1235
        %1341 = vmatprep.subr.mxu0 0.0
        %1342 = vmatpush1.msra.mxu0 %v1236
        %1343 = vmatprep.subr.mxu0 0.0
        %1344 = vmatpush1.msra.mxu0 %v1237
        %1345 = vmatprep.subr.mxu0 0.0
        %1346 = vmatpush1.msra.mxu0 %v1238
        %1347 = vmatprep.subr.mxu0 0.0
        %1348 = vmatpush1.msra.mxu0 0.0
        %1349 = vmatprep.subr.mxu0 0.0
        %1350 = vmatpush1.msra.mxu0 0.0
        %1351 = vmatprep.subr.mxu0 0.0
        %1352 = vmatpush1.msra.mxu0 0.0
        %1353 = vmatprep.subr.mxu0 0.0
        %1354 = vmatpush1.msra.mxu0 0.0
        %1355 = vmatprep.subr.mxu0 0.0
        %1356 = vmatpush1.msra.mxu0 0.0
        %1357 = vmatprep.subr.mxu0 0.0
        %1358 = vmatpush1.msra.mxu0 0.0
        %1359 = vmatprep.subr.mxu0 0.0
        %1360 = vmatpush1.msra.mxu0 0.0
        %1361 = vmatprep.subr.mxu0 0.0
        %1362 = vmatpush1.msra.mxu0 0.0
        %1363 = vmatprep.subr.mxu0 0.0
        %1364 = vmatpush1.msra.mxu0 0.0
        %1365 = vmatprep.subr.mxu0 0.0
        %1366 = vmatpush1.msra.mxu0 0.0
        %1367 = vmatprep.subr.mxu0 0.0
        %1368 = vmatpush1.msra.mxu0 0.0
        %1369 = vmatprep.subr.mxu0 0.0
        %1370 = vmatpush1.msra.mxu0 0.0
        %1371 = vmatprep.subr.mxu0 0.0
        %1372 = vmatpush1.msra.mxu0 0.0
        %1373 = vmatprep.subr.mxu0 0.0
        %1374 = vmatpush1.msra.mxu0 0.0
        %1375 = vmatprep.subr.mxu0 0.0
        %1376 = vmatpush1.msra.mxu0 0.0
        %1377 = vmatprep.subr.mxu0 0.0
        %1378 = vmatpush1.msra.mxu0 0.0
        %1379 = vmatprep.subr.mxu0 0.0
        %1380 = vmatpush1.msra.mxu0 0.0
        %1381 = vmatprep.subr.mxu0 0.0
        %1382 = vmatpush1.msra.mxu0 0.0
        %1383 = vmatprep.subr.mxu0 0.0
        %1384 = vmatpush1.msra.mxu0 0.0
        %1385 = vmatprep.subr.mxu0 0.0
        %1386 = vmatpush1.msra.mxu0 0.0
        %1387 = vmatprep.subr.mxu0 0.0
        %1388 = vmatpush1.msra.mxu0 0.0
        %1389 = vmatprep.subr.mxu0 0.0
        %1390 = vmatpush1.msra.mxu0 0.0
        %1391 = vmatprep.subr.mxu0 0.0
        %1392 = vmatpush1.msra.mxu0 0.0
        %1393 = vmatprep.subr.mxu0 0.0
        %1394 = vmatpush1.msra.mxu0 0.0
        %1395 = vmatprep.subr.mxu0 0.0
        %1396 = vmatpush1.msra.mxu0 0.0
        %1397 = vmatprep.subr.mxu0 0.0
        %1398 = vmatpush1.msra.mxu0 0.0
        %1399 = vmatprep.subr.mxu0 0.0
        %1400 = vmatpush1.msra.mxu0 0.0
        %1401 = vmatprep.subr.mxu0 0.0
        %1402 = vmatpush1.msra.mxu0 0.0
        %1403 = vmatprep.mubr.f32.mxu0 0.0
        %1404 = vmatmul.mubr.f32.gmra.mrb[0].mxu0 %v1267
        %v1405 = vpop.f32.mrb[0].mxu0
        %v1406 = vadd.f32 %v1336, %v1405
        %v1407 = vpop.f32.mrb[0].mxu0
        %1408 = vdwg.mxu0
        %v1409 = vmax.f32 %v1406, 0.0
        %1410 = vst [vmem:[%s388] sm:$0x1] %v1409
        %1411 = vrot.lane.b32.xlu0 %v1049, 124
        %v1412 = vpop.permute.xlu0 %1411
        %1413 = vrot.lane.b32.xlu0 %v1050, 124
        %v1414 = vpop.permute.xlu0 %1413
        %1415 = vrot.lane.b32.xlu0 %v1051, 124
        %v1416 = vpop.permute.xlu0 %1415
        %1417 = vrot.lane.b32.xlu0 %v1052, 124
        %v1418 = vpop.permute.xlu0 %1417
        %1419 = vrot.lane.b32.xlu0 %v1053, 124
        %v1420 = vpop.permute.xlu0 %1419
        %1421 = vrot.lane.b32.xlu0 %v1054, 124
        %v1422 = vpop.permute.xlu0 %1421
        %1423 = vrot.lane.b32.xlu0 %v1055, 124
        %v1424 = vpop.permute.xlu0 %1423
        %1425 = vrot.lane.b32.xlu0 %v1056, 124
        %v1426 = vpop.permute.xlu0 %1425
        %v1427 = vsel %vm571, %v1412, %v1414
        %v1428 = vsel %vm571, %v1416, %v1418
        %v1429 = vsel %vm571, %v1420, %v1422
        %v1430 = vsel %vm571, %v1424, %v1426
        %1435 = vmatprep.subr.mxu0 0.0
        %1436 = vmatpush1.msra.mxu0 %v1049
        %1437 = vmatprep.subr.mxu0 0.0
        %1438 = vmatpush1.msra.mxu0 %v1051
        %1439 = vmatprep.subr.mxu0 0.0
        %1440 = vmatpush1.msra.mxu0 %v1053
        %1441 = vmatprep.subr.mxu0 0.0
        %1442 = vmatpush1.msra.mxu0 %v1055
        %1443 = vmatprep.subr.mxu0 0.0
        %1444 = vmatpush1.msra.mxu0 %v1083
        %1445 = vmatprep.subr.mxu0 0.0
        %1446 = vmatpush1.msra.mxu0 %v1084
        %1447 = vmatprep.subr.mxu0 0.0
        %1448 = vmatpush1.msra.mxu0 %v1085
        %1449 = vmatprep.subr.mxu0 0.0
        %1450 = vmatpush1.msra.mxu0 %v1086
        %1451 = vmatprep.subr.mxu0 0.0
        %1452 = vmatpush1.msra.mxu0 %v1115
        %1453 = vmatprep.subr.mxu0 0.0
        %1454 = vmatpush1.msra.mxu0 %v1116
        %1455 = vmatprep.subr.mxu0 0.0
        %1456 = vmatpush1.msra.mxu0 %v1117
        %1457 = vmatprep.subr.mxu0 0.0
        %1458 = vmatpush1.msra.mxu0 %v1118
        %1459 = vmatprep.subr.mxu0 0.0
        %1460 = vmatpush1.msra.mxu0 %v1139
        %1461 = vmatprep.subr.mxu0 0.0
        %1462 = vmatpush1.msra.mxu0 %v1140
        %1463 = vmatprep.subr.mxu0 0.0
        %1464 = vmatpush1.msra.mxu0 %v1141
        %1465 = vmatprep.subr.mxu0 0.0
        %1466 = vmatpush1.msra.mxu0 %v1142
        %1467 = vmatprep.subr.mxu0 0.0
        %1468 = vmatpush1.msra.mxu0 %v1163
        %1469 = vmatprep.subr.mxu0 0.0
        %1470 = vmatpush1.msra.mxu0 %v1164
        %1471 = vmatprep.subr.mxu0 0.0
        %1472 = vmatpush1.msra.mxu0 %v1165
        %1473 = vmatprep.subr.mxu0 0.0
        %1474 = vmatpush1.msra.mxu0 %v1166
        %1475 = vmatprep.subr.mxu0 0.0
        %1476 = vmatpush1.msra.mxu0 %v1187
        %1477 = vmatprep.subr.mxu0 0.0
        %1478 = vmatpush1.msra.mxu0 %v1188
        %1479 = vmatprep.subr.mxu0 0.0
        %1480 = vmatpush1.msra.mxu0 %v1189
        %1481 = vmatprep.subr.mxu0 0.0
        %1482 = vmatpush1.msra.mxu0 %v1190
        %1483 = vmatprep.subr.mxu0 0.0
        %1484 = vmatpush1.msra.mxu0 %v1211
        %1485 = vmatprep.subr.mxu0 0.0
        %1486 = vmatpush1.msra.mxu0 %v1212
        %1487 = vmatprep.subr.mxu0 0.0
        %1488 = vmatpush1.msra.mxu0 %v1213
        %1489 = vmatprep.subr.mxu0 0.0
        %1490 = vmatpush1.msra.mxu0 %v1214
        %1491 = vmatprep.subr.mxu0 0.0
        %1492 = vmatpush1.msra.mxu0 %v1235
        %1493 = vmatprep.subr.mxu0 0.0
        %1494 = vmatpush1.msra.mxu0 %v1236
        %1495 = vmatprep.subr.mxu0 0.0
        %1496 = vmatpush1.msra.mxu0 %v1237
        %1497 = vmatprep.subr.mxu0 0.0
        %1498 = vmatpush1.msra.mxu0 %v1238
        %1499 = vmatprep.mubr.f32.mxu0 %v1260
        %1500 = vmatmul.mubr.f32.gmra.mrb[0].mxu0 %v1256
        %v1501 = vpop.f32.mrb[0].mxu0
        %v1502 = vadd.f32 %v1251, %v1501
        %v1503 = vpop.f32.mrb[0].mxu0
        %1504 = vdwg.mxu0
        %1505 = vmatprep.subr.mxu0 0.0
        %1506 = vmatpush1.msra.mxu0 %v1427
        %1507 = vmatprep.subr.mxu0 0.0
        %1508 = vmatpush1.msra.mxu0 %v1428
        %1509 = vmatprep.subr.mxu0 0.0
        %1510 = vmatpush1.msra.mxu0 %v1429
        %1511 = vmatprep.subr.mxu0 0.0
        %1512 = vmatpush1.msra.mxu0 %v1430
        %1513 = vmatprep.subr.mxu0 0.0
        %1514 = vmatpush1.msra.mxu0 0.0
        %1515 = vmatprep.subr.mxu0 0.0
        %1516 = vmatpush1.msra.mxu0 0.0
        %1517 = vmatprep.subr.mxu0 0.0
        %1518 = vmatpush1.msra.mxu0 0.0
        %1519 = vmatprep.subr.mxu0 0.0
        %1520 = vmatpush1.msra.mxu0 0.0
        %1521 = vmatprep.subr.mxu0 0.0
        %1522 = vmatpush1.msra.mxu0 0.0
        %1523 = vmatprep.subr.mxu0 0.0
        %1524 = vmatpush1.msra.mxu0 0.0
        %1525 = vmatprep.subr.mxu0 0.0
        %1526 = vmatpush1.msra.mxu0 0.0
        %1527 = vmatprep.subr.mxu0 0.0
        %1528 = vmatpush1.msra.mxu0 0.0
        %1529 = vmatprep.subr.mxu0 0.0
        %1530 = vmatpush1.msra.mxu0 0.0
        %1531 = vmatprep.subr.mxu0 0.0
        %1532 = vmatpush1.msra.mxu0 0.0
        %1533 = vmatprep.subr.mxu0 0.0
        %1534 = vmatpush1.msra.mxu0 0.0
        %1535 = vmatprep.subr.mxu0 0.0
        %1536 = vmatpush1.msra.mxu0 0.0
        %1537 = vmatprep.subr.mxu0 0.0
        %1538 = vmatpush1.msra.mxu0 0.0
        %1539 = vmatprep.subr.mxu0 0.0
        %1540 = vmatpush1.msra.mxu0 0.0
        %1541 = vmatprep.subr.mxu0 0.0
        %1542 = vmatpush1.msra.mxu0 0.0
        %1543 = vmatprep.subr.mxu0 0.0
        %1544 = vmatpush1.msra.mxu0 0.0
        %1545 = vmatprep.subr.mxu0 0.0
        %1546 = vmatpush1.msra.mxu0 0.0
        %1547 = vmatprep.subr.mxu0 0.0
        %1548 = vmatpush1.msra.mxu0 0.0
        %1549 = vmatprep.subr.mxu0 0.0
        %1550 = vmatpush1.msra.mxu0 0.0
        %1551 = vmatprep.subr.mxu0 0.0
        %1552 = vmatpush1.msra.mxu0 0.0
        %1553 = vmatprep.subr.mxu0 0.0
        %1554 = vmatpush1.msra.mxu0 0.0
        %1555 = vmatprep.subr.mxu0 0.0
        %1556 = vmatpush1.msra.mxu0 0.0
        %1557 = vmatprep.subr.mxu0 0.0
        %1558 = vmatpush1.msra.mxu0 0.0
        %1559 = vmatprep.subr.mxu0 0.0
        %1560 = vmatpush1.msra.mxu0 0.0
        %1561 = vmatprep.subr.mxu0 0.0
        %1562 = vmatpush1.msra.mxu0 0.0
        %1563 = vmatprep.subr.mxu0 0.0
        %1564 = vmatpush1.msra.mxu0 0.0
        %1565 = vmatprep.subr.mxu0 0.0
        %1566 = vmatpush1.msra.mxu0 0.0
        %1567 = vmatprep.subr.mxu0 0.0
        %1568 = vmatpush1.msra.mxu0 0.0
        %1569 = vmatprep.mubr.f32.mxu0 0.0
        %1570 = vmatmul.mubr.f32.gmra.mrb[0].mxu0 %v1267
        %v1571 = vpop.f32.mrb[0].mxu0
        %v1572 = vadd.f32 %v1502, %v1571
        %v1573 = vpop.f32.mrb[0].mxu0
        %1574 = vdwg.mxu0
        %v1575 = vmax.f32 %v1572, 0.0
        %s1576 = scalar_lea.vmem %s388, 1 [#allocation4]
        %1577 = vst [vmem:[%s1576] sm:$0x1] %v1575
        %s1578 = sand.u32 %s210, 1
        %s1579 = sand.u32 %s210, 1
        %s1580 = smul.addr %s1579, 2
        %s1581 = scalar_lea.vmem [#allocation4], %s1580
        // Predicated region
        $region87: #{audio_edsr_forward.3} parent=81 // pred_check
          %p1582 = pneg %p220
        $region88: #{audio_edsr_forward.3} parent=81 // pred_check_branch
          %1584 = sbr.rel (%p1582) target = $region90
        $region89: #{audio_edsr_forward.3} parent=81 // pred_region
          %s1585 = smul.addr %s24, 8
          %s1586 = sadd.s32 %s25, %s1585
          %s1587 = scalar_lea.vmem %s7, %s1586
          // Predicated region
          $region91: #{audio_edsr_forward.3} parent=89 // pred_check
            _
          $region92: #{audio_edsr_forward.3} parent=89 // pred_check_branch
            %1589 = sbr.rel (0) target = $region94
          $region93: #{audio_edsr_forward.3} parent=89 // pred_region
            // Predicated region
            $region95: #{audio_edsr_forward.3} parent=93 // pred_check
              _
            $region96: #{audio_edsr_forward.3} parent=93 // pred_check_branch
              %1591 = sbr.rel target = $region98
            $region97: #{audio_edsr_forward.3} parent=93 // pred_region
              // Predicated region
              $region110: #{audio_edsr_forward.3} parent=97 // pred_check
                _
              $region111: #{audio_edsr_forward.3} parent=97 // pred_check_branch
                %1608 = sbr.rel (0) target = $region113
              $region112: #{audio_edsr_forward.3} parent=97 // pred_region
                loop: start=0, step=1, limit=1
                $region114: #{audio_edsr_forward.3} parent=112 // loop_pre_header
                  _
                $region115: #{audio_edsr_forward.3} parent=112 // loop_header
                  %s1611 = sphi 0, %s1615
                  %p1612 = scmp.ge.s32.totalorder %s1611, 1
                  %s1616 = sphi %s1581, %s1581
                  %s1617 = sphi %s1587, %s1587
                $region116: #{audio_edsr_forward.3} parent=112 // loop_header_branch
                  %1614 = sbr.rel (%p1612) target = $region120
                $region117: #{audio_edsr_forward.3} parent=112 // loop_body
                  %v1618 = vld [vmem:[%s1616] sm:$0x1]
                  %1619 = vst [vmem:[%s1617] sm:$0x1] %v1618
                  %v1620 = vld [vmem:[%s1616 + $0x1] sm:$0x1]
                  %1621 = vst [vmem:[%s1617 + $0x4] sm:$0x1] %v1620
                $region118: #{audio_edsr_forward.3} parent=112 // loop_footer
                  %s1615 = sadd.s32 1, %s1611
                $region119: #{audio_edsr_forward.3} parent=112 // loop_footer_branch
                  %1610 = sbr.rel target = $region115
                $region120: #{audio_edsr_forward.3} parent=112 // loop_exit
                  _
              $region113: #{audio_edsr_forward.3} parent=97 // pred_fallthru
                _
            $region98: #{audio_edsr_forward.3} parent=93 // pred_fallthru
              _
            // Predicated region
            $region99: #{audio_edsr_forward.3} parent=93 // pred_check
              _
            $region100: #{audio_edsr_forward.3} parent=93 // pred_check_branch
              %1593 = sbr.rel (0) target = $region102
            $region101: #{audio_edsr_forward.3} parent=93 // pred_region
              loop: start=0, step=1, limit=1
              $region103: #{audio_edsr_forward.3} parent=101 // loop_pre_header
                _
              $region104: #{audio_edsr_forward.3} parent=101 // loop_header
                %s1596 = sphi 0, %s1600
                %p1597 = scmp.ge.s32.totalorder %s1596, 1
                %s1601 = sphi %s1581, %s1581
                %s1602 = sphi %s1587, %s1587
              $region105: #{audio_edsr_forward.3} parent=101 // loop_header_branch
                %1599 = sbr.rel (%p1597) target = $region109
              $region106: #{audio_edsr_forward.3} parent=101 // loop_body
                %v1603 = vld [vmem:[%s1601] sm:$0x1]
                %1604 = vst [vmem:[%s1602] sm:$0x1] %v1603
                %v1605 = vld [vmem:[%s1601 + $0x1] sm:$0x1]
                %1606 = vst [vmem:[%s1602 + $0x4] sm:$0x1] %v1605
              $region107: #{audio_edsr_forward.3} parent=101 // loop_footer
                %s1600 = sadd.s32 1, %s1596
              $region108: #{audio_edsr_forward.3} parent=101 // loop_footer_branch
                %1595 = sbr.rel target = $region104
              $region109: #{audio_edsr_forward.3} parent=101 // loop_exit
                _
            $region102: #{audio_edsr_forward.3} parent=93 // pred_fallthru
              _
          $region94: #{audio_edsr_forward.3} parent=89 // pred_fallthru
            _
          %1622 = vnop
        $region90: #{audio_edsr_forward.3} parent=81 // pred_fallthru
          _
      $region82: #{audio_edsr_forward.3} parent=5 // pred_fallthru
        _
      %p1623 = scmp.le.s32.totalorder 2, %s15
      // Predicated region
      $region121: #{audio_edsr_forward.3} parent=5 // pred_check
        %p1624 = pneg %p1623
      $region122: #{audio_edsr_forward.3} parent=5 // pred_check_branch
        %1626 = sbr.rel (%p1624) target = $region124
      $region123: #{audio_edsr_forward.3} parent=5 // pred_region
        %s1627 = ssub.s32 %s15, 2
        // Predicated region
        $region125: #{audio_edsr_forward.3} parent=123 // pred_check
          %p1628 = pneg %p226
        $region126: #{audio_edsr_forward.3} parent=123 // pred_check_branch
          %1630 = sbr.rel (%p1628) target = $region128
        $region127: #{audio_edsr_forward.3} parent=123 // pred_region
          %s1631 = sand.u32 %s211, 1
          %s1632 = sand.u32 %s211, 1
          %s1633 = smul.addr %s1632, 2
          %s1634 = scalar_lea.vmem [#allocation4], %s1633
        $region128: #{audio_edsr_forward.3} parent=123 // pred_fallthru
          _
      $region124: #{audio_edsr_forward.3} parent=5 // pred_fallthru
        _
    $region6: #{audio_edsr_forward.3} parent=1 // loop_footer
      %s19 = sadd.s32 1, %s15
    $region7: #{audio_edsr_forward.3} parent=1 // loop_footer_branch
      %14 = sbr.rel target = $region3
    $region8: #{audio_edsr_forward.3} parent=1 // loop_exit
      _

// kernel: audio_edsr_forward.2
$region0: #{audio_edsr_forward.2}
  #allocation0 [shape = 'u32[]', space=smem, size = 0x4, offset = 0x4, fixed_abs, tag = 'smem constant byte address 0x4 - core index']
  #allocation1 [shape = 'u32[144,128]{1,0:T(1,128)}', space=vmem, size = 0x12000, scoped, tag = 'internal scratch']
  %s0 = inlined_call_operand.vmem [shape: f32[2,4,1,176], index: 0, kind: input, shape index: {}]
  %s1 = inlined_call_operand.vmem [shape: f32[32,9], index: 1, kind: input, shape index: {}]
  %s2 = inlined_call_operand.vmem [shape: f32[32,1], index: 2, kind: input, shape index: {}]
  %s3 = inlined_call_operand.vmem [shape: f32[2,32,288], index: 3, kind: input, shape index: {}]
  %s4 = inlined_call_operand.vmem [shape: f32[2,32,1], index: 4, kind: input, shape index: {}]
  %s5 = inlined_call_operand.vmem [shape: f32[2,32,288], index: 5, kind: input, shape index: {}]
  %s6 = inlined_call_operand.vmem [shape: f32[2,32,1], index: 6, kind: input, shape index: {}]
  %s7 = inlined_call_operand.vmem [shape: f32[32,288], index: 7, kind: input, shape index: {}]
  %s8 = inlined_call_operand.vmem [shape: f32[32,1], index: 8, kind: input, shape index: {}]
  %s9 = inlined_call_operand.vmem [shape: f32[2,32,512], index: 9, kind: output, shape index: {}]
  %s10 = sld [smem:[#allocation0]]
  $region103: #{audio_edsr_forward.2} parent=0
    _
  %s12 = ssub.s32 1, %s10
  %s13 = scalar_select 0, %s12, %s10
  $region1: #{audio_edsr_forward.2} parent=0
    #allocation2 [shape = 'u8[32768]{0}', space=vmem, size = 0x8000, scoped, tag = 'output window, operand 0']
    loop: start=0, step=1, limit=10
    $region2: #{audio_edsr_forward.2} parent=1 // loop_pre_header
      _
    $region3: #{audio_edsr_forward.2} parent=1 // loop_header
      %s15 = sphi 0, %s19
      %p16 = scmp.ge.s32.totalorder %s15, 10
      %s22 = sphi 0, %s34
      %s23 = sphi 0, %s30
      %s24 = sphi 0, %s22
      %s25 = sphi 0, %s23
      %s26 = sphi 0, %s24
      %s27 = sphi 0, %s25
      %s39 = sphi 0, %s41
      %s42 = sphi 0, %s39
      %s43 = sphi 0, %s42
      %s59 = sphi 0, %s43
      %s63 = sphi 0, %s63
      %s65 = sphi 0, %s63
      %s66 = sphi 0, %s65
      %s80 = sphi 0, %s66
      %s84 = sphi 0, %s84
      %s86 = sphi 0, %s84
      %s87 = sphi 0, %s86
      %s101 = sphi 0, %s87
      %s105 = sphi 0, %s105
      %s107 = sphi 0, %s105
      %s108 = sphi 0, %s107
      %s122 = sphi 0, %s108
      %s126 = sphi 0, %s126
      %s128 = sphi 0, %s126
      %s129 = sphi 0, %s128
      %s143 = sphi 0, %s129
      %s147 = sphi 0, %s147
      %s149 = sphi 0, %s147
      %s150 = sphi 0, %s149
      %s164 = sphi 0, %s150
      %s168 = sphi 0, %s168
      %s170 = sphi 0, %s168
      %s171 = sphi 0, %s170
      %s185 = sphi 0, %s171
      %s189 = sphi 0, %s189
      %s191 = sphi 0, %s189
      %s192 = sphi 0, %s191
      %s206 = sphi 0, %s192
      %s210 = sphi 0, %s210
      %s212 = sphi 0, %s210
      %s213 = sphi 0, %s212
      %s227 = sphi 0, %s213
      %s235 = sphi 0, %s237
      %s238 = sphi 0, %s235
      %s239 = sphi 0, %s238
      %s255 = sphi 0, %s239
    $region4: #{audio_edsr_forward.2} parent=1 // loop_header_branch
      %18 = sbr.rel (%p16) target = $region8
    $region5: #{audio_edsr_forward.2} parent=1 // loop_body
      %s20 = ssub.s32 %s15, 1
      %s21 = ssub.s32 %s15, 2
      %s28 = sadd.s32 1, %s23
      %p29 = scmp.ge.s32.totalorder %s28, 4
      %s30 = scalar_select %p29, 0, %s28
      %s31 = sadd.s32 1, %s22
      %s32 = scalar_select %p29, %s31, %s22
      %p33 = scmp.ge.s32.totalorder %s32, 2
      %s34 = scalar_select %p33, 0, %s32
      %s35 = ssub.s32 %s22, %s34
      %s36 = ssub.s32 %s23, %s30
      %s37 = sor.u32 %s35, %s36
      %p38 = scmp.eq.s32.totalorder %s37, 0
      %s40 = sadd.s32 %s39, 1
      %s41 = scalar_select %p38, %s39, %s40
      %p44 = pneg %p38
      %p45 = scmp.eq.s32.totalorder %s15, 7
      %p46 = por %p44, %p45
      %p47 = scmp.ne.s32.totalorder %s39, %s42
      %p48 = scmp.eq.s32.totalorder %s15, 0
      %p49 = por %p47, %p48
      %p50 = scmp.ne.s32.totalorder %s39, %s42
      %p51 = scmp.eq.s32.totalorder %s20, 7
      %p52 = por %p50, %p51
      %p53 = scmp.ne.s32.totalorder %s42, %s43
      %p54 = scmp.eq.s32.totalorder %s20, 0
      %p55 = por %p53, %p54
      %p56 = scmp.ne.s32.totalorder %s42, %s43
      %p57 = scmp.eq.s32.totalorder %s21, 7
      %p58 = por %p56, %p57
      %p60 = scmp.ne.s32.totalorder %s43, %s59
      %p61 = scmp.eq.s32.totalorder %s21, 0
      %p62 = por %p60, %p61
      %s64 = sadd.s32 %s63, 1
      %p67 = scmp.eq.s32.totalorder %s15, 7
      %p68 = scmp.ne.s32.totalorder %s63, %s65
      %p69 = scmp.eq.s32.totalorder %s15, 0
      %p70 = por %p68, %p69
      %p71 = scmp.ne.s32.totalorder %s63, %s65
      %p72 = scmp.eq.s32.totalorder %s20, 7
      %p73 = por %p71, %p72
      %p74 = scmp.ne.s32.totalorder %s65, %s66
      %p75 = scmp.eq.s32.totalorder %s20, 0
      %p76 = por %p74, %p75
      %p77 = scmp.ne.s32.totalorder %s65, %s66
      %p78 = scmp.eq.s32.totalorder %s21, 7
      %p79 = por %p77, %p78
      %p81 = scmp.ne.s32.totalorder %s66, %s80
      %p82 = scmp.eq.s32.totalorder %s21, 0
      %p83 = por %p81, %p82
      %s85 = sadd.s32 %s84, 1
      %p88 = scmp.eq.s32.totalorder %s15, 7
      %p89 = scmp.ne.s32.totalorder %s84, %s86
      %p90 = scmp.eq.s32.totalorder %s15, 0
      %p91 = por %p89, %p90
      %p92 = scmp.ne.s32.totalorder %s84, %s86
      %p93 = scmp.eq.s32.totalorder %s20, 7
      %p94 = por %p92, %p93
      %p95 = scmp.ne.s32.totalorder %s86, %s87
      %p96 = scmp.eq.s32.totalorder %s20, 0
      %p97 = por %p95, %p96
      %p98 = scmp.ne.s32.totalorder %s86, %s87
      %p99 = scmp.eq.s32.totalorder %s21, 7
      %p100 = por %p98, %p99
      %p102 = scmp.ne.s32.totalorder %s87, %s101
      %p103 = scmp.eq.s32.totalorder %s21, 0
      %p104 = por %p102, %p103
      %s106 = sadd.s32 %s105, 1
      %p109 = scmp.eq.s32.totalorder %s15, 7
      %p110 = scmp.ne.s32.totalorder %s105, %s107
      %p111 = scmp.eq.s32.totalorder %s15, 0
      %p112 = por %p110, %p111
      %p113 = scmp.ne.s32.totalorder %s105, %s107
      %p114 = scmp.eq.s32.totalorder %s20, 7
      %p115 = por %p113, %p114
      %p116 = scmp.ne.s32.totalorder %s107, %s108
      %p117 = scmp.eq.s32.totalorder %s20, 0
      %p118 = por %p116, %p117
      %p119 = scmp.ne.s32.totalorder %s107, %s108
      %p120 = scmp.eq.s32.totalorder %s21, 7
      %p121 = por %p119, %p120
      %p123 = scmp.ne.s32.totalorder %s108, %s122
      %p124 = scmp.eq.s32.totalorder %s21, 0
      %p125 = por %p123, %p124
      %s127 = sadd.s32 %s126, 1
      %p130 = scmp.eq.s32.totalorder %s15, 7
      %p131 = scmp.ne.s32.totalorder %s126, %s128
      %p132 = scmp.eq.s32.totalorder %s15, 0
      %p133 = por %p131, %p132
      %p134 = scmp.ne.s32.totalorder %s126, %s128
      %p135 = scmp.eq.s32.totalorder %s20, 7
      %p136 = por %p134, %p135
      %p137 = scmp.ne.s32.totalorder %s128, %s129
      %p138 = scmp.eq.s32.totalorder %s20, 0
      %p139 = por %p137, %p138
      %p140 = scmp.ne.s32.totalorder %s128, %s129
      %p141 = scmp.eq.s32.totalorder %s21, 7
      %p142 = por %p140, %p141
      %p144 = scmp.ne.s32.totalorder %s129, %s143
      %p145 = scmp.eq.s32.totalorder %s21, 0
      %p146 = por %p144, %p145
      %s148 = sadd.s32 %s147, 1
      %p151 = scmp.eq.s32.totalorder %s15, 7
      %p152 = scmp.ne.s32.totalorder %s147, %s149
      %p153 = scmp.eq.s32.totalorder %s15, 0
      %p154 = por %p152, %p153
      %p155 = scmp.ne.s32.totalorder %s147, %s149
      %p156 = scmp.eq.s32.totalorder %s20, 7
      %p157 = por %p155, %p156
      %p158 = scmp.ne.s32.totalorder %s149, %s150
      %p159 = scmp.eq.s32.totalorder %s20, 0
      %p160 = por %p158, %p159
      %p161 = scmp.ne.s32.totalorder %s149, %s150
      %p162 = scmp.eq.s32.totalorder %s21, 7
      %p163 = por %p161, %p162
      %p165 = scmp.ne.s32.totalorder %s150, %s164
      %p166 = scmp.eq.s32.totalorder %s21, 0
      %p167 = por %p165, %p166
      %s169 = sadd.s32 %s168, 1
      %p172 = scmp.eq.s32.totalorder %s15, 7
      %p173 = scmp.ne.s32.totalorder %s168, %s170
      %p174 = scmp.eq.s32.totalorder %s15, 0
      %p175 = por %p173, %p174
      %p176 = scmp.ne.s32.totalorder %s168, %s170
      %p177 = scmp.eq.s32.totalorder %s20, 7
      %p178 = por %p176, %p177
      %p179 = scmp.ne.s32.totalorder %s170, %s171
      %p180 = scmp.eq.s32.totalorder %s20, 0
      %p181 = por %p179, %p180
      %p182 = scmp.ne.s32.totalorder %s170, %s171
      %p183 = scmp.eq.s32.totalorder %s21, 7
      %p184 = por %p182, %p183
      %p186 = scmp.ne.s32.totalorder %s171, %s185
      %p187 = scmp.eq.s32.totalorder %s21, 0
      %p188 = por %p186, %p187
      %s190 = sadd.s32 %s189, 1
      %p193 = scmp.eq.s32.totalorder %s15, 7
      %p194 = scmp.ne.s32.totalorder %s189, %s191
      %p195 = scmp.eq.s32.totalorder %s15, 0
      %p196 = por %p194, %p195
      %p197 = scmp.ne.s32.totalorder %s189, %s191
      %p198 = scmp.eq.s32.totalorder %s20, 7
      %p199 = por %p197, %p198
      %p200 = scmp.ne.s32.totalorder %s191, %s192
      %p201 = scmp.eq.s32.totalorder %s20, 0
      %p202 = por %p200, %p201
      %p203 = scmp.ne.s32.totalorder %s191, %s192
      %p204 = scmp.eq.s32.totalorder %s21, 7
      %p205 = por %p203, %p204
      %p207 = scmp.ne.s32.totalorder %s192, %s206
      %p208 = scmp.eq.s32.totalorder %s21, 0
      %p209 = por %p207, %p208
      %s211 = sadd.s32 %s210, 1
      %p214 = scmp.eq.s32.totalorder %s15, 7
      %p215 = scmp.ne.s32.totalorder %s210, %s212
      %p216 = scmp.eq.s32.totalorder %s15, 0
      %p217 = por %p215, %p216
      %p218 = scmp.ne.s32.totalorder %s210, %s212
      %p219 = scmp.eq.s32.totalorder %s20, 7
      %p220 = por %p218, %p219
      %p221 = scmp.ne.s32.totalorder %s212, %s213
      %p222 = scmp.eq.s32.totalorder %s20, 0
      %p223 = por %p221, %p222
      %p224 = scmp.ne.s32.totalorder %s212, %s213
      %p225 = scmp.eq.s32.totalorder %s21, 7
      %p226 = por %p224, %p225
      %p228 = scmp.ne.s32.totalorder %s213, %s227
      %p229 = scmp.eq.s32.totalorder %s21, 0
      %p230 = por %p228, %p229
      %s231 = ssub.s32 %s22, %s34
      %s232 = ssub.s32 %s23, %s30
      %s233 = sor.u32 %s231, %s232
      %p234 = scmp.eq.s32.totalorder %s233, 0
      %s236 = sadd.s32 %s235, 1
      %s237 = scalar_select %p234, %s235, %s236
      %p240 = pneg %p234
      %p241 = scmp.eq.s32.totalorder %s15, 7
      %p242 = por %p240, %p241
      %p243 = scmp.ne.s32.totalorder %s235, %s238
      %p244 = scmp.eq.s32.totalorder %s15, 0
      %p245 = por %p243, %p244
      %p246 = scmp.ne.s32.totalorder %s235, %s238
      %p247 = scmp.eq.s32.totalorder %s20, 7
      %p248 = por %p246, %p247
      %p249 = scmp.ne.s32.totalorder %s238, %s239
      %p250 = scmp.eq.s32.totalorder %s20, 0
      %p251 = por %p249, %p250
      %p252 = scmp.ne.s32.totalorder %s238, %s239
      %p253 = scmp.eq.s32.totalorder %s21, 7
      %p254 = por %p252, %p253
      %p256 = scmp.ne.s32.totalorder %s239, %s255
      %p257 = scmp.eq.s32.totalorder %s21, 0
      %p258 = por %p256, %p257
      %p259 = scmp.le.s32.totalorder 1, %s15
      %p260 = scmp.lt.s32.totalorder %s15, 9
      %p261 = pnand %p259, %p260
      %p262 = pneg %p261
      // Predicated region
      $region9: #{audio_edsr_forward.2} parent=5 // pred_check
        _
      $region10: #{audio_edsr_forward.2} parent=5 // pred_check_branch
        %264 = sbr.rel (%p261) target = $region12
      $region11: #{audio_edsr_forward.2} parent=5 // pred_region
        %s265 = ssub.s32 %s15, 1
        // Predicated region
        $region13: #{audio_edsr_forward.2} parent=11 // pred_check
          %p266 = pneg %p76
        $region14: #{audio_edsr_forward.2} parent=11 // pred_check_branch
          %268 = sbr.rel (%p266) target = $region16
        $region15: #{audio_edsr_forward.2} parent=11 // pred_region
          _
        $region16: #{audio_edsr_forward.2} parent=11 // pred_fallthru
          _
        // Predicated region
        $region17: #{audio_edsr_forward.2} parent=11 // pred_check
          %p269 = pneg %p97
        $region18: #{audio_edsr_forward.2} parent=11 // pred_check_branch
          %271 = sbr.rel (%p269) target = $region20
        $region19: #{audio_edsr_forward.2} parent=11 // pred_region
          _
        $region20: #{audio_edsr_forward.2} parent=11 // pred_fallthru
          _
        // Predicated region
        $region21: #{audio_edsr_forward.2} parent=11 // pred_check
          %p272 = pneg %p118
        $region22: #{audio_edsr_forward.2} parent=11 // pred_check_branch
          %274 = sbr.rel (%p272) target = $region24
        $region23: #{audio_edsr_forward.2} parent=11 // pred_region
          _
        $region24: #{audio_edsr_forward.2} parent=11 // pred_fallthru
          _
        // Predicated region
        $region25: #{audio_edsr_forward.2} parent=11 // pred_check
          %p275 = pneg %p139
        $region26: #{audio_edsr_forward.2} parent=11 // pred_check_branch
          %277 = sbr.rel (%p275) target = $region28
        $region27: #{audio_edsr_forward.2} parent=11 // pred_region
          _
        $region28: #{audio_edsr_forward.2} parent=11 // pred_fallthru
          _
        // Predicated region
        $region29: #{audio_edsr_forward.2} parent=11 // pred_check
          %p278 = pneg %p160
        $region30: #{audio_edsr_forward.2} parent=11 // pred_check_branch
          %280 = sbr.rel (%p278) target = $region32
        $region31: #{audio_edsr_forward.2} parent=11 // pred_region
          _
        $region32: #{audio_edsr_forward.2} parent=11 // pred_fallthru
          _
        // Predicated region
        $region33: #{audio_edsr_forward.2} parent=11 // pred_check
          %p281 = pneg %p181
        $region34: #{audio_edsr_forward.2} parent=11 // pred_check_branch
          %283 = sbr.rel (%p281) target = $region36
        $region35: #{audio_edsr_forward.2} parent=11 // pred_region
          _
        $region36: #{audio_edsr_forward.2} parent=11 // pred_fallthru
          _
        // Predicated region
        $region37: #{audio_edsr_forward.2} parent=11 // pred_check
          %p284 = pneg %p202
        $region38: #{audio_edsr_forward.2} parent=11 // pred_check_branch
          %286 = sbr.rel (%p284) target = $region40
        $region39: #{audio_edsr_forward.2} parent=11 // pred_region
          _
        $region40: #{audio_edsr_forward.2} parent=11 // pred_fallthru
          _
        // Predicated region
        $region41: #{audio_edsr_forward.2} parent=11 // pred_check
          %p287 = pneg %p223
        $region42: #{audio_edsr_forward.2} parent=11 // pred_check_branch
          %289 = sbr.rel (%p287) target = $region44
        $region43: #{audio_edsr_forward.2} parent=11 // pred_region
          _
        $region44: #{audio_edsr_forward.2} parent=11 // pred_fallthru
          _
      $region12: #{audio_edsr_forward.2} parent=5 // pred_fallthru
        _
      %p290 = scmp.lt.s32.totalorder %s15, 8
      // Predicated region
      $region45: #{audio_edsr_forward.2} parent=5 // pred_check
        %p291 = pneg %p290
      $region46: #{audio_edsr_forward.2} parent=5 // pred_check_branch
        %293 = sbr.rel (%p291) target = $region48
      $region47: #{audio_edsr_forward.2} parent=5 // pred_region
        // Predicated region
        $region49: #{audio_edsr_forward.2} parent=47 // pred_check
          %p294 = pneg %p49
        $region50: #{audio_edsr_forward.2} parent=47 // pred_check_branch
          %296 = sbr.rel (%p294) target = $region52
        $region51: #{audio_edsr_forward.2} parent=47 // pred_region
          %p297 = scmp.lt.s32.totalorder %s22, 1
          %s298 = scalar_select %p297, %s22, 1
          %p299 = scmp.lt.s32.totalorder %s23, 3
          %s300 = scalar_select %p299, %s23, 3
          %s301 = smul.addr %s300, 2
          %s302 = smul.addr %s298, 8
          %s303 = sadd.s32 %s301, %s302
          %s304 = scalar_lea.vmem %s0, %s303
        $region52: #{audio_edsr_forward.2} parent=47 // pred_fallthru
          _
      $region48: #{audio_edsr_forward.2} parent=5 // pred_fallthru
        _
      %p305 = scmp.le.s32.totalorder 1, %s15
      %p306 = scmp.lt.s32.totalorder %s15, 9
      %p307 = pnand %p305, %p306
      %p308 = pneg %p307
      // Predicated region
      $region53: #{audio_edsr_forward.2} parent=5 // pred_check
        _
      $region54: #{audio_edsr_forward.2} parent=5 // pred_check_branch
        %310 = sbr.rel (%p307) target = $region56
      $region55: #{audio_edsr_forward.2} parent=5 // pred_region
        %s311 = ssub.s32 %s15, 1
        %p312 = scmp.lt.s32.totalorder %s24, 1
        %s313 = scalar_select %p312, %s24, 1
        %p314 = scmp.lt.s32.totalorder %s25, 3
        %s315 = scalar_select %p314, %s25, 3
        %s316 = smul.addr %s315, 2
        %s317 = smul.addr %s313, 8
        %s318 = sadd.s32 %s316, %s317
        %s319 = scalar_lea.vmem %s0, %s318
        %p320 = pneg %p55
        %p321 = pneg %p52
        %p322 = pneg %p76
        %p323 = pneg %p73
        %p324 = pneg %p97
        %p325 = pneg %p94
        %p326 = pneg %p118
        %p327 = pneg %p115
        %p328 = pneg %p139
        %p329 = pneg %p136
        %p330 = pneg %p160
        %p331 = pneg %p157
        %p332 = pneg %p181
        %p333 = pneg %p178
        %p334 = pneg %p202
        %p335 = pneg %p199
        %p336 = pneg %p223
        %p337 = pneg %p220
        %p338 = pneg %p251
        %p339 = pneg %p248
        %s340 = sand.u32 %s238, 1
        %s341 = sand.u32 %s238, 1
        %s342 = smul.addr %s341, 32
        %s343 = scalar_lea.vmem [#allocation2], %s342
        %p344 = scmp.lt.s32.totalorder %s24, 1
        %s345 = scalar_select %p344, %s24, 1
        %p346 = scmp.lt.s32.totalorder %s25, 3
        %s347 = scalar_select %p346, %s25, 3
        %s348 = smul.addr %s347, 2
        %s349 = smul.addr %s345, 8
        %s350 = sadd.s32 %s348, %s349
        %s351 = scalar_lea.vmem %s0, %s350
        %v352 = vld [vmem:[%s351] sm:$0x3]
        %v353 = vld [vmem:[%s1] sm:$0xff]
        %v354 = vld [vmem:[%s1 + $0x8] sm:$0xff]
        %v355 = vld [vmem:[%s1 + $0x10] sm:$0xff]
        %v356 = vld [vmem:[%s1 + $0x18] sm:$0xff]
        %v357 = vld [vmem:[%s2] sm:$0xff]
        %v358 = vld [vmem:[%s2 + $0x8] sm:$0xff]
        %v359 = vld [vmem:[%s2 + $0x10] sm:$0xff]
        %v360 = vld [vmem:[%s2 + $0x18] sm:$0xff]
        %362 = vset.pattern.permute.xlu0 0
        %363 = vperm.xlu0 %362, %v353
        %v364 = vpop.permute.xlu0 %363
        %367 = vset.pattern.permute.xlu0 0
        %368 = vperm.xlu0 %367, %v354
        %v369 = vpop.permute.xlu0 %368
        %372 = vset.pattern.permute.xlu0 0
        %373 = vperm.xlu0 %372, %v355
        %v374 = vpop.permute.xlu0 %373
        %377 = vset.pattern.permute.xlu0 0
        %378 = vperm.xlu0 %377, %v356
        %v379 = vpop.permute.xlu0 %378
        %v382 = vlaneseq
        %v383 = vshrl.u32 %v382, 7
        %v384 = vsub.s32 0, %v383
        %v385 = vrot.slane %v352, %v384
        %v386 = vlaneseq
        %v387 = vshrl.u32 %v386, 7
        %v388 = vsub.s32 1, %v387
        %v389 = vrot.slane %v352, %v388
        %v392 = vmul.f32 %v364, %v385
        %v393 = vmul.f32 %v364, %v389
        %v394 = vmul.f32 %v369, %v385
        %v395 = vmul.f32 %v369, %v389
        %v396 = vmul.f32 %v374, %v385
        %v397 = vmul.f32 %v374, %v389
        %v398 = vmul.f32 %v379, %v385
        %v399 = vmul.f32 %v379, %v389
        %v400 = vadd.f32 %v392, 0.0
        %v401 = vadd.f32 %v393, 0.0
        %v402 = vadd.f32 %v394, 0.0
        %v403 = vadd.f32 %v395, 0.0
        %v404 = vadd.f32 %v396, 0.0
        %v405 = vadd.f32 %v397, 0.0
        %v406 = vadd.f32 %v398, 0.0
        %v407 = vadd.f32 %v399, 0.0
        %408 = vset.pattern.permute.xlu0 1
        %409 = vperm.xlu0 %408, %v353
        %v410 = vpop.permute.xlu0 %409
        %412 = vset.pattern.permute.xlu0 1
        %413 = vperm.xlu0 %412, %v354
        %v414 = vpop.permute.xlu0 %413
        %416 = vset.pattern.permute.xlu0 1
        %417 = vperm.xlu0 %416, %v355
        %v418 = vpop.permute.xlu0 %417
        %420 = vset.pattern.permute.xlu0 1
        %421 = vperm.xlu0 %420, %v356
        %v422 = vpop.permute.xlu0 %421
        %v424 = vmul.f32 %v410, %v385
        %v425 = vmul.f32 %v410, %v389
        %v426 = vmul.f32 %v414, %v385
        %v427 = vmul.f32 %v414, %v389
        %v428 = vmul.f32 %v418, %v385
        %v429 = vmul.f32 %v418, %v389
        %v430 = vmul.f32 %v422, %v385
        %v431 = vmul.f32 %v422, %v389
        %440 = vrot.lane.b32.xlu0 %v424, 127
        %v441 = vpop.permute.xlu0 %440
        %442 = vrot.lane.b32.xlu0 %v425, 127
        %v443 = vpop.permute.xlu0 %442
        %444 = vrot.lane.b32.xlu0 %v426, 127
        %v445 = vpop.permute.xlu0 %444
        %446 = vrot.lane.b32.xlu0 %v427, 127
        %v447 = vpop.permute.xlu0 %446
        %448 = vrot.lane.b32.xlu0 %v428, 127
        %v449 = vpop.permute.xlu0 %448
        %450 = vrot.lane.b32.xlu0 %v429, 127
        %v451 = vpop.permute.xlu0 %450
        %452 = vrot.lane.b32.xlu0 %v430, 127
        %v453 = vpop.permute.xlu0 %452
        %454 = vrot.lane.b32.xlu0 %v431, 127
        %v455 = vpop.permute.xlu0 %454
        %vm456 = vcmask 1039360
        %v457 = vsel %vm456, %v441, %v443
        %v458 = vsel %vm456, %v445, %v447
        %v459 = vsel %vm456, %v449, %v451
        %v460 = vsel %vm456, %v453, %v455
        %v469 = vadd.f32 %v400, %v457
        %v470 = vadd.f32 %v401, %v443
        %v471 = vadd.f32 %v402, %v458
        %v472 = vadd.f32 %v403, %v447
        %v473 = vadd.f32 %v404, %v459
        %v474 = vadd.f32 %v405, %v451
        %v475 = vadd.f32 %v406, %v460
        %v476 = vadd.f32 %v407, %v455
        %477 = vset.pattern.permute.xlu0 2
        %478 = vperm.xlu0 %477, %v353
        %v479 = vpop.permute.xlu0 %478
        %481 = vset.pattern.permute.xlu0 2
        %482 = vperm.xlu0 %481, %v354
        %v483 = vpop.permute.xlu0 %482
        %485 = vset.pattern.permute.xlu0 2
        %486 = vperm.xlu0 %485, %v355
        %v487 = vpop.permute.xlu0 %486
        %489 = vset.pattern.permute.xlu0 2
        %490 = vperm.xlu0 %489, %v356
        %v491 = vpop.permute.xlu0 %490
        %v493 = vmul.f32 %v479, %v385
        %v494 = vmul.f32 %v479, %v389
        %v495 = vmul.f32 %v483, %v385
        %v496 = vmul.f32 %v483, %v389
        %v497 = vmul.f32 %v487, %v385
        %v498 = vmul.f32 %v487, %v389
        %v499 = vmul.f32 %v491, %v385
        %v500 = vmul.f32 %v491, %v389
        %509 = vrot.lane.b32.xlu0 %v493, 126
        %v510 = vpop.permute.xlu0 %509
        %511 = vrot.lane.b32.xlu0 %v494, 126
        %v512 = vpop.permute.xlu0 %511
        %513 = vrot.lane.b32.xlu0 %v495, 126
        %v514 = vpop.permute.xlu0 %513
        %515 = vrot.lane.b32.xlu0 %v496, 126
        %v516 = vpop.permute.xlu0 %515
        %517 = vrot.lane.b32.xlu0 %v497, 126
        %v518 = vpop.permute.xlu0 %517
        %519 = vrot.lane.b32.xlu0 %v498, 126
        %v520 = vpop.permute.xlu0 %519
        %521 = vrot.lane.b32.xlu0 %v499, 126
        %v522 = vpop.permute.xlu0 %521
        %523 = vrot.lane.b32.xlu0 %v500, 126
        %v524 = vpop.permute.xlu0 %523
        %vm525 = vcmask 1031168
        %v526 = vsel %vm525, %v510, %v512
        %v527 = vsel %vm525, %v514, %v516
        %v528 = vsel %vm525, %v518, %v520
        %v529 = vsel %vm525, %v522, %v524
        %v538 = vadd.f32 %v469, %v526
        %v539 = vadd.f32 %v470, %v512
        %v540 = vadd.f32 %v471, %v527
        %v541 = vadd.f32 %v472, %v516
        %v542 = vadd.f32 %v473, %v528
        %v543 = vadd.f32 %v474, %v520
        %v544 = vadd.f32 %v475, %v529
        %v545 = vadd.f32 %v476, %v524
        %546 = vset.pattern.permute.xlu0 3
        %547 = vperm.xlu0 %546, %v353
        %v548 = vpop.permute.xlu0 %547
        %550 = vset.pattern.permute.xlu0 3
        %551 = vperm.xlu0 %550, %v354
        %v552 = vpop.permute.xlu0 %551
        %554 = vset.pattern.permute.xlu0 3
        %555 = vperm.xlu0 %554, %v355
        %v556 = vpop.permute.xlu0 %555
        %558 = vset.pattern.permute.xlu0 3
        %559 = vperm.xlu0 %558, %v356
        %v560 = vpop.permute.xlu0 %559
        %v562 = vmul.f32 %v548, %v385
        %v563 = vmul.f32 %v548, %v389
        %v564 = vmul.f32 %v552, %v385
        %v565 = vmul.f32 %v552, %v389
        %v566 = vmul.f32 %v556, %v385
        %v567 = vmul.f32 %v556, %v389
        %v568 = vmul.f32 %v560, %v385
        %v569 = vmul.f32 %v560, %v389
        %578 = vrot.lane.b32.xlu0 %v562, 125
        %v579 = vpop.permute.xlu0 %578
        %580 = vrot.lane.b32.xlu0 %v563, 125
        %v581 = vpop.permute.xlu0 %580
        %582 = vrot.lane.b32.xlu0 %v564, 125
        %v583 = vpop.permute.xlu0 %582
        %584 = vrot.lane.b32.xlu0 %v565, 125
        %v585 = vpop.permute.xlu0 %584
        %586 = vrot.lane.b32.xlu0 %v566, 125
        %v587 = vpop.permute.xlu0 %586
        %588 = vrot.lane.b32.xlu0 %v567, 125
        %v589 = vpop.permute.xlu0 %588
        %590 = vrot.lane.b32.xlu0 %v568, 125
        %v591 = vpop.permute.xlu0 %590
        %592 = vrot.lane.b32.xlu0 %v569, 125
        %v593 = vpop.permute.xlu0 %592
        %vm594 = vcmask 1022976
        %v595 = vsel %vm594, %v579, %v581
        %v596 = vsel %vm594, %v583, %v585
        %v597 = vsel %vm594, %v587, %v589
        %v598 = vsel %vm594, %v591, %v593
        %v607 = vadd.f32 %v538, %v595
        %v608 = vadd.f32 %v539, %v581
        %v609 = vadd.f32 %v540, %v596
        %v610 = vadd.f32 %v541, %v585
        %v611 = vadd.f32 %v542, %v597
        %v612 = vadd.f32 %v543, %v589
        %v613 = vadd.f32 %v544, %v598
        %v614 = vadd.f32 %v545, %v593
        %615 = vset.pattern.permute.xlu0 4
        %616 = vperm.xlu0 %615, %v353
        %v617 = vpop.permute.xlu0 %616
        %619 = vset.pattern.permute.xlu0 4
        %620 = vperm.xlu0 %619, %v354
        %v621 = vpop.permute.xlu0 %620
        %623 = vset.pattern.permute.xlu0 4
        %624 = vperm.xlu0 %623, %v355
        %v625 = vpop.permute.xlu0 %624
        %627 = vset.pattern.permute.xlu0 4
        %628 = vperm.xlu0 %627, %v356
        %v629 = vpop.permute.xlu0 %628
        %v631 = vmul.f32 %v617, %v385
        %v632 = vmul.f32 %v617, %v389
        %v633 = vmul.f32 %v621, %v385
        %v634 = vmul.f32 %v621, %v389
        %v635 = vmul.f32 %v625, %v385
        %v636 = vmul.f32 %v625, %v389
        %v637 = vmul.f32 %v629, %v385
        %v638 = vmul.f32 %v629, %v389
        %647 = vrot.lane.b32.xlu0 %v631, 124
        %v648 = vpop.permute.xlu0 %647
        %649 = vrot.lane.b32.xlu0 %v632, 124
        %v650 = vpop.permute.xlu0 %649
        %651 = vrot.lane.b32.xlu0 %v633, 124
        %v652 = vpop.permute.xlu0 %651
        %653 = vrot.lane.b32.xlu0 %v634, 124
        %v654 = vpop.permute.xlu0 %653
        %655 = vrot.lane.b32.xlu0 %v635, 124
        %v656 = vpop.permute.xlu0 %655
        %657 = vrot.lane.b32.xlu0 %v636, 124
        %v658 = vpop.permute.xlu0 %657
        %659 = vrot.lane.b32.xlu0 %v637, 124
        %v660 = vpop.permute.xlu0 %659
        %661 = vrot.lane.b32.xlu0 %v638, 124
        %v662 = vpop.permute.xlu0 %661
        %vm663 = vcmask 1014784
        %v664 = vsel %vm663, %v648, %v650
        %v665 = vsel %vm663, %v652, %v654
        %v666 = vsel %vm663, %v656, %v658
        %v667 = vsel %vm663, %v660, %v662
        %v676 = vadd.f32 %v607, %v664
        %v677 = vadd.f32 %v608, %v650
        %v678 = vadd.f32 %v609, %v665
        %v679 = vadd.f32 %v610, %v654
        %v680 = vadd.f32 %v611, %v666
        %v681 = vadd.f32 %v612, %v658
        %v682 = vadd.f32 %v613, %v667
        %v683 = vadd.f32 %v614, %v662
        %684 = vset.pattern.permute.xlu0 5
        %685 = vperm.xlu0 %684, %v353
        %v686 = vpop.permute.xlu0 %685
        %688 = vset.pattern.permute.xlu0 5
        %689 = vperm.xlu0 %688, %v354
        %v690 = vpop.permute.xlu0 %689
        %692 = vset.pattern.permute.xlu0 5
        %693 = vperm.xlu0 %692, %v355
        %v694 = vpop.permute.xlu0 %693
        %696 = vset.pattern.permute.xlu0 5
        %697 = vperm.xlu0 %696, %v356
        %v698 = vpop.permute.xlu0 %697
        %v700 = vmul.f32 %v686, %v385
        %v701 = vmul.f32 %v686, %v389
        %v702 = vmul.f32 %v690, %v385
        %v703 = vmul.f32 %v690, %v389
        %v704 = vmul.f32 %v694, %v385
        %v705 = vmul.f32 %v694, %v389
        %v706 = vmul.f32 %v698, %v385
        %v707 = vmul.f32 %v698, %v389
        %716 = vrot.lane.b32.xlu0 %v700, 123
        %v717 = vpop.permute.xlu0 %716
        %718 = vrot.lane.b32.xlu0 %v701, 123
        %v719 = vpop.permute.xlu0 %718
        %720 = vrot.lane.b32.xlu0 %v702, 123
        %v721 = vpop.permute.xlu0 %720
        %722 = vrot.lane.b32.xlu0 %v703, 123
        %v723 = vpop.permute.xlu0 %722
        %724 = vrot.lane.b32.xlu0 %v704, 123
        %v725 = vpop.permute.xlu0 %724
        %726 = vrot.lane.b32.xlu0 %v705, 123
        %v727 = vpop.permute.xlu0 %726
        %728 = vrot.lane.b32.xlu0 %v706, 123
        %v729 = vpop.permute.xlu0 %728
        %730 = vrot.lane.b32.xlu0 %v707, 123
        %v731 = vpop.permute.xlu0 %730
        %vm732 = vcmask 1006592
        %v733 = vsel %vm732, %v717, %v719
        %v734 = vsel %vm732, %v721, %v723
        %v735 = vsel %vm732, %v725, %v727
        %v736 = vsel %vm732, %v729, %v731
        %v745 = vadd.f32 %v676, %v733
        %v746 = vadd.f32 %v677, %v719
        %v747 = vadd.f32 %v678, %v734
        %v748 = vadd.f32 %v679, %v723
        %v749 = vadd.f32 %v680, %v735
        %v750 = vadd.f32 %v681, %v727
        %v751 = vadd.f32 %v682, %v736
        %v752 = vadd.f32 %v683, %v731
        %753 = vset.pattern.permute.xlu0 6
        %754 = vperm.xlu0 %753, %v353
        %v755 = vpop.permute.xlu0 %754
        %757 = vset.pattern.permute.xlu0 6
        %758 = vperm.xlu0 %757, %v354
        %v759 = vpop.permute.xlu0 %758
        %761 = vset.pattern.permute.xlu0 6
        %762 = vperm.xlu0 %761, %v355
        %v763 = vpop.permute.xlu0 %762
        %765 = vset.pattern.permute.xlu0 6
        %766 = vperm.xlu0 %765, %v356
        %v767 = vpop.permute.xlu0 %766
        %v769 = vmul.f32 %v755, %v385
        %v770 = vmul.f32 %v755, %v389
        %v771 = vmul.f32 %v759, %v385
        %v772 = vmul.f32 %v759, %v389
        %v773 = vmul.f32 %v763, %v385
        %v774 = vmul.f32 %v763, %v389
        %v775 = vmul.f32 %v767, %v385
        %v776 = vmul.f32 %v767, %v389
        %785 = vrot.lane.b32.xlu0 %v769, 122
        %v786 = vpop.permute.xlu0 %785
        %787 = vrot.lane.b32.xlu0 %v770, 122
        %v788 = vpop.permute.xlu0 %787
        %789 = vrot.lane.b32.xlu0 %v771, 122
        %v790 = vpop.permute.xlu0 %789
        %791 = vrot.lane.b32.xlu0 %v772, 122
        %v792 = vpop.permute.xlu0 %791
        %793 = vrot.lane.b32.xlu0 %v773, 122
        %v794 = vpop.permute.xlu0 %793
        %795 = vrot.lane.b32.xlu0 %v774, 122
        %v796 = vpop.permute.xlu0 %795
        %797 = vrot.lane.b32.xlu0 %v775, 122
        %v798 = vpop.permute.xlu0 %797
        %799 = vrot.lane.b32.xlu0 %v776, 122
        %v800 = vpop.permute.xlu0 %799
        %vm801 = vcmask 998400
        %v802 = vsel %vm801, %v786, %v788
        %v803 = vsel %vm801, %v790, %v792
        %v804 = vsel %vm801, %v794, %v796
        %v805 = vsel %vm801, %v798, %v800
        %v814 = vadd.f32 %v745, %v802
        %v815 = vadd.f32 %v746, %v788
        %v816 = vadd.f32 %v747, %v803
        %v817 = vadd.f32 %v748, %v792
        %v818 = vadd.f32 %v749, %v804
        %v819 = vadd.f32 %v750, %v796
        %v820 = vadd.f32 %v751, %v805
        %v821 = vadd.f32 %v752, %v800
        %822 = vset.pattern.permute.xlu0 7
        %823 = vperm.xlu0 %822, %v353
        %v824 = vpop.permute.xlu0 %823
        %826 = vset.pattern.permute.xlu0 7
        %827 = vperm.xlu0 %826, %v354
        %v828 = vpop.permute.xlu0 %827
        %830 = vset.pattern.permute.xlu0 7
        %831 = vperm.xlu0 %830, %v355
        %v832 = vpop.permute.xlu0 %831
        %834 = vset.pattern.permute.xlu0 7
        %835 = vperm.xlu0 %834, %v356
        %v836 = vpop.permute.xlu0 %835
        %v838 = vmul.f32 %v824, %v385
        %v839 = vmul.f32 %v824, %v389
        %v840 = vmul.f32 %v828, %v385
        %v841 = vmul.f32 %v828, %v389
        %v842 = vmul.f32 %v832, %v385
        %v843 = vmul.f32 %v832, %v389
        %v844 = vmul.f32 %v836, %v385
        %v845 = vmul.f32 %v836, %v389
        %854 = vrot.lane.b32.xlu0 %v838, 121
        %v855 = vpop.permute.xlu0 %854
        %856 = vrot.lane.b32.xlu0 %v839, 121
        %v857 = vpop.permute.xlu0 %856
        %858 = vrot.lane.b32.xlu0 %v840, 121
        %v859 = vpop.permute.xlu0 %858
        %860 = vrot.lane.b32.xlu0 %v841, 121
        %v861 = vpop.permute.xlu0 %860
        %862 = vrot.lane.b32.xlu0 %v842, 121
        %v863 = vpop.permute.xlu0 %862
        %864 = vrot.lane.b32.xlu0 %v843, 121
        %v865 = vpop.permute.xlu0 %864
        %866 = vrot.lane.b32.xlu0 %v844, 121
        %v867 = vpop.permute.xlu0 %866
        %868 = vrot.lane.b32.xlu0 %v845, 121
        %v869 = vpop.permute.xlu0 %868
        %vm870 = vcmask 990208
        %v871 = vsel %vm870, %v855, %v857
        %v872 = vsel %vm870, %v859, %v861
        %v873 = vsel %vm870, %v863, %v865
        %v874 = vsel %vm870, %v867, %v869
        %v883 = vadd.f32 %v814, %v871
        %v884 = vadd.f32 %v815, %v857
        %v885 = vadd.f32 %v816, %v872
        %v886 = vadd.f32 %v817, %v861
        %v887 = vadd.f32 %v818, %v873
        %v888 = vadd.f32 %v819, %v865
        %v889 = vadd.f32 %v820, %v874
        %v890 = vadd.f32 %v821, %v869
        %891 = vset.pattern.permute.xlu0 8
        %892 = vperm.xlu0 %891, %v353
        %v893 = vpop.permute.xlu0 %892
        %895 = vset.pattern.permute.xlu0 8
        %896 = vperm.xlu0 %895, %v354
        %v897 = vpop.permute.xlu0 %896
        %899 = vset.pattern.permute.xlu0 8
        %900 = vperm.xlu0 %899, %v355
        %v901 = vpop.permute.xlu0 %900
        %903 = vset.pattern.permute.xlu0 8
        %904 = vperm.xlu0 %903, %v356
        %v905 = vpop.permute.xlu0 %904
        %v907 = vmul.f32 %v893, %v385
        %v908 = vmul.f32 %v893, %v389
        %v909 = vmul.f32 %v897, %v385
        %v910 = vmul.f32 %v897, %v389
        %v911 = vmul.f32 %v901, %v385
        %v912 = vmul.f32 %v901, %v389
        %v913 = vmul.f32 %v905, %v385
        %v914 = vmul.f32 %v905, %v389
        %923 = vrot.lane.b32.xlu0 %v907, 120
        %v924 = vpop.permute.xlu0 %923
        %925 = vrot.lane.b32.xlu0 %v908, 120
        %v926 = vpop.permute.xlu0 %925
        %927 = vrot.lane.b32.xlu0 %v909, 120
        %v928 = vpop.permute.xlu0 %927
        %929 = vrot.lane.b32.xlu0 %v910, 120
        %v930 = vpop.permute.xlu0 %929
        %931 = vrot.lane.b32.xlu0 %v911, 120
        %v932 = vpop.permute.xlu0 %931
        %933 = vrot.lane.b32.xlu0 %v912, 120
        %v934 = vpop.permute.xlu0 %933
        %935 = vrot.lane.b32.xlu0 %v913, 120
        %v936 = vpop.permute.xlu0 %935
        %937 = vrot.lane.b32.xlu0 %v914, 120
        %v938 = vpop.permute.xlu0 %937
        %vm939 = vcmask 982016
        %v940 = vsel %vm939, %v924, %v926
        %v941 = vsel %vm939, %v928, %v930
        %v942 = vsel %vm939, %v932, %v934
        %v943 = vsel %vm939, %v936, %v938
        %v952 = vadd.f32 %v883, %v940
        %v953 = vadd.f32 %v884, %v926
        %v954 = vadd.f32 %v885, %v941
        %v955 = vadd.f32 %v886, %v930
        %v956 = vadd.f32 %v887, %v942
        %v957 = vadd.f32 %v888, %v934
        %v958 = vadd.f32 %v889, %v943
        %v959 = vadd.f32 %v890, %v938
        %961 = vset.pattern.permute.xlu0 0
        %962 = vperm.xlu0 %961, %v357
        %v963 = vpop.permute.xlu0 %962
        %966 = vset.pattern.permute.xlu0 0
        %967 = vperm.xlu0 %966, %v358
        %v968 = vpop.permute.xlu0 %967
        %971 = vset.pattern.permute.xlu0 0
        %972 = vperm.xlu0 %971, %v359
        %v973 = vpop.permute.xlu0 %972
        %976 = vset.pattern.permute.xlu0 0
        %977 = vperm.xlu0 %976, %v360
        %v978 = vpop.permute.xlu0 %977
        %v980 = vadd.f32 %v952, %v963
        %v981 = vadd.f32 %v953, %v963
        %v982 = vadd.f32 %v954, %v968
        %v983 = vadd.f32 %v955, %v968
        %v984 = vadd.f32 %v956, %v973
        %v985 = vadd.f32 %v957, %v973
        %v986 = vadd.f32 %v958, %v978
        %v987 = vadd.f32 %v959, %v978
        %s988 = smul.u32 %s25, 128
        %s989 = sadd.s32 %s988, 4294967276
        %v990 = vlaneseq
        %v991 = vand.u32 %v990, 127
        %v992 = vadd.s32 %v991, 128
        %v993 = vstv %s989
        %v994 = vadd.s32 %v993, %v991
        %v995 = vadd.s32 %v993, %v992
        %vm996 = vcmp.ge.s32.totalorder %v994, 0
        %vm997 = vcmp.ge.s32.totalorder %v995, 0
        %vm998 = vcmp.lt.s32.totalorder %v994, 400
        %vm999 = vcmp.lt.s32.totalorder %v995, 400
        %vm1000 = vmand %vm996, %vm998
        %vm1001 = vmand %vm997, %vm999
        %v1002 = vsel %vm1000, 1, 0
        %v1003 = vsel %vm1001, 1, 0
        %vm1004 = vcmp.eq.s32.totalorder %v1002, 1
        %vm1005 = vcmp.eq.s32.totalorder %v1003, 1
        %v1006 = vsel %vm1004, %v980, 0.0
        %v1007 = vsel %vm1005, %v981, 0.0
        %v1008 = vsel %vm1004, %v982, 0.0
        %v1009 = vsel %vm1005, %v983, 0.0
        %v1010 = vsel %vm1004, %v984, 0.0
        %v1011 = vsel %vm1005, %v985, 0.0
        %v1012 = vsel %vm1004, %v986, 0.0
        %v1013 = vsel %vm1005, %v987, 0.0
        %v1014 = vld [vmem:[%s3] sm:$0xff]
        %v1015 = vld [vmem:[%s3 + $0x8] sm:$0xff]
        %v1016 = vld [vmem:[%s3 + $0x10] sm:$0xff]
        %v1017 = vld [vmem:[%s3 + $0x18] sm:$0xff]
        %v1018 = vld [vmem:[%s3 + $0x20] sm:$0xff]
        %v1019 = vld [vmem:[%s3 + $0x28] sm:$0xff]
        %v1020 = vld [vmem:[%s3 + $0x30] sm:$0xff]
        %v1021 = vld [vmem:[%s3 + $0x38] sm:$0xff]
        %v1022 = vld [vmem:[%s3 + $0x40] sm:$0xff]
        %v1023 = vld [vmem:[%s3 + $0x48] sm:$0xff]
        %v1024 = vld [vmem:[%s3 + $0x50] sm:$0xff]
        %v1025 = vld [vmem:[%s3 + $0x58] sm:$0xff]
        %v1026 = vld [vmem:[%s4] sm:$0xff]
        %v1027 = vld [vmem:[%s4 + $0x8] sm:$0xff]
        %v1028 = vld [vmem:[%s4 + $0x10] sm:$0xff]
        %v1029 = vld [vmem:[%s4 + $0x18] sm:$0xff]
        %1038 = vrot.lane.b32.xlu0 %v1006, 127
        %v1039 = vpop.permute.xlu0 %1038
        %1040 = vrot.lane.b32.xlu0 %v1007, 127
        %v1041 = vpop.permute.xlu0 %1040
        %1042 = vrot.lane.b32.xlu0 %v1008, 127
        %v1043 = vpop.permute.xlu0 %1042
        %1044 = vrot.lane.b32.xlu0 %v1009, 127
        %v1045 = vpop.permute.xlu0 %1044
        %1046 = vrot.lane.b32.xlu0 %v1010, 127
        %v1047 = vpop.permute.xlu0 %1046
        %1048 = vrot.lane.b32.xlu0 %v1011, 127
        %v1049 = vpop.permute.xlu0 %1048
        %1050 = vrot.lane.b32.xlu0 %v1012, 127
        %v1051 = vpop.permute.xlu0 %1050
        %1052 = vrot.lane.b32.xlu0 %v1013, 127
        %v1053 = vpop.permute.xlu0 %1052
        %v1054 = vsel %vm456, %v1039, %v1041
        %v1055 = vsel %vm456, %v1043, %v1045
        %v1056 = vsel %vm456, %v1047, %v1049
        %v1057 = vsel %vm456, %v1051, %v1053
        %1066 = vrot.lane.b32.xlu0 %v1006, 126
        %v1067 = vpop.permute.xlu0 %1066
        %1068 = vrot.lane.b32.xlu0 %v1007, 126
        %v1069 = vpop.permute.xlu0 %1068
        %1070 = vrot.lane.b32.xlu0 %v1008, 126
        %v1071 = vpop.permute.xlu0 %1070
        %1072 = vrot.lane.b32.xlu0 %v1009, 126
        %v1073 = vpop.permute.xlu0 %1072
        %1074 = vrot.lane.b32.xlu0 %v1010, 126
        %v1075 = vpop.permute.xlu0 %1074
        %1076 = vrot.lane.b32.xlu0 %v1011, 126
        %v1077 = vpop.permute.xlu0 %1076
        %1078 = vrot.lane.b32.xlu0 %v1012, 126
        %v1079 = vpop.permute.xlu0 %1078
        %1080 = vrot.lane.b32.xlu0 %v1013, 126
        %v1081 = vpop.permute.xlu0 %1080
        %v1082 = vsel %vm525, %v1067, %v1069
        %v1083 = vsel %vm525, %v1071, %v1073
        %v1084 = vsel %vm525, %v1075, %v1077
        %v1085 = vsel %vm525, %v1079, %v1081
        %1094 = vrot.lane.b32.xlu0 %v1006, 125
        %v1095 = vpop.permute.xlu0 %1094
        %1096 = vrot.lane.b32.xlu0 %v1007, 125
        %v1097 = vpop.permute.xlu0 %1096
        %1098 = vrot.lane.b32.xlu0 %v1008, 125
        %v1099 = vpop.permute.xlu0 %1098
        %1100 = vrot.lane.b32.xlu0 %v1009, 125
        %v1101 = vpop.permute.xlu0 %1100
        %1102 = vrot.lane.b32.xlu0 %v1010, 125
        %v1103 = vpop.permute.xlu0 %1102
        %1104 = vrot.lane.b32.xlu0 %v1011, 125
        %v1105 = vpop.permute.xlu0 %1104
        %1106 = vrot.lane.b32.xlu0 %v1012, 125
        %v1107 = vpop.permute.xlu0 %1106
        %1108 = vrot.lane.b32.xlu0 %v1013, 125
        %v1109 = vpop.permute.xlu0 %1108
        %v1110 = vsel %vm594, %v1095, %v1097
        %v1111 = vsel %vm594, %v1099, %v1101
        %v1112 = vsel %vm594, %v1103, %v1105
        %v1113 = vsel %vm594, %v1107, %v1109
        %1122 = vrot.lane.b32.xlu0 %v1006, 124
        %v1123 = vpop.permute.xlu0 %1122
        %1124 = vrot.lane.b32.xlu0 %v1007, 124
        %v1125 = vpop.permute.xlu0 %1124
        %1126 = vrot.lane.b32.xlu0 %v1008, 124
        %v1127 = vpop.permute.xlu0 %1126
        %1128 = vrot.lane.b32.xlu0 %v1009, 124
        %v1129 = vpop.permute.xlu0 %1128
        %1130 = vrot.lane.b32.xlu0 %v1010, 124
        %v1131 = vpop.permute.xlu0 %1130
        %1132 = vrot.lane.b32.xlu0 %v1011, 124
        %v1133 = vpop.permute.xlu0 %1132
        %1134 = vrot.lane.b32.xlu0 %v1012, 124
        %v1135 = vpop.permute.xlu0 %1134
        %1136 = vrot.lane.b32.xlu0 %v1013, 124
        %v1137 = vpop.permute.xlu0 %1136
        %v1138 = vsel %vm663, %v1123, %v1125
        %v1139 = vsel %vm663, %v1127, %v1129
        %v1140 = vsel %vm663, %v1131, %v1133
        %v1141 = vsel %vm663, %v1135, %v1137
        %1150 = vrot.lane.b32.xlu0 %v1006, 123
        %v1151 = vpop.permute.xlu0 %1150
        %1152 = vrot.lane.b32.xlu0 %v1007, 123
        %v1153 = vpop.permute.xlu0 %1152
        %1154 = vrot.lane.b32.xlu0 %v1008, 123
        %v1155 = vpop.permute.xlu0 %1154
        %1156 = vrot.lane.b32.xlu0 %v1009, 123
        %v1157 = vpop.permute.xlu0 %1156
        %1158 = vrot.lane.b32.xlu0 %v1010, 123
        %v1159 = vpop.permute.xlu0 %1158
        %1160 = vrot.lane.b32.xlu0 %v1011, 123
        %v1161 = vpop.permute.xlu0 %1160
        %1162 = vrot.lane.b32.xlu0 %v1012, 123
        %v1163 = vpop.permute.xlu0 %1162
        %1164 = vrot.lane.b32.xlu0 %v1013, 123
        %v1165 = vpop.permute.xlu0 %1164
        %v1166 = vsel %vm732, %v1151, %v1153
        %v1167 = vsel %vm732, %v1155, %v1157
        %v1168 = vsel %vm732, %v1159, %v1161
        %v1169 = vsel %vm732, %v1163, %v1165
        %1178 = vrot.lane.b32.xlu0 %v1006, 122
        %v1179 = vpop.permute.xlu0 %1178
        %1180 = vrot.lane.b32.xlu0 %v1007, 122
        %v1181 = vpop.permute.xlu0 %1180
        %1182 = vrot.lane.b32.xlu0 %v1008, 122
        %v1183 = vpop.permute.xlu0 %1182
        %1184 = vrot.lane.b32.xlu0 %v1009, 122
        %v1185 = vpop.permute.xlu0 %1184
        %1186 = vrot.lane.b32.xlu0 %v1010, 122
        %v1187 = vpop.permute.xlu0 %1186
        %1188 = vrot.lane.b32.xlu0 %v1011, 122
        %v1189 = vpop.permute.xlu0 %1188
        %1190 = vrot.lane.b32.xlu0 %v1012, 122
        %v1191 = vpop.permute.xlu0 %1190
        %1192 = vrot.lane.b32.xlu0 %v1013, 122
        %v1193 = vpop.permute.xlu0 %1192
        %v1194 = vsel %vm801, %v1179, %v1181
        %v1195 = vsel %vm801, %v1183, %v1185
        %v1196 = vsel %vm801, %v1187, %v1189
        %v1197 = vsel %vm801, %v1191, %v1193
        %1206 = vrot.lane.b32.xlu0 %v1006, 121
        %v1207 = vpop.permute.xlu0 %1206
        %1208 = vrot.lane.b32.xlu0 %v1007, 121
        %v1209 = vpop.permute.xlu0 %1208
        %1210 = vrot.lane.b32.xlu0 %v1008, 121
        %v1211 = vpop.permute.xlu0 %1210
        %1212 = vrot.lane.b32.xlu0 %v1009, 121
        %v1213 = vpop.permute.xlu0 %1212
        %1214 = vrot.lane.b32.xlu0 %v1010, 121
        %v1215 = vpop.permute.xlu0 %1214
        %1216 = vrot.lane.b32.xlu0 %v1011, 121
        %v1217 = vpop.permute.xlu0 %1216
        %1218 = vrot.lane.b32.xlu0 %v1012, 121
        %v1219 = vpop.permute.xlu0 %1218
        %1220 = vrot.lane.b32.xlu0 %v1013, 121
        %v1221 = vpop.permute.xlu0 %1220
        %v1222 = vsel %vm870, %v1207, %v1209
        %v1223 = vsel %vm870, %v1211, %v1213
        %v1224 = vsel %vm870, %v1215, %v1217
        %v1225 = vsel %vm870, %v1219, %v1221
        %1234 = vrot.lane.b32.xlu0 %v1006, 120
        %v1235 = vpop.permute.xlu0 %1234
        %1236 = vrot.lane.b32.xlu0 %v1007, 120
        %v1237 = vpop.permute.xlu0 %1236
        %1238 = vrot.lane.b32.xlu0 %v1008, 120
        %v1239 = vpop.permute.xlu0 %1238
        %1240 = vrot.lane.b32.xlu0 %v1009, 120
        %v1241 = vpop.permute.xlu0 %1240
        %1242 = vrot.lane.b32.xlu0 %v1010, 120
        %v1243 = vpop.permute.xlu0 %1242
        %1244 = vrot.lane.b32.xlu0 %v1011, 120
        %v1245 = vpop.permute.xlu0 %1244
        %1246 = vrot.lane.b32.xlu0 %v1012, 120
        %v1247 = vpop.permute.xlu0 %1246
        %1248 = vrot.lane.b32.xlu0 %v1013, 120
        %v1249 = vpop.permute.xlu0 %1248
        %v1250 = vsel %vm939, %v1235, %v1237
        %v1251 = vsel %vm939, %v1239, %v1241
        %v1252 = vsel %vm939, %v1243, %v1245
        %v1253 = vsel %vm939, %v1247, %v1249
        %1263 = vset.pattern.permute.xlu0 0
        %1264 = vperm.xlu0 %1263, %v1026
        %v1265 = vpop.permute.xlu0 %1264
        %1268 = vset.pattern.permute.xlu0 0
        %1269 = vperm.xlu0 %1268, %v1027
        %v1270 = vpop.permute.xlu0 %1269
        %1273 = vset.pattern.permute.xlu0 0
        %1274 = vperm.xlu0 %1273, %v1028
        %v1275 = vpop.permute.xlu0 %1274
        %1278 = vset.pattern.permute.xlu0 0
        %1279 = vperm.xlu0 %1278, %v1029
        %v1280 = vpop.permute.xlu0 %1279
        %vm1282 = vcmask 261120
        %v1284 = vsel %vm1282, %v1016, 0
        %v1287 = vsel %vm1282, %v1019, 0
        %v1290 = vsel %vm1282, %v1022, 0
        %v1293 = vsel %vm1282, %v1025, 0
        %1295 = vmatprep.subr.mxu0 %v1007
        %1296 = vmatpush1.msra.mxu0 %v1006
        %1297 = vmatprep.subr.mxu0 %v1009
        %1298 = vmatpush1.msra.mxu0 %v1008
        %1299 = vmatprep.subr.mxu0 %v1011
        %1300 = vmatpush1.msra.mxu0 %v1010
        %1301 = vmatprep.subr.mxu0 %v1013
        %1302 = vmatpush1.msra.mxu0 %v1012
        %1303 = vmatprep.subr.mxu0 %v1041
        %1304 = vmatpush1.msra.mxu0 %v1054
        %1305 = vmatprep.subr.mxu0 %v1045
        %1306 = vmatpush1.msra.mxu0 %v1055
        %1307 = vmatprep.subr.mxu0 %v1049
        %1308 = vmatpush1.msra.mxu0 %v1056
        %1309 = vmatprep.subr.mxu0 %v1053
        %1310 = vmatpush1.msra.mxu0 %v1057
        %1311 = vmatprep.subr.mxu0 %v1069
        %1312 = vmatpush1.msra.mxu0 %v1082
        %1313 = vmatprep.subr.mxu0 %v1073
        %1314 = vmatpush1.msra.mxu0 %v1083
        %1315 = vmatprep.subr.mxu0 %v1077
        %1316 = vmatpush1.msra.mxu0 %v1084
        %1317 = vmatprep.subr.mxu0 %v1081
        %1318 = vmatpush1.msra.mxu0 %v1085
        %1319 = vmatprep.subr.mxu0 %v1097
        %1320 = vmatpush1.msra.mxu0 %v1110
        %1321 = vmatprep.subr.mxu0 %v1101
        %1322 = vmatpush1.msra.mxu0 %v1111
        %1323 = vmatprep.subr.mxu0 %v1105
        %1324 = vmatpush1.msra.mxu0 %v1112
        %1325 = vmatprep.subr.mxu0 %v1109
        %1326 = vmatpush1.msra.mxu0 %v1113
        %1327 = vmatprep.subr.mxu0 %v1125
        %1328 = vmatpush1.msra.mxu0 %v1138
        %1329 = vmatprep.subr.mxu0 %v1129
        %1330 = vmatpush1.msra.mxu0 %v1139
        %1331 = vmatprep.subr.mxu0 %v1133
        %1332 = vmatpush1.msra.mxu0 %v1140
        %1333 = vmatprep.subr.mxu0 %v1137
        %1334 = vmatpush1.msra.mxu0 %v1141
        %1335 = vmatprep.subr.mxu0 %v1153
        %1336 = vmatpush1.msra.mxu0 %v1166
        %1337 = vmatprep.subr.mxu0 %v1157
        %1338 = vmatpush1.msra.mxu0 %v1167
        %1339 = vmatprep.subr.mxu0 %v1161
        %1340 = vmatpush1.msra.mxu0 %v1168
        %1341 = vmatprep.subr.mxu0 %v1165
        %1342 = vmatpush1.msra.mxu0 %v1169
        %1343 = vmatprep.subr.mxu0 %v1181
        %1344 = vmatpush1.msra.mxu0 %v1194
        %1345 = vmatprep.subr.mxu0 %v1185
        %1346 = vmatpush1.msra.mxu0 %v1195
        %1347 = vmatprep.subr.mxu0 %v1189
        %1348 = vmatpush1.msra.mxu0 %v1196
        %1349 = vmatprep.subr.mxu0 %v1193
        %1350 = vmatpush1.msra.mxu0 %v1197
        %1351 = vmatprep.subr.mxu0 %v1209
        %1352 = vmatpush1.msra.mxu0 %v1222
        %1353 = vmatprep.subr.mxu0 %v1213
        %1354 = vmatpush1.msra.mxu0 %v1223
        %1355 = vmatprep.subr.mxu0 %v1217
        %1356 = vmatpush1.msra.mxu0 %v1224
        %1357 = vmatprep.subr.mxu0 %v1221
        %1358 = vmatpush1.msra.mxu0 %v1225
        %1359 = vmatprep.mubr.f32.mxu0 %v1015
        %1360 = vmatmul.mubr.f32.gmra.mrb[0].mxu0 %v1014
        %v1361 = vpop.f32.mrb[0].mxu0
        %v1362 = vadd.f32 %v1265, %v1361
        %v1363 = vpop.f32.mrb[0].mxu0
        %v1364 = vadd.f32 %v1265, %v1363
        %1365 = vmatprep.mubr.f32.mxu0 %v1018
        %1366 = vmatmul.mubr.f32.gmra.mrb[0].mxu0 %v1017
        %v1367 = vpop.f32.mrb[0].mxu0
        %v1368 = vadd.f32 %v1270, %v1367
        %v1369 = vpop.f32.mrb[0].mxu0
        %v1370 = vadd.f32 %v1270, %v1369
        %1371 = vmatprep.mubr.f32.mxu0 %v1021
        %1372 = vmatmul.mubr.f32.gmra.mrb[0].mxu0 %v1020
        %v1373 = vpop.f32.mrb[0].mxu0
        %v1374 = vadd.f32 %v1275, %v1373
        %v1375 = vpop.f32.mrb[0].mxu0
        %v1376 = vadd.f32 %v1275, %v1375
        %1377 = vmatprep.mubr.f32.mxu0 %v1024
        %1378 = vmatmul.mubr.f32.gmra.mrb[0].mxu0 %v1023
        %v1379 = vpop.f32.mrb[0].mxu0
        %v1380 = vadd.f32 %v1280, %v1379
        %v1381 = vpop.f32.mrb[0].mxu0
        %v1382 = vadd.f32 %v1280, %v1381
        %1383 = vdwg.mxu0
        %1384 = vmatprep.subr.mxu0 %v1237
        %1385 = vmatpush1.msra.mxu0 %v1250
        %1386 = vmatprep.subr.mxu0 %v1241
        %1387 = vmatpush1.msra.mxu0 %v1251
        %1388 = vmatprep.subr.mxu0 %v1245
        %1389 = vmatpush1.msra.mxu0 %v1252
        %1390 = vmatprep.subr.mxu0 %v1249
        %1391 = vmatpush1.msra.mxu0 %v1253
        %1392 = vmatprep.subr.mxu0 0.0
        %1393 = vmatpush1.msra.mxu0 0.0
        %1394 = vmatprep.subr.mxu0 0.0
        %1395 = vmatpush1.msra.mxu0 0.0
        %1396 = vmatprep.subr.mxu0 0.0
        %1397 = vmatpush1.msra.mxu0 0.0
        %1398 = vmatprep.subr.mxu0 0.0
        %1399 = vmatpush1.msra.mxu0 0.0
        %1400 = vmatprep.subr.mxu0 0.0
        %1401 = vmatpush1.msra.mxu0 0.0
        %1402 = vmatprep.subr.mxu0 0.0
        %1403 = vmatpush1.msra.mxu0 0.0
        %1404 = vmatprep.subr.mxu0 0.0
        %1405 = vmatpush1.msra.mxu0 0.0
        %1406 = vmatprep.subr.mxu0 0.0
        %1407 = vmatpush1.msra.mxu0 0.0
        %1408 = vmatprep.subr.mxu0 0.0
        %1409 = vmatpush1.msra.mxu0 0.0
        %1410 = vmatprep.subr.mxu0 0.0
        %1411 = vmatpush1.msra.mxu0 0.0
        %1412 = vmatprep.subr.mxu0 0.0
        %1413 = vmatpush1.msra.mxu0 0.0
        %1414 = vmatprep.subr.mxu0 0.0
        %1415 = vmatpush1.msra.mxu0 0.0
        %1416 = vmatprep.subr.mxu0 0.0
        %1417 = vmatpush1.msra.mxu0 0.0
        %1418 = vmatprep.subr.mxu0 0.0
        %1419 = vmatpush1.msra.mxu0 0.0
        %1420 = vmatprep.subr.mxu0 0.0
        %1421 = vmatpush1.msra.mxu0 0.0
        %1422 = vmatprep.subr.mxu0 0.0
        %1423 = vmatpush1.msra.mxu0 0.0
        %1424 = vmatprep.subr.mxu0 0.0
        %1425 = vmatpush1.msra.mxu0 0.0
        %1426 = vmatprep.subr.mxu0 0.0
        %1427 = vmatpush1.msra.mxu0 0.0
        %1428 = vmatprep.subr.mxu0 0.0
        %1429 = vmatpush1.msra.mxu0 0.0
        %1430 = vmatprep.subr.mxu0 0.0
        %1431 = vmatpush1.msra.mxu0 0.0
        %1432 = vmatprep.subr.mxu0 0.0
        %1433 = vmatpush1.msra.mxu0 0.0
        %1434 = vmatprep.subr.mxu0 0.0
        %1435 = vmatpush1.msra.mxu0 0.0
        %1436 = vmatprep.subr.mxu0 0.0
        %1437 = vmatpush1.msra.mxu0 0.0
        %1438 = vmatprep.subr.mxu0 0.0
        %1439 = vmatpush1.msra.mxu0 0.0
        %1440 = vmatprep.subr.mxu0 0.0
        %1441 = vmatpush1.msra.mxu0 0.0
        %1442 = vmatprep.subr.mxu0 0.0
        %1443 = vmatpush1.msra.mxu0 0.0
        %1444 = vmatprep.subr.mxu0 0.0
        %1445 = vmatpush1.msra.mxu0 0.0
        %1446 = vmatprep.subr.mxu0 0.0
        %1447 = vmatpush1.msra.mxu0 0.0
        %1448 = vmatprep.mubr.f32.mxu0 0.0
        %1449 = vmatmul.mubr.f32.gmra.mrb[0].mxu0 %v1284
        %v1450 = vpop.f32.mrb[0].mxu0
        %v1451 = vadd.f32 %v1362, %v1450
        %v1452 = vpop.f32.mrb[0].mxu0
        %v1453 = vadd.f32 %v1364, %v1452
        %1454 = vmatprep.mubr.f32.mxu0 0.0
        %1455 = vmatmul.mubr.f32.gmra.mrb[0].mxu0 %v1287
        %v1456 = vpop.f32.mrb[0].mxu0
        %v1457 = vadd.f32 %v1368, %v1456
        %v1458 = vpop.f32.mrb[0].mxu0
        %v1459 = vadd.f32 %v1370, %v1458
        %1460 = vmatprep.mubr.f32.mxu0 0.0
        %1461 = vmatmul.mubr.f32.gmra.mrb[0].mxu0 %v1290
        %v1462 = vpop.f32.mrb[0].mxu0
        %v1463 = vadd.f32 %v1374, %v1462
        %v1464 = vpop.f32.mrb[0].mxu0
        %v1465 = vadd.f32 %v1376, %v1464
        %1466 = vmatprep.mubr.f32.mxu0 0.0
        %1467 = vmatmul.mubr.f32.gmra.mrb[0].mxu0 %v1293
        %v1468 = vpop.f32.mrb[0].mxu0
        %v1469 = vadd.f32 %v1380, %v1468
        %v1470 = vpop.f32.mrb[0].mxu0
        %v1471 = vadd.f32 %v1382, %v1470
        %1472 = vdwg.mxu0
        %vm1473 = vcmp.gt.f32.partialorder %v1451, 0.0
        %vm1474 = vcmp.gt.f32.partialorder %v1453, 0.0
        %vm1475 = vcmp.gt.f32.partialorder %v1457, 0.0
        %vm1476 = vcmp.gt.f32.partialorder %v1459, 0.0
        %vm1477 = vcmp.gt.f32.partialorder %v1463, 0.0
        %vm1478 = vcmp.gt.f32.partialorder %v1465, 0.0
        %vm1479 = vcmp.gt.f32.partialorder %v1469, 0.0
        %vm1480 = vcmp.gt.f32.partialorder %v1471, 0.0
        %v1481 = vmul.f32 %v1451, 0.2
        %v1482 = vmul.f32 %v1453, 0.2
        %v1483 = vmul.f32 %v1457, 0.2
        %v1484 = vmul.f32 %v1459, 0.2
        %v1485 = vmul.f32 %v1463, 0.2
        %v1486 = vmul.f32 %v1465, 0.2
        %v1487 = vmul.f32 %v1469, 0.2
        %v1488 = vmul.f32 %v1471, 0.2
        %v1489 = vsel %vm1473, %v1451, %v1481
        %v1490 = vsel %vm1474, %v1453, %v1482
        %v1491 = vsel %vm1475, %v1457, %v1483
        %v1492 = vsel %vm1476, %v1459, %v1484
        %v1493 = vsel %vm1477, %v1463, %v1485
        %v1494 = vsel %vm1478, %v1465, %v1486
        %v1495 = vsel %vm1479, %v1469, %v1487
        %v1496 = vsel %vm1480, %v1471, %v1488
        %s1497 = sadd.s32 %s988, 4294967280
        %v1498 = vstv %s1497
        %v1499 = vadd.s32 %v1498, %v991
        %v1500 = vadd.s32 %v1498, %v992
        %vm1501 = vcmp.ge.s32.totalorder %v1499, 0
        %vm1502 = vcmp.ge.s32.totalorder %v1500, 0
        %vm1503 = vcmp.lt.s32.totalorder %v1499, 400
        %vm1504 = vcmp.lt.s32.totalorder %v1500, 400
        %vm1505 = vmand %vm1501, %vm1503
        %vm1506 = vmand %vm1502, %vm1504
        %v1507 = vsel %vm1505, 1, 0
        %v1508 = vsel %vm1506, 1, 0
        %vm1509 = vcmp.eq.s32.totalorder %v1507, 1
        %vm1510 = vcmp.eq.s32.totalorder %v1508, 1
        %v1511 = vsel %vm1509, %v1489, 0.0
        %v1512 = vsel %vm1510, %v1490, 0.0
        %v1513 = vsel %vm1509, %v1491, 0.0
        %v1514 = vsel %vm1510, %v1492, 0.0
        %v1515 = vsel %vm1509, %v1493, 0.0
        %v1516 = vsel %vm1510, %v1494, 0.0
        %v1517 = vsel %vm1509, %v1495, 0.0
        %v1518 = vsel %vm1510, %v1496, 0.0
        %v1519 = vld [vmem:[%s5] sm:$0xff]
        %v1520 = vld [vmem:[%s5 + $0x8] sm:$0xff]
        %v1521 = vld [vmem:[%s5 + $0x10] sm:$0xff]
        %v1522 = vld [vmem:[%s5 + $0x18] sm:$0xff]
        %v1523 = vld [vmem:[%s5 + $0x20] sm:$0xff]
        %v1524 = vld [vmem:[%s5 + $0x28] sm:$0xff]
        %v1525 = vld [vmem:[%s5 + $0x30] sm:$0xff]
        %v1526 = vld [vmem:[%s5 + $0x38] sm:$0xff]
        %v1527 = vld [vmem:[%s5 + $0x40] sm:$0xff]
        %v1528 = vld [vmem:[%s5 + $0x48] sm:$0xff]
        %v1529 = vld [vmem:[%s5 + $0x50] sm:$0xff]
        %v1530 = vld [vmem:[%s5 + $0x58] sm:$0xff]
        %v1531 = vld [vmem:[%s6] sm:$0xff]
        %v1532 = vld [vmem:[%s6 + $0x8] sm:$0xff]
        %v1533 = vld [vmem:[%s6 + $0x10] sm:$0xff]
        %v1534 = vld [vmem:[%s6 + $0x18] sm:$0xff]
        %1543 = vrot.lane.b32.xlu0 %v1511, 127
        %v1544 = vpop.permute.xlu0 %1543
        %1545 = vrot.lane.b32.xlu0 %v1512, 127
        %v1546 = vpop.permute.xlu0 %1545
        %1547 = vrot.lane.b32.xlu0 %v1513, 127
        %v1548 = vpop.permute.xlu0 %1547
        %1549 = vrot.lane.b32.xlu0 %v1514, 127
        %v1550 = vpop.permute.xlu0 %1549
        %1551 = vrot.lane.b32.xlu0 %v1515, 127
        %v1552 = vpop.permute.xlu0 %1551
        %1553 = vrot.lane.b32.xlu0 %v1516, 127
        %v1554 = vpop.permute.xlu0 %1553
        %1555 = vrot.lane.b32.xlu0 %v1517, 127
        %v1556 = vpop.permute.xlu0 %1555
        %1557 = vrot.lane.b32.xlu0 %v1518, 127
        %v1558 = vpop.permute.xlu0 %1557
        %v1559 = vsel %vm456, %v1544, %v1546
        %v1560 = vsel %vm456, %v1548, %v1550
        %v1561 = vsel %vm456, %v1552, %v1554
        %v1562 = vsel %vm456, %v1556, %v1558
        %1571 = vrot.lane.b32.xlu0 %v1511, 126
        %v1572 = vpop.permute.xlu0 %1571
        %1573 = vrot.lane.b32.xlu0 %v1512, 126
        %v1574 = vpop.permute.xlu0 %1573
        %1575 = vrot.lane.b32.xlu0 %v1513, 126
        %v1576 = vpop.permute.xlu0 %1575
        %1577 = vrot.lane.b32.xlu0 %v1514, 126
        %v1578 = vpop.permute.xlu0 %1577
        %1579 = vrot.lane.b32.xlu0 %v1515, 126
        %v1580 = vpop.permute.xlu0 %1579
        %1581 = vrot.lane.b32.xlu0 %v1516, 126
        %v1582 = vpop.permute.xlu0 %1581
        %1583 = vrot.lane.b32.xlu0 %v1517, 126
        %v1584 = vpop.permute.xlu0 %1583
        %1585 = vrot.lane.b32.xlu0 %v1518, 126
        %v1586 = vpop.permute.xlu0 %1585
        %v1587 = vsel %vm525, %v1572, %v1574
        %v1588 = vsel %vm525, %v1576, %v1578
        %v1589 = vsel %vm525, %v1580, %v1582
        %v1590 = vsel %vm525, %v1584, %v1586
        %1599 = vrot.lane.b32.xlu0 %v1511, 125
        %v1600 = vpop.permute.xlu0 %1599
        %1601 = vrot.lane.b32.xlu0 %v1512, 125
        %v1602 = vpop.permute.xlu0 %1601
        %1603 = vrot.lane.b32.xlu0 %v1513, 125
        %v1604 = vpop.permute.xlu0 %1603
        %1605 = vrot.lane.b32.xlu0 %v1514, 125
        %v1606 = vpop.permute.xlu0 %1605
        %1607 = vrot.lane.b32.xlu0 %v1515, 125
        %v1608 = vpop.permute.xlu0 %1607
        %1609 = vrot.lane.b32.xlu0 %v1516, 125
        %v1610 = vpop.permute.xlu0 %1609
        %1611 = vrot.lane.b32.xlu0 %v1517, 125
        %v1612 = vpop.permute.xlu0 %1611
        %1613 = vrot.lane.b32.xlu0 %v1518, 125
        %v1614 = vpop.permute.xlu0 %1613
        %v1615 = vsel %vm594, %v1600, %v1602
        %v1616 = vsel %vm594, %v1604, %v1606
        %v1617 = vsel %vm594, %v1608, %v1610
        %v1618 = vsel %vm594, %v1612, %v1614
        %1627 = vrot.lane.b32.xlu0 %v1511, 124
        %v1628 = vpop.permute.xlu0 %1627
        %1629 = vrot.lane.b32.xlu0 %v1512, 124
        %v1630 = vpop.permute.xlu0 %1629
        %1631 = vrot.lane.b32.xlu0 %v1513, 124
        %v1632 = vpop.permute.xlu0 %1631
        %1633 = vrot.lane.b32.xlu0 %v1514, 124
        %v1634 = vpop.permute.xlu0 %1633
        %1635 = vrot.lane.b32.xlu0 %v1515, 124
        %v1636 = vpop.permute.xlu0 %1635
        %1637 = vrot.lane.b32.xlu0 %v1516, 124
        %v1638 = vpop.permute.xlu0 %1637
        %1639 = vrot.lane.b32.xlu0 %v1517, 124
        %v1640 = vpop.permute.xlu0 %1639
        %1641 = vrot.lane.b32.xlu0 %v1518, 124
        %v1642 = vpop.permute.xlu0 %1641
        %v1643 = vsel %vm663, %v1628, %v1630
        %v1644 = vsel %vm663, %v1632, %v1634
        %v1645 = vsel %vm663, %v1636, %v1638
        %v1646 = vsel %vm663, %v1640, %v1642
        %1655 = vrot.lane.b32.xlu0 %v1511, 123
        %v1656 = vpop.permute.xlu0 %1655
        %1657 = vrot.lane.b32.xlu0 %v1512, 123
        %v1658 = vpop.permute.xlu0 %1657
        %1659 = vrot.lane.b32.xlu0 %v1513, 123
        %v1660 = vpop.permute.xlu0 %1659
        %1661 = vrot.lane.b32.xlu0 %v1514, 123
        %v1662 = vpop.permute.xlu0 %1661
        %1663 = vrot.lane.b32.xlu0 %v1515, 123
        %v1664 = vpop.permute.xlu0 %1663
        %1665 = vrot.lane.b32.xlu0 %v1516, 123
        %v1666 = vpop.permute.xlu0 %1665
        %1667 = vrot.lane.b32.xlu0 %v1517, 123
        %v1668 = vpop.permute.xlu0 %1667
        %1669 = vrot.lane.b32.xlu0 %v1518, 123
        %v1670 = vpop.permute.xlu0 %1669
        %v1671 = vsel %vm732, %v1656, %v1658
        %v1672 = vsel %vm732, %v1660, %v1662
        %v1673 = vsel %vm732, %v1664, %v1666
        %v1674 = vsel %vm732, %v1668, %v1670
        %1683 = vrot.lane.b32.xlu0 %v1511, 122
        %v1684 = vpop.permute.xlu0 %1683
        %1685 = vrot.lane.b32.xlu0 %v1512, 122
        %v1686 = vpop.permute.xlu0 %1685
        %1687 = vrot.lane.b32.xlu0 %v1513, 122
        %v1688 = vpop.permute.xlu0 %1687
        %1689 = vrot.lane.b32.xlu0 %v1514, 122
        %v1690 = vpop.permute.xlu0 %1689
        %1691 = vrot.lane.b32.xlu0 %v1515, 122
        %v1692 = vpop.permute.xlu0 %1691
        %1693 = vrot.lane.b32.xlu0 %v1516, 122
        %v1694 = vpop.permute.xlu0 %1693
        %1695 = vrot.lane.b32.xlu0 %v1517, 122
        %v1696 = vpop.permute.xlu0 %1695
        %1697 = vrot.lane.b32.xlu0 %v1518, 122
        %v1698 = vpop.permute.xlu0 %1697
        %v1699 = vsel %vm801, %v1684, %v1686
        %v1700 = vsel %vm801, %v1688, %v1690
        %v1701 = vsel %vm801, %v1692, %v1694
        %v1702 = vsel %vm801, %v1696, %v1698
        %1711 = vrot.lane.b32.xlu0 %v1511, 121
        %v1712 = vpop.permute.xlu0 %1711
        %1713 = vrot.lane.b32.xlu0 %v1512, 121
        %v1714 = vpop.permute.xlu0 %1713
        %1715 = vrot.lane.b32.xlu0 %v1513, 121
        %v1716 = vpop.permute.xlu0 %1715
        %1717 = vrot.lane.b32.xlu0 %v1514, 121
        %v1718 = vpop.permute.xlu0 %1717
        %1719 = vrot.lane.b32.xlu0 %v1515, 121
        %v1720 = vpop.permute.xlu0 %1719
        %1721 = vrot.lane.b32.xlu0 %v1516, 121
        %v1722 = vpop.permute.xlu0 %1721
        %1723 = vrot.lane.b32.xlu0 %v1517, 121
        %v1724 = vpop.permute.xlu0 %1723
        %1725 = vrot.lane.b32.xlu0 %v1518, 121
        %v1726 = vpop.permute.xlu0 %1725
        %v1727 = vsel %vm870, %v1712, %v1714
        %v1728 = vsel %vm870, %v1716, %v1718
        %v1729 = vsel %vm870, %v1720, %v1722
        %v1730 = vsel %vm870, %v1724, %v1726
        %1739 = vrot.lane.b32.xlu0 %v1511, 120
        %v1740 = vpop.permute.xlu0 %1739
        %1741 = vrot.lane.b32.xlu0 %v1512, 120
        %v1742 = vpop.permute.xlu0 %1741
        %1743 = vrot.lane.b32.xlu0 %v1513, 120
        %v1744 = vpop.permute.xlu0 %1743
        %1745 = vrot.lane.b32.xlu0 %v1514, 120
        %v1746 = vpop.permute.xlu0 %1745
        %1747 = vrot.lane.b32.xlu0 %v1515, 120
        %v1748 = vpop.permute.xlu0 %1747
        %1749 = vrot.lane.b32.xlu0 %v1516, 120
        %v1750 = vpop.permute.xlu0 %1749
        %1751 = vrot.lane.b32.xlu0 %v1517, 120
        %v1752 = vpop.permute.xlu0 %1751
        %1753 = vrot.lane.b32.xlu0 %v1518, 120
        %v1754 = vpop.permute.xlu0 %1753
        %v1755 = vsel %vm939, %v1740, %v1742
        %v1756 = vsel %vm939, %v1744, %v1746
        %v1757 = vsel %vm939, %v1748, %v1750
        %v1758 = vsel %vm939, %v1752, %v1754
        %1768 = vset.pattern.permute.xlu0 0
        %1769 = vperm.xlu0 %1768, %v1531
        %v1770 = vpop.permute.xlu0 %1769
        %1773 = vset.pattern.permute.xlu0 0
        %1774 = vperm.xlu0 %1773, %v1532
        %v1775 = vpop.permute.xlu0 %1774
        %1778 = vset.pattern.permute.xlu0 0
        %1779 = vperm.xlu0 %1778, %v1533
        %v1780 = vpop.permute.xlu0 %1779
        %1783 = vset.pattern.permute.xlu0 0
        %1784 = vperm.xlu0 %1783, %v1534
        %v1785 = vpop.permute.xlu0 %1784
        %v1788 = vsel %vm1282, %v1521, 0
        %v1791 = vsel %vm1282, %v1524, 0
        %v1794 = vsel %vm1282, %v1527, 0
        %v1797 = vsel %vm1282, %v1530, 0
        %1799 = vmatprep.subr.mxu0 %v1512
        %1800 = vmatpush1.msra.mxu0 %v1511
        %1801 = vmatprep.subr.mxu0 %v1514
        %1802 = vmatpush1.msra.mxu0 %v1513
        %1803 = vmatprep.subr.mxu0 %v1516
        %1804 = vmatpush1.msra.mxu0 %v1515
        %1805 = vmatprep.subr.mxu0 %v1518
        %1806 = vmatpush1.msra.mxu0 %v1517
        %1807 = vmatprep.subr.mxu0 %v1546
        %1808 = vmatpush1.msra.mxu0 %v1559
        %1809 = vmatprep.subr.mxu0 %v1550
        %1810 = vmatpush1.msra.mxu0 %v1560
        %1811 = vmatprep.subr.mxu0 %v1554
        %1812 = vmatpush1.msra.mxu0 %v1561
        %1813 = vmatprep.subr.mxu0 %v1558
        %1814 = vmatpush1.msra.mxu0 %v1562
        %1815 = vmatprep.subr.mxu0 %v1574
        %1816 = vmatpush1.msra.mxu0 %v1587
        %1817 = vmatprep.subr.mxu0 %v1578
        %1818 = vmatpush1.msra.mxu0 %v1588
        %1819 = vmatprep.subr.mxu0 %v1582
        %1820 = vmatpush1.msra.mxu0 %v1589
        %1821 = vmatprep.subr.mxu0 %v1586
        %1822 = vmatpush1.msra.mxu0 %v1590
        %1823 = vmatprep.subr.mxu0 %v1602
        %1824 = vmatpush1.msra.mxu0 %v1615
        %1825 = vmatprep.subr.mxu0 %v1606
        %1826 = vmatpush1.msra.mxu0 %v1616
        %1827 = vmatprep.subr.mxu0 %v1610
        %1828 = vmatpush1.msra.mxu0 %v1617
        %1829 = vmatprep.subr.mxu0 %v1614
        %1830 = vmatpush1.msra.mxu0 %v1618
        %1831 = vmatprep.subr.mxu0 %v1630
        %1832 = vmatpush1.msra.mxu0 %v1643
        %1833 = vmatprep.subr.mxu0 %v1634
        %1834 = vmatpush1.msra.mxu0 %v1644
        %1835 = vmatprep.subr.mxu0 %v1638
        %1836 = vmatpush1.msra.mxu0 %v1645
        %1837 = vmatprep.subr.mxu0 %v1642
        %1838 = vmatpush1.msra.mxu0 %v1646
        %1839 = vmatprep.subr.mxu0 %v1658
        %1840 = vmatpush1.msra.mxu0 %v1671
        %1841 = vmatprep.subr.mxu0 %v1662
        %1842 = vmatpush1.msra.mxu0 %v1672
        %1843 = vmatprep.subr.mxu0 %v1666
        %1844 = vmatpush1.msra.mxu0 %v1673
        %1845 = vmatprep.subr.mxu0 %v1670
        %1846 = vmatpush1.msra.mxu0 %v1674
        %1847 = vmatprep.subr.mxu0 %v1686
        %1848 = vmatpush1.msra.mxu0 %v1699
        %1849 = vmatprep.subr.mxu0 %v1690
        %1850 = vmatpush1.msra.mxu0 %v1700
        %1851 = vmatprep.subr.mxu0 %v1694
        %1852 = vmatpush1.msra.mxu0 %v1701
        %1853 = vmatprep.subr.mxu0 %v1698
        %1854 = vmatpush1.msra.mxu0 %v1702
        %1855 = vmatprep.subr.mxu0 %v1714
        %1856 = vmatpush1.msra.mxu0 %v1727
        %1857 = vmatprep.subr.mxu0 %v1718
        %1858 = vmatpush1.msra.mxu0 %v1728
        %1859 = vmatprep.subr.mxu0 %v1722
        %1860 = vmatpush1.msra.mxu0 %v1729
        %1861 = vmatprep.subr.mxu0 %v1726
        %1862 = vmatpush1.msra.mxu0 %v1730
        %1863 = vmatprep.mubr.f32.mxu0 %v1520
        %1864 = vmatmul.mubr.f32.gmra.mrb[0].mxu0 %v1519
        %v1865 = vpop.f32.mrb[0].mxu0
        %v1866 = vadd.f32 %v1770, %v1865
        %v1867 = vpop.f32.mrb[0].mxu0
        %v1868 = vadd.f32 %v1770, %v1867
        %1869 = vmatprep.mubr.f32.mxu0 %v1523
        %1870 = vmatmul.mubr.f32.gmra.mrb[0].mxu0 %v1522
        %v1871 = vpop.f32.mrb[0].mxu0
        %v1872 = vadd.f32 %v1775, %v1871
        %v1873 = vpop.f32.mrb[0].mxu0
        %v1874 = vadd.f32 %v1775, %v1873
        %1875 = vmatprep.mubr.f32.mxu0 %v1526
        %1876 = vmatmul.mubr.f32.gmra.mrb[0].mxu0 %v1525
        %v1877 = vpop.f32.mrb[0].mxu0
        %v1878 = vadd.f32 %v1780, %v1877
        %v1879 = vpop.f32.mrb[0].mxu0
        %v1880 = vadd.f32 %v1780, %v1879
        %1881 = vmatprep.mubr.f32.mxu0 %v1529
        %1882 = vmatmul.mubr.f32.gmra.mrb[0].mxu0 %v1528
        %v1883 = vpop.f32.mrb[0].mxu0
        %v1884 = vadd.f32 %v1785, %v1883
        %v1885 = vpop.f32.mrb[0].mxu0
        %v1886 = vadd.f32 %v1785, %v1885
        %1887 = vdwg.mxu0
        %1888 = vmatprep.subr.mxu0 %v1742
        %1889 = vmatpush1.msra.mxu0 %v1755
        %1890 = vmatprep.subr.mxu0 %v1746
        %1891 = vmatpush1.msra.mxu0 %v1756
        %1892 = vmatprep.subr.mxu0 %v1750
        %1893 = vmatpush1.msra.mxu0 %v1757
        %1894 = vmatprep.subr.mxu0 %v1754
        %1895 = vmatpush1.msra.mxu0 %v1758
        %1896 = vmatprep.subr.mxu0 0.0
        %1897 = vmatpush1.msra.mxu0 0.0
        %1898 = vmatprep.subr.mxu0 0.0
        %1899 = vmatpush1.msra.mxu0 0.0
        %1900 = vmatprep.subr.mxu0 0.0
        %1901 = vmatpush1.msra.mxu0 0.0
        %1902 = vmatprep.subr.mxu0 0.0
        %1903 = vmatpush1.msra.mxu0 0.0
        %1904 = vmatprep.subr.mxu0 0.0
        %1905 = vmatpush1.msra.mxu0 0.0
        %1906 = vmatprep.subr.mxu0 0.0
        %1907 = vmatpush1.msra.mxu0 0.0
        %1908 = vmatprep.subr.mxu0 0.0
        %1909 = vmatpush1.msra.mxu0 0.0
        %1910 = vmatprep.subr.mxu0 0.0
        %1911 = vmatpush1.msra.mxu0 0.0
        %1912 = vmatprep.subr.mxu0 0.0
        %1913 = vmatpush1.msra.mxu0 0.0
        %1914 = vmatprep.subr.mxu0 0.0
        %1915 = vmatpush1.msra.mxu0 0.0
        %1916 = vmatprep.subr.mxu0 0.0
        %1917 = vmatpush1.msra.mxu0 0.0
        %1918 = vmatprep.subr.mxu0 0.0
        %1919 = vmatpush1.msra.mxu0 0.0
        %1920 = vmatprep.subr.mxu0 0.0
        %1921 = vmatpush1.msra.mxu0 0.0
        %1922 = vmatprep.subr.mxu0 0.0
        %1923 = vmatpush1.msra.mxu0 0.0
        %1924 = vmatprep.subr.mxu0 0.0
        %1925 = vmatpush1.msra.mxu0 0.0
        %1926 = vmatprep.subr.mxu0 0.0
        %1927 = vmatpush1.msra.mxu0 0.0
        %1928 = vmatprep.subr.mxu0 0.0
        %1929 = vmatpush1.msra.mxu0 0.0
        %1930 = vmatprep.subr.mxu0 0.0
        %1931 = vmatpush1.msra.mxu0 0.0
        %1932 = vmatprep.subr.mxu0 0.0
        %1933 = vmatpush1.msra.mxu0 0.0
        %1934 = vmatprep.subr.mxu0 0.0
        %1935 = vmatpush1.msra.mxu0 0.0
        %1936 = vmatprep.subr.mxu0 0.0
        %1937 = vmatpush1.msra.mxu0 0.0
        %1938 = vmatprep.subr.mxu0 0.0
        %1939 = vmatpush1.msra.mxu0 0.0
        %1940 = vmatprep.subr.mxu0 0.0
        %1941 = vmatpush1.msra.mxu0 0.0
        %1942 = vmatprep.subr.mxu0 0.0
        %1943 = vmatpush1.msra.mxu0 0.0
        %1944 = vmatprep.subr.mxu0 0.0
        %1945 = vmatpush1.msra.mxu0 0.0
        %1946 = vmatprep.subr.mxu0 0.0
        %1947 = vmatpush1.msra.mxu0 0.0
        %1948 = vmatprep.subr.mxu0 0.0
        %1949 = vmatpush1.msra.mxu0 0.0
        %1950 = vmatprep.subr.mxu0 0.0
        %1951 = vmatpush1.msra.mxu0 0.0
        %1952 = vmatprep.mubr.f32.mxu0 0.0
        %1953 = vmatmul.mubr.f32.gmra.mrb[0].mxu0 %v1788
        %v1954 = vpop.f32.mrb[0].mxu0
        %v1955 = vadd.f32 %v1866, %v1954
        %v1956 = vpop.f32.mrb[0].mxu0
        %v1957 = vadd.f32 %v1868, %v1956
        %1958 = vmatprep.mubr.f32.mxu0 0.0
        %1959 = vmatmul.mubr.f32.gmra.mrb[0].mxu0 %v1791
        %v1960 = vpop.f32.mrb[0].mxu0
        %v1961 = vadd.f32 %v1872, %v1960
        %v1962 = vpop.f32.mrb[0].mxu0
        %v1963 = vadd.f32 %v1874, %v1962
        %1964 = vmatprep.mubr.f32.mxu0 0.0
        %1965 = vmatmul.mubr.f32.gmra.mrb[0].mxu0 %v1794
        %v1966 = vpop.f32.mrb[0].mxu0
        %v1967 = vadd.f32 %v1878, %v1966
        %v1968 = vpop.f32.mrb[0].mxu0
        %v1969 = vadd.f32 %v1880, %v1968
        %1970 = vmatprep.mubr.f32.mxu0 0.0
        %1971 = vmatmul.mubr.f32.gmra.mrb[0].mxu0 %v1797
        %v1972 = vpop.f32.mrb[0].mxu0
        %v1973 = vadd.f32 %v1884, %v1972
        %v1974 = vpop.f32.mrb[0].mxu0
        %v1975 = vadd.f32 %v1886, %v1974
        %1976 = vdwg.mxu0
        %v1977 = vmul.f32 %v1955, 0.1
        %v1978 = vmul.f32 %v1957, 0.1
        %v1979 = vmul.f32 %v1961, 0.1
        %v1980 = vmul.f32 %v1963, 0.1
        %v1981 = vmul.f32 %v1967, 0.1
        %v1982 = vmul.f32 %v1969, 0.1
        %v1983 = vmul.f32 %v1973, 0.1
        %v1984 = vmul.f32 %v1975, 0.1
        %v1985 = vadd.f32 %v1977, %v1250
        %v1986 = vadd.f32 %v1978, %v1237
        %v1987 = vadd.f32 %v1979, %v1251
        %v1988 = vadd.f32 %v1980, %v1241
        %v1989 = vadd.f32 %v1981, %v1252
        %v1990 = vadd.f32 %v1982, %v1245
        %v1991 = vadd.f32 %v1983, %v1253
        %v1992 = vadd.f32 %v1984, %v1249
        %s1993 = sadd.s32 %s988, 4294967284
        %v1994 = vstv %s1993
        %v1995 = vadd.s32 %v1994, %v991
        %v1996 = vadd.s32 %v1994, %v992
        %vm1997 = vcmp.ge.s32.totalorder %v1995, 0
        %vm1998 = vcmp.ge.s32.totalorder %v1996, 0
        %vm1999 = vcmp.lt.s32.totalorder %v1995, 400
        %vm2000 = vcmp.lt.s32.totalorder %v1996, 400
        %vm2001 = vmand %vm1997, %vm1999
        %vm2002 = vmand %vm1998, %vm2000
        %v2003 = vsel %vm2001, 1, 0
        %v2004 = vsel %vm2002, 1, 0
        %vm2005 = vcmp.eq.s32.totalorder %v2003, 1
        %vm2006 = vcmp.eq.s32.totalorder %v2004, 1
        %v2007 = vsel %vm2005, %v1985, 0.0
        %v2008 = vsel %vm2006, %v1986, 0.0
        %v2009 = vsel %vm2005, %v1987, 0.0
        %v2010 = vsel %vm2006, %v1988, 0.0
        %v2011 = vsel %vm2005, %v1989, 0.0
        %v2012 = vsel %vm2006, %v1990, 0.0
        %v2013 = vsel %vm2005, %v1991, 0.0
        %v2014 = vsel %vm2006, %v1992, 0.0
        %s2015 = scalar_lea.vmem %s3, 96
        %v2016 = vld [vmem:[%s2015] sm:$0xff]
        %v2017 = vld [vmem:[%s2015 + $0x8] sm:$0xff]
        %v2018 = vld [vmem:[%s2015 + $0x10] sm:$0xff]
        %v2019 = vld [vmem:[%s2015 + $0x18] sm:$0xff]
        %v2020 = vld [vmem:[%s2015 + $0x20] sm:$0xff]
        %v2021 = vld [vmem:[%s2015 + $0x28] sm:$0xff]
        %v2022 = vld [vmem:[%s2015 + $0x30] sm:$0xff]
        %v2023 = vld [vmem:[%s2015 + $0x38] sm:$0xff]
        %v2024 = vld [vmem:[%s2015 + $0x40] sm:$0xff]
        %v2025 = vld [vmem:[%s2015 + $0x48] sm:$0xff]
        %v2026 = vld [vmem:[%s2015 + $0x50] sm:$0xff]
        %v2027 = vld [vmem:[%s2015 + $0x58] sm:$0xff]
        %s2028 = scalar_lea.vmem %s4, 32
        %v2029 = vld [vmem:[%s2028] sm:$0xff]
        %v2030 = vld [vmem:[%s2028 + $0x8] sm:$0xff]
        %v2031 = vld [vmem:[%s2028 + $0x10] sm:$0xff]
        %v2032 = vld [vmem:[%s2028 + $0x18] sm:$0xff]
        %2041 = vrot.lane.b32.xlu0 %v2007, 127
        %v2042 = vpop.permute.xlu0 %2041
        %2043 = vrot.lane.b32.xlu0 %v2008, 127
        %v2044 = vpop.permute.xlu0 %2043
        %2045 = vrot.lane.b32.xlu0 %v2009, 127
        %v2046 = vpop.permute.xlu0 %2045
        %2047 = vrot.lane.b32.xlu0 %v2010, 127
        %v2048 = vpop.permute.xlu0 %2047
        %2049 = vrot.lane.b32.xlu0 %v2011, 127
        %v2050 = vpop.permute.xlu0 %2049
        %2051 = vrot.lane.b32.xlu0 %v2012, 127
        %v2052 = vpop.permute.xlu0 %2051
        %2053 = vrot.lane.b32.xlu0 %v2013, 127
        %v2054 = vpop.permute.xlu0 %2053
        %2055 = vrot.lane.b32.xlu0 %v2014, 127
        %v2056 = vpop.permute.xlu0 %2055
        %v2057 = vsel %vm456, %v2042, %v2044
        %v2058 = vsel %vm456, %v2046, %v2048
        %v2059 = vsel %vm456, %v2050, %v2052
        %v2060 = vsel %vm456, %v2054, %v2056
        %2069 = vrot.lane.b32.xlu0 %v2007, 126
        %v2070 = vpop.permute.xlu0 %2069
        %2071 = vrot.lane.b32.xlu0 %v2008, 126
        %v2072 = vpop.permute.xlu0 %2071
        %2073 = vrot.lane.b32.xlu0 %v2009, 126
        %v2074 = vpop.permute.xlu0 %2073
        %2075 = vrot.lane.b32.xlu0 %v2010, 126
        %v2076 = vpop.permute.xlu0 %2075
        %2077 = vrot.lane.b32.xlu0 %v2011, 126
        %v2078 = vpop.permute.xlu0 %2077
        %2079 = vrot.lane.b32.xlu0 %v2012, 126
        %v2080 = vpop.permute.xlu0 %2079
        %2081 = vrot.lane.b32.xlu0 %v2013, 126
        %v2082 = vpop.permute.xlu0 %2081
        %2083 = vrot.lane.b32.xlu0 %v2014, 126
        %v2084 = vpop.permute.xlu0 %2083
        %v2085 = vsel %vm525, %v2070, %v2072
        %v2086 = vsel %vm525, %v2074, %v2076
        %v2087 = vsel %vm525, %v2078, %v2080
        %v2088 = vsel %vm525, %v2082, %v2084
        %2097 = vrot.lane.b32.xlu0 %v2007, 125
        %v2098 = vpop.permute.xlu0 %2097
        %2099 = vrot.lane.b32.xlu0 %v2008, 125
        %v2100 = vpop.permute.xlu0 %2099
        %2101 = vrot.lane.b32.xlu0 %v2009, 125
        %v2102 = vpop.permute.xlu0 %2101
        %2103 = vrot.lane.b32.xlu0 %v2010, 125
        %v2104 = vpop.permute.xlu0 %2103
        %2105 = vrot.lane.b32.xlu0 %v2011, 125
        %v2106 = vpop.permute.xlu0 %2105
        %2107 = vrot.lane.b32.xlu0 %v2012, 125
        %v2108 = vpop.permute.xlu0 %2107
        %2109 = vrot.lane.b32.xlu0 %v2013, 125
        %v2110 = vpop.permute.xlu0 %2109
        %2111 = vrot.lane.b32.xlu0 %v2014, 125
        %v2112 = vpop.permute.xlu0 %2111
        %v2113 = vsel %vm594, %v2098, %v2100
        %v2114 = vsel %vm594, %v2102, %v2104
        %v2115 = vsel %vm594, %v2106, %v2108
        %v2116 = vsel %vm594, %v2110, %v2112
        %2125 = vrot.lane.b32.xlu0 %v2007, 124
        %v2126 = vpop.permute.xlu0 %2125
        %2127 = vrot.lane.b32.xlu0 %v2008, 124
        %v2128 = vpop.permute.xlu0 %2127
        %2129 = vrot.lane.b32.xlu0 %v2009, 124
        %v2130 = vpop.permute.xlu0 %2129
        %2131 = vrot.lane.b32.xlu0 %v2010, 124
        %v2132 = vpop.permute.xlu0 %2131
        %2133 = vrot.lane.b32.xlu0 %v2011, 124
        %v2134 = vpop.permute.xlu0 %2133
        %2135 = vrot.lane.b32.xlu0 %v2012, 124
        %v2136 = vpop.permute.xlu0 %2135
        %2137 = vrot.lane.b32.xlu0 %v2013, 124
        %v2138 = vpop.permute.xlu0 %2137
        %2139 = vrot.lane.b32.xlu0 %v2014, 124
        %v2140 = vpop.permute.xlu0 %2139
        %v2141 = vsel %vm663, %v2126, %v2128
        %v2142 = vsel %vm663, %v2130, %v2132
        %v2143 = vsel %vm663, %v2134, %v2136
        %v2144 = vsel %vm663, %v2138, %v2140
        %2153 = vrot.lane.b32.xlu0 %v2007, 123
        %v2154 = vpop.permute.xlu0 %2153
        %2155 = vrot.lane.b32.xlu0 %v2008, 123
        %v2156 = vpop.permute.xlu0 %2155
        %2157 = vrot.lane.b32.xlu0 %v2009, 123
        %v2158 = vpop.permute.xlu0 %2157
        %2159 = vrot.lane.b32.xlu0 %v2010, 123
        %v2160 = vpop.permute.xlu0 %2159
        %2161 = vrot.lane.b32.xlu0 %v2011, 123
        %v2162 = vpop.permute.xlu0 %2161
        %2163 = vrot.lane.b32.xlu0 %v2012, 123
        %v2164 = vpop.permute.xlu0 %2163
        %2165 = vrot.lane.b32.xlu0 %v2013, 123
        %v2166 = vpop.permute.xlu0 %2165
        %2167 = vrot.lane.b32.xlu0 %v2014, 123
        %v2168 = vpop.permute.xlu0 %2167
        %v2169 = vsel %vm732, %v2154, %v2156
        %v2170 = vsel %vm732, %v2158, %v2160
        %v2171 = vsel %vm732, %v2162, %v2164
        %v2172 = vsel %vm732, %v2166, %v2168
        %2181 = vrot.lane.b32.xlu0 %v2007, 122
        %v2182 = vpop.permute.xlu0 %2181
        %2183 = vrot.lane.b32.xlu0 %v2008, 122
        %v2184 = vpop.permute.xlu0 %2183
        %2185 = vrot.lane.b32.xlu0 %v2009, 122
        %v2186 = vpop.permute.xlu0 %2185
        %2187 = vrot.lane.b32.xlu0 %v2010, 122
        %v2188 = vpop.permute.xlu0 %2187
        %2189 = vrot.lane.b32.xlu0 %v2011, 122
        %v2190 = vpop.permute.xlu0 %2189
        %2191 = vrot.lane.b32.xlu0 %v2012, 122
        %v2192 = vpop.permute.xlu0 %2191
        %2193 = vrot.lane.b32.xlu0 %v2013, 122
        %v2194 = vpop.permute.xlu0 %2193
        %2195 = vrot.lane.b32.xlu0 %v2014, 122
        %v2196 = vpop.permute.xlu0 %2195
        %v2197 = vsel %vm801, %v2182, %v2184
        %v2198 = vsel %vm801, %v2186, %v2188
        %v2199 = vsel %vm801, %v2190, %v2192
        %v2200 = vsel %vm801, %v2194, %v2196
        %2209 = vrot.lane.b32.xlu0 %v2007, 121
        %v2210 = vpop.permute.xlu0 %2209
        %2211 = vrot.lane.b32.xlu0 %v2008, 121
        %v2212 = vpop.permute.xlu0 %2211
        %2213 = vrot.lane.b32.xlu0 %v2009, 121
        %v2214 = vpop.permute.xlu0 %2213
        %2215 = vrot.lane.b32.xlu0 %v2010, 121
        %v2216 = vpop.permute.xlu0 %2215
        %2217 = vrot.lane.b32.xlu0 %v2011, 121
        %v2218 = vpop.permute.xlu0 %2217
        %2219 = vrot.lane.b32.xlu0 %v2012, 121
        %v2220 = vpop.permute.xlu0 %2219
        %2221 = vrot.lane.b32.xlu0 %v2013, 121
        %v2222 = vpop.permute.xlu0 %2221
        %2223 = vrot.lane.b32.xlu0 %v2014, 121
        %v2224 = vpop.permute.xlu0 %2223
        %v2225 = vsel %vm870, %v2210, %v2212
        %v2226 = vsel %vm870, %v2214, %v2216
        %v2227 = vsel %vm870, %v2218, %v2220
        %v2228 = vsel %vm870, %v2222, %v2224
        %2237 = vrot.lane.b32.xlu0 %v2007, 120
        %v2238 = vpop.permute.xlu0 %2237
        %2239 = vrot.lane.b32.xlu0 %v2008, 120
        %v2240 = vpop.permute.xlu0 %2239
        %2241 = vrot.lane.b32.xlu0 %v2009, 120
        %v2242 = vpop.permute.xlu0 %2241
        %2243 = vrot.lane.b32.xlu0 %v2010, 120
        %v2244 = vpop.permute.xlu0 %2243
        %2245 = vrot.lane.b32.xlu0 %v2011, 120
        %v2246 = vpop.permute.xlu0 %2245
        %2247 = vrot.lane.b32.xlu0 %v2012, 120
        %v2248 = vpop.permute.xlu0 %2247
        %2249 = vrot.lane.b32.xlu0 %v2013, 120
        %v2250 = vpop.permute.xlu0 %2249
        %2251 = vrot.lane.b32.xlu0 %v2014, 120
        %v2252 = vpop.permute.xlu0 %2251
        %v2253 = vsel %vm939, %v2238, %v2240
        %v2254 = vsel %vm939, %v2242, %v2244
        %v2255 = vsel %vm939, %v2246, %v2248
        %v2256 = vsel %vm939, %v2250, %v2252
        %2266 = vset.pattern.permute.xlu0 0
        %2267 = vperm.xlu0 %2266, %v2029
        %v2268 = vpop.permute.xlu0 %2267
        %2271 = vset.pattern.permute.xlu0 0
        %2272 = vperm.xlu0 %2271, %v2030
        %v2273 = vpop.permute.xlu0 %2272
        %2276 = vset.pattern.permute.xlu0 0
        %2277 = vperm.xlu0 %2276, %v2031
        %v2278 = vpop.permute.xlu0 %2277
        %2281 = vset.pattern.permute.xlu0 0
        %2282 = vperm.xlu0 %2281, %v2032
        %v2283 = vpop.permute.xlu0 %2282
        %v2286 = vsel %vm1282, %v2018, 0
        %v2289 = vsel %vm1282, %v2021, 0
        %v2292 = vsel %vm1282, %v2024, 0
        %v2295 = vsel %vm1282, %v2027, 0
        %2297 = vmatprep.subr.mxu0 %v2008
        %2298 = vmatpush1.msra.mxu0 %v2007
        %2299 = vmatprep.subr.mxu0 %v2010
        %2300 = vmatpush1.msra.mxu0 %v2009
        %2301 = vmatprep.subr.mxu0 %v2012
        %2302 = vmatpush1.msra.mxu0 %v2011
        %2303 = vmatprep.subr.mxu0 %v2014
        %2304 = vmatpush1.msra.mxu0 %v2013
        %2305 = vmatprep.subr.mxu0 %v2044
        %2306 = vmatpush1.msra.mxu0 %v2057
        %2307 = vmatprep.subr.mxu0 %v2048
        %2308 = vmatpush1.msra.mxu0 %v2058
        %2309 = vmatprep.subr.mxu0 %v2052
        %2310 = vmatpush1.msra.mxu0 %v2059
        %2311 = vmatprep.subr.mxu0 %v2056
        %2312 = vmatpush1.msra.mxu0 %v2060
        %2313 = vmatprep.subr.mxu0 %v2072
        %2314 = vmatpush1.msra.mxu0 %v2085
        %2315 = vmatprep.subr.mxu0 %v2076
        %2316 = vmatpush1.msra.mxu0 %v2086
        %2317 = vmatprep.subr.mxu0 %v2080
        %2318 = vmatpush1.msra.mxu0 %v2087
        %2319 = vmatprep.subr.mxu0 %v2084
        %2320 = vmatpush1.msra.mxu0 %v2088
        %2321 = vmatprep.subr.mxu0 %v2100
        %2322 = vmatpush1.msra.mxu0 %v2113
        %2323 = vmatprep.subr.mxu0 %v2104
        %2324 = vmatpush1.msra.mxu0 %v2114
        %2325 = vmatprep.subr.mxu0 %v2108
        %2326 = vmatpush1.msra.mxu0 %v2115
        %2327 = vmatprep.subr.mxu0 %v2112
        %2328 = vmatpush1.msra.mxu0 %v2116
        %2329 = vmatprep.subr.mxu0 %v2128
        %2330 = vmatpush1.msra.mxu0 %v2141
        %2331 = vmatprep.subr.mxu0 %v2132
        %2332 = vmatpush1.msra.mxu0 %v2142
        %2333 = vmatprep.subr.mxu0 %v2136
        %2334 = vmatpush1.msra.mxu0 %v2143
        %2335 = vmatprep.subr.mxu0 %v2140
        %2336 = vmatpush1.msra.mxu0 %v2144
        %2337 = vmatprep.subr.mxu0 %v2156
        %2338 = vmatpush1.msra.mxu0 %v2169
        %2339 = vmatprep.subr.mxu0 %v2160
        %2340 = vmatpush1.msra.mxu0 %v2170
        %2341 = vmatprep.subr.mxu0 %v2164
        %2342 = vmatpush1.msra.mxu0 %v2171
        %2343 = vmatprep.subr.mxu0 %v2168
        %2344 = vmatpush1.msra.mxu0 %v2172
        %2345 = vmatprep.subr.mxu0 %v2184
        %2346 = vmatpush1.msra.mxu0 %v2197
        %2347 = vmatprep.subr.mxu0 %v2188
        %2348 = vmatpush1.msra.mxu0 %v2198
        %2349 = vmatprep.subr.mxu0 %v2192
        %2350 = vmatpush1.msra.mxu0 %v2199
        %2351 = vmatprep.subr.mxu0 %v2196
        %2352 = vmatpush1.msra.mxu0 %v2200
        %2353 = vmatprep.subr.mxu0 %v2212
        %2354 = vmatpush1.msra.mxu0 %v2225
        %2355 = vmatprep.subr.mxu0 %v2216
        %2356 = vmatpush1.msra.mxu0 %v2226
        %2357 = vmatprep.subr.mxu0 %v2220
        %2358 = vmatpush1.msra.mxu0 %v2227
        %2359 = vmatprep.subr.mxu0 %v2224
        %2360 = vmatpush1.msra.mxu0 %v2228
        %2361 = vmatprep.mubr.f32.mxu0 %v2017
        %2362 = vmatmul.mubr.f32.gmra.mrb[0].mxu0 %v2016
        %v2363 = vpop.f32.mrb[0].mxu0
        %v2364 = vadd.f32 %v2268, %v2363
        %v2365 = vpop.f32.mrb[0].mxu0
        %v2366 = vadd.f32 %v2268, %v2365
        %2367 = vmatprep.mubr.f32.mxu0 %v2020
        %2368 = vmatmul.mubr.f32.gmra.mrb[0].mxu0 %v2019
        %v2369 = vpop.f32.mrb[0].mxu0
        %v2370 = vadd.f32 %v2273, %v2369
        %v2371 = vpop.f32.mrb[0].mxu0
        %v2372 = vadd.f32 %v2273, %v2371
        %2373 = vmatprep.mubr.f32.mxu0 %v2023
        %2374 = vmatmul.mubr.f32.gmra.mrb[0].mxu0 %v2022
        %v2375 = vpop.f32.mrb[0].mxu0
        %v2376 = vadd.f32 %v2278, %v2375
        %v2377 = vpop.f32.mrb[0].mxu0
        %v2378 = vadd.f32 %v2278, %v2377
        %2379 = vmatprep.mubr.f32.mxu0 %v2026
        %2380 = vmatmul.mubr.f32.gmra.mrb[0].mxu0 %v2025
        %v2381 = vpop.f32.mrb[0].mxu0
        %v2382 = vadd.f32 %v2283, %v2381
        %v2383 = vpop.f32.mrb[0].mxu0
        %v2384 = vadd.f32 %v2283, %v2383
        %2385 = vdwg.mxu0
        %2386 = vmatprep.subr.mxu0 %v2240
        %2387 = vmatpush1.msra.mxu0 %v2253
        %2388 = vmatprep.subr.mxu0 %v2244
        %2389 = vmatpush1.msra.mxu0 %v2254
        %2390 = vmatprep.subr.mxu0 %v2248
        %2391 = vmatpush1.msra.mxu0 %v2255
        %2392 = vmatprep.subr.mxu0 %v2252
        %2393 = vmatpush1.msra.mxu0 %v2256
        %2394 = vmatprep.subr.mxu0 0.0
        %2395 = vmatpush1.msra.mxu0 0.0
        %2396 = vmatprep.subr.mxu0 0.0
        %2397 = vmatpush1.msra.mxu0 0.0
        %2398 = vmatprep.subr.mxu0 0.0
        %2399 = vmatpush1.msra.mxu0 0.0
        %2400 = vmatprep.subr.mxu0 0.0
        %2401 = vmatpush1.msra.mxu0 0.0
        %2402 = vmatprep.subr.mxu0 0.0
        %2403 = vmatpush1.msra.mxu0 0.0
        %2404 = vmatprep.subr.mxu0 0.0
        %2405 = vmatpush1.msra.mxu0 0.0
        %2406 = vmatprep.subr.mxu0 0.0
        %2407 = vmatpush1.msra.mxu0 0.0
        %2408 = vmatprep.subr.mxu0 0.0
        %2409 = vmatpush1.msra.mxu0 0.0
        %2410 = vmatprep.subr.mxu0 0.0
        %2411 = vmatpush1.msra.mxu0 0.0
        %2412 = vmatprep.subr.mxu0 0.0
        %2413 = vmatpush1.msra.mxu0 0.0
        %2414 = vmatprep.subr.mxu0 0.0
        %2415 = vmatpush1.msra.mxu0 0.0
        %2416 = vmatprep.subr.mxu0 0.0
        %2417 = vmatpush1.msra.mxu0 0.0
        %2418 = vmatprep.subr.mxu0 0.0
        %2419 = vmatpush1.msra.mxu0 0.0
        %2420 = vmatprep.subr.mxu0 0.0
        %2421 = vmatpush1.msra.mxu0 0.0
        %2422 = vmatprep.subr.mxu0 0.0
        %2423 = vmatpush1.msra.mxu0 0.0
        %2424 = vmatprep.subr.mxu0 0.0
        %2425 = vmatpush1.msra.mxu0 0.0
        %2426 = vmatprep.subr.mxu0 0.0
        %2427 = vmatpush1.msra.mxu0 0.0
        %2428 = vmatprep.subr.mxu0 0.0
        %2429 = vmatpush1.msra.mxu0 0.0
        %2430 = vmatprep.subr.mxu0 0.0
        %2431 = vmatpush1.msra.mxu0 0.0
        %2432 = vmatprep.subr.mxu0 0.0
        %2433 = vmatpush1.msra.mxu0 0.0
        %2434 = vmatprep.subr.mxu0 0.0
        %2435 = vmatpush1.msra.mxu0 0.0
        %2436 = vmatprep.subr.mxu0 0.0
        %2437 = vmatpush1.msra.mxu0 0.0
        %2438 = vmatprep.subr.mxu0 0.0
        %2439 = vmatpush1.msra.mxu0 0.0
        %2440 = vmatprep.subr.mxu0 0.0
        %2441 = vmatpush1.msra.mxu0 0.0
        %2442 = vmatprep.subr.mxu0 0.0
        %2443 = vmatpush1.msra.mxu0 0.0
        %2444 = vmatprep.subr.mxu0 0.0
        %2445 = vmatpush1.msra.mxu0 0.0
        %2446 = vmatprep.subr.mxu0 0.0
        %2447 = vmatpush1.msra.mxu0 0.0
        %2448 = vmatprep.subr.mxu0 0.0
        %2449 = vmatpush1.msra.mxu0 0.0
        %2450 = vmatprep.mubr.f32.mxu0 0.0
        %2451 = vmatmul.mubr.f32.gmra.mrb[0].mxu0 %v2286
        %v2452 = vpop.f32.mrb[0].mxu0
        %v2453 = vadd.f32 %v2364, %v2452
        %v2454 = vpop.f32.mrb[0].mxu0
        %v2455 = vadd.f32 %v2366, %v2454
        %2456 = vmatprep.mubr.f32.mxu0 0.0
        %2457 = vmatmul.mubr.f32.gmra.mrb[0].mxu0 %v2289
        %v2458 = vpop.f32.mrb[0].mxu0
        %v2459 = vadd.f32 %v2370, %v2458
        %v2460 = vpop.f32.mrb[0].mxu0
        %v2461 = vadd.f32 %v2372, %v2460
        %2462 = vmatprep.mubr.f32.mxu0 0.0
        %2463 = vmatmul.mubr.f32.gmra.mrb[0].mxu0 %v2292
        %v2464 = vpop.f32.mrb[0].mxu0
        %v2465 = vadd.f32 %v2376, %v2464
        %v2466 = vpop.f32.mrb[0].mxu0
        %v2467 = vadd.f32 %v2378, %v2466
        %2468 = vmatprep.mubr.f32.mxu0 0.0
        %2469 = vmatmul.mubr.f32.gmra.mrb[0].mxu0 %v2295
        %v2470 = vpop.f32.mrb[0].mxu0
        %v2471 = vadd.f32 %v2382, %v2470
        %v2472 = vpop.f32.mrb[0].mxu0
        %v2473 = vadd.f32 %v2384, %v2472
        %2474 = vdwg.mxu0
        %vm2475 = vcmp.gt.f32.partialorder %v2453, 0.0
        %vm2476 = vcmp.gt.f32.partialorder %v2455, 0.0
        %vm2477 = vcmp.gt.f32.partialorder %v2459, 0.0
        %vm2478 = vcmp.gt.f32.partialorder %v2461, 0.0
        %vm2479 = vcmp.gt.f32.partialorder %v2465, 0.0
        %vm2480 = vcmp.gt.f32.partialorder %v2467, 0.0
        %vm2481 = vcmp.gt.f32.partialorder %v2471, 0.0
        %vm2482 = vcmp.gt.f32.partialorder %v2473, 0.0
        %v2483 = vmul.f32 %v2453, 0.2
        %v2484 = vmul.f32 %v2455, 0.2
        %v2485 = vmul.f32 %v2459, 0.2
        %v2486 = vmul.f32 %v2461, 0.2
        %v2487 = vmul.f32 %v2465, 0.2
        %v2488 = vmul.f32 %v2467, 0.2
        %v2489 = vmul.f32 %v2471, 0.2
        %v2490 = vmul.f32 %v2473, 0.2
        %v2491 = vsel %vm2475, %v2453, %v2483
        %v2492 = vsel %vm2476, %v2455, %v2484
        %v2493 = vsel %vm2477, %v2459, %v2485
        %v2494 = vsel %vm2478, %v2461, %v2486
        %v2495 = vsel %vm2479, %v2465, %v2487
        %v2496 = vsel %vm2480, %v2467, %v2488
        %v2497 = vsel %vm2481, %v2471, %v2489
        %v2498 = vsel %vm2482, %v2473, %v2490
        %s2499 = sadd.s32 %s988, 4294967288
        %v2500 = vstv %s2499
        %v2501 = vadd.s32 %v2500, %v991
        %v2502 = vadd.s32 %v2500, %v992
        %vm2503 = vcmp.ge.s32.totalorder %v2501, 0
        %vm2504 = vcmp.ge.s32.totalorder %v2502, 0
        %vm2505 = vcmp.lt.s32.totalorder %v2501, 400
        %vm2506 = vcmp.lt.s32.totalorder %v2502, 400
        %vm2507 = vmand %vm2503, %vm2505
        %vm2508 = vmand %vm2504, %vm2506
        %v2509 = vsel %vm2507, 1, 0
        %v2510 = vsel %vm2508, 1, 0
        %vm2511 = vcmp.eq.s32.totalorder %v2509, 1
        %vm2512 = vcmp.eq.s32.totalorder %v2510, 1
        %v2513 = vsel %vm2511, %v2491, 0.0
        %v2514 = vsel %vm2512, %v2492, 0.0
        %v2515 = vsel %vm2511, %v2493, 0.0
        %v2516 = vsel %vm2512, %v2494, 0.0
        %v2517 = vsel %vm2511, %v2495, 0.0
        %v2518 = vsel %vm2512, %v2496, 0.0
        %v2519 = vsel %vm2511, %v2497, 0.0
        %v2520 = vsel %vm2512, %v2498, 0.0
        %s2521 = scalar_lea.vmem %s5, 96
        %v2522 = vld [vmem:[%s2521] sm:$0xff]
        %v2523 = vld [vmem:[%s2521 + $0x8] sm:$0xff]
        %v2524 = vld [vmem:[%s2521 + $0x10] sm:$0xff]
        %v2525 = vld [vmem:[%s2521 + $0x18] sm:$0xff]
        %v2526 = vld [vmem:[%s2521 + $0x20] sm:$0xff]
        %v2527 = vld [vmem:[%s2521 + $0x28] sm:$0xff]
        %v2528 = vld [vmem:[%s2521 + $0x30] sm:$0xff]
        %v2529 = vld [vmem:[%s2521 + $0x38] sm:$0xff]
        %v2530 = vld [vmem:[%s2521 + $0x40] sm:$0xff]
        %v2531 = vld [vmem:[%s2521 + $0x48] sm:$0xff]
        %v2532 = vld [vmem:[%s2521 + $0x50] sm:$0xff]
        %v2533 = vld [vmem:[%s2521 + $0x58] sm:$0xff]
        %s2534 = scalar_lea.vmem %s6, 32
        %v2535 = vld [vmem:[%s2534] sm:$0xff]
        %v2536 = vld [vmem:[%s2534 + $0x8] sm:$0xff]
        %v2537 = vld [vmem:[%s2534 + $0x10] sm:$0xff]
        %v2538 = vld [vmem:[%s2534 + $0x18] sm:$0xff]
        %2547 = vrot.lane.b32.xlu0 %v2513, 127
        %v2548 = vpop.permute.xlu0 %2547
        %2549 = vrot.lane.b32.xlu0 %v2514, 127
        %v2550 = vpop.permute.xlu0 %2549
        %2551 = vrot.lane.b32.xlu0 %v2515, 127
        %v2552 = vpop.permute.xlu0 %2551
        %2553 = vrot.lane.b32.xlu0 %v2516, 127
        %v2554 = vpop.permute.xlu0 %2553
        %2555 = vrot.lane.b32.xlu0 %v2517, 127
        %v2556 = vpop.permute.xlu0 %2555
        %2557 = vrot.lane.b32.xlu0 %v2518, 127
        %v2558 = vpop.permute.xlu0 %2557
        %2559 = vrot.lane.b32.xlu0 %v2519, 127
        %v2560 = vpop.permute.xlu0 %2559
        %2561 = vrot.lane.b32.xlu0 %v2520, 127
        %v2562 = vpop.permute.xlu0 %2561
        %v2563 = vsel %vm456, %v2548, %v2550
        %v2564 = vsel %vm456, %v2552, %v2554
        %v2565 = vsel %vm456, %v2556, %v2558
        %v2566 = vsel %vm456, %v2560, %v2562
        %2575 = vrot.lane.b32.xlu0 %v2513, 126
        %v2576 = vpop.permute.xlu0 %2575
        %2577 = vrot.lane.b32.xlu0 %v2514, 126
        %v2578 = vpop.permute.xlu0 %2577
        %2579 = vrot.lane.b32.xlu0 %v2515, 126
        %v2580 = vpop.permute.xlu0 %2579
        %2581 = vrot.lane.b32.xlu0 %v2516, 126
        %v2582 = vpop.permute.xlu0 %2581
        %2583 = vrot.lane.b32.xlu0 %v2517, 126
        %v2584 = vpop.permute.xlu0 %2583
        %2585 = vrot.lane.b32.xlu0 %v2518, 126
        %v2586 = vpop.permute.xlu0 %2585
        %2587 = vrot.lane.b32.xlu0 %v2519, 126
        %v2588 = vpop.permute.xlu0 %2587
        %2589 = vrot.lane.b32.xlu0 %v2520, 126
        %v2590 = vpop.permute.xlu0 %2589
        %v2591 = vsel %vm525, %v2576, %v2578
        %v2592 = vsel %vm525, %v2580, %v2582
        %v2593 = vsel %vm525, %v2584, %v2586
        %v2594 = vsel %vm525, %v2588, %v2590
        %2603 = vrot.lane.b32.xlu0 %v2513, 125
        %v2604 = vpop.permute.xlu0 %2603
        %2605 = vrot.lane.b32.xlu0 %v2514, 125
        %v2606 = vpop.permute.xlu0 %2605
        %2607 = vrot.lane.b32.xlu0 %v2515, 125
        %v2608 = vpop.permute.xlu0 %2607
        %2609 = vrot.lane.b32.xlu0 %v2516, 125
        %v2610 = vpop.permute.xlu0 %2609
        %2611 = vrot.lane.b32.xlu0 %v2517, 125
        %v2612 = vpop.permute.xlu0 %2611
        %2613 = vrot.lane.b32.xlu0 %v2518, 125
        %v2614 = vpop.permute.xlu0 %2613
        %2615 = vrot.lane.b32.xlu0 %v2519, 125
        %v2616 = vpop.permute.xlu0 %2615
        %2617 = vrot.lane.b32.xlu0 %v2520, 125
        %v2618 = vpop.permute.xlu0 %2617
        %v2619 = vsel %vm594, %v2604, %v2606
        %v2620 = vsel %vm594, %v2608, %v2610
        %v2621 = vsel %vm594, %v2612, %v2614
        %v2622 = vsel %vm594, %v2616, %v2618
        %2631 = vrot.lane.b32.xlu0 %v2513, 124
        %v2632 = vpop.permute.xlu0 %2631
        %2633 = vrot.lane.b32.xlu0 %v2514, 124
        %v2634 = vpop.permute.xlu0 %2633
        %2635 = vrot.lane.b32.xlu0 %v2515, 124
        %v2636 = vpop.permute.xlu0 %2635
        %2637 = vrot.lane.b32.xlu0 %v2516, 124
        %v2638 = vpop.permute.xlu0 %2637
        %2639 = vrot.lane.b32.xlu0 %v2517, 124
        %v2640 = vpop.permute.xlu0 %2639
        %2641 = vrot.lane.b32.xlu0 %v2518, 124
        %v2642 = vpop.permute.xlu0 %2641
        %2643 = vrot.lane.b32.xlu0 %v2519, 124
        %v2644 = vpop.permute.xlu0 %2643
        %2645 = vrot.lane.b32.xlu0 %v2520, 124
        %v2646 = vpop.permute.xlu0 %2645
        %v2647 = vsel %vm663, %v2632, %v2634
        %v2648 = vsel %vm663, %v2636, %v2638
        %v2649 = vsel %vm663, %v2640, %v2642
        %v2650 = vsel %vm663, %v2644, %v2646
        %2659 = vrot.lane.b32.xlu0 %v2513, 123
        %v2660 = vpop.permute.xlu0 %2659
        %2661 = vrot.lane.b32.xlu0 %v2514, 123
        %v2662 = vpop.permute.xlu0 %2661
        %2663 = vrot.lane.b32.xlu0 %v2515, 123
        %v2664 = vpop.permute.xlu0 %2663
        %2665 = vrot.lane.b32.xlu0 %v2516, 123
        %v2666 = vpop.permute.xlu0 %2665
        %2667 = vrot.lane.b32.xlu0 %v2517, 123
        %v2668 = vpop.permute.xlu0 %2667
        %2669 = vrot.lane.b32.xlu0 %v2518, 123
        %v2670 = vpop.permute.xlu0 %2669
        %2671 = vrot.lane.b32.xlu0 %v2519, 123
        %v2672 = vpop.permute.xlu0 %2671
        %2673 = vrot.lane.b32.xlu0 %v2520, 123
        %v2674 = vpop.permute.xlu0 %2673
        %v2675 = vsel %vm732, %v2660, %v2662
        %v2676 = vsel %vm732, %v2664, %v2666
        %v2677 = vsel %vm732, %v2668, %v2670
        %v2678 = vsel %vm732, %v2672, %v2674
        %2687 = vrot.lane.b32.xlu0 %v2513, 122
        %v2688 = vpop.permute.xlu0 %2687
        %2689 = vrot.lane.b32.xlu0 %v2514, 122
        %v2690 = vpop.permute.xlu0 %2689
        %2691 = vrot.lane.b32.xlu0 %v2515, 122
        %v2692 = vpop.permute.xlu0 %2691
        %2693 = vrot.lane.b32.xlu0 %v2516, 122
        %v2694 = vpop.permute.xlu0 %2693
        %2695 = vrot.lane.b32.xlu0 %v2517, 122
        %v2696 = vpop.permute.xlu0 %2695
        %2697 = vrot.lane.b32.xlu0 %v2518, 122
        %v2698 = vpop.permute.xlu0 %2697
        %2699 = vrot.lane.b32.xlu0 %v2519, 122
        %v2700 = vpop.permute.xlu0 %2699
        %2701 = vrot.lane.b32.xlu0 %v2520, 122
        %v2702 = vpop.permute.xlu0 %2701
        %v2703 = vsel %vm801, %v2688, %v2690
        %v2704 = vsel %vm801, %v2692, %v2694
        %v2705 = vsel %vm801, %v2696, %v2698
        %v2706 = vsel %vm801, %v2700, %v2702
        %2715 = vrot.lane.b32.xlu0 %v2513, 121
        %v2716 = vpop.permute.xlu0 %2715
        %2717 = vrot.lane.b32.xlu0 %v2514, 121
        %v2718 = vpop.permute.xlu0 %2717
        %2719 = vrot.lane.b32.xlu0 %v2515, 121
        %v2720 = vpop.permute.xlu0 %2719
        %2721 = vrot.lane.b32.xlu0 %v2516, 121
        %v2722 = vpop.permute.xlu0 %2721
        %2723 = vrot.lane.b32.xlu0 %v2517, 121
        %v2724 = vpop.permute.xlu0 %2723
        %2725 = vrot.lane.b32.xlu0 %v2518, 121
        %v2726 = vpop.permute.xlu0 %2725
        %2727 = vrot.lane.b32.xlu0 %v2519, 121
        %v2728 = vpop.permute.xlu0 %2727
        %2729 = vrot.lane.b32.xlu0 %v2520, 121
        %v2730 = vpop.permute.xlu0 %2729
        %v2731 = vsel %vm870, %v2716, %v2718
        %v2732 = vsel %vm870, %v2720, %v2722
        %v2733 = vsel %vm870, %v2724, %v2726
        %v2734 = vsel %vm870, %v2728, %v2730
        %2743 = vrot.lane.b32.xlu0 %v2513, 120
        %v2744 = vpop.permute.xlu0 %2743
        %2745 = vrot.lane.b32.xlu0 %v2514, 120
        %v2746 = vpop.permute.xlu0 %2745
        %2747 = vrot.lane.b32.xlu0 %v2515, 120
        %v2748 = vpop.permute.xlu0 %2747
        %2749 = vrot.lane.b32.xlu0 %v2516, 120
        %v2750 = vpop.permute.xlu0 %2749
        %2751 = vrot.lane.b32.xlu0 %v2517, 120
        %v2752 = vpop.permute.xlu0 %2751
        %2753 = vrot.lane.b32.xlu0 %v2518, 120
        %v2754 = vpop.permute.xlu0 %2753
        %2755 = vrot.lane.b32.xlu0 %v2519, 120
        %v2756 = vpop.permute.xlu0 %2755
        %2757 = vrot.lane.b32.xlu0 %v2520, 120
        %v2758 = vpop.permute.xlu0 %2757
        %v2759 = vsel %vm939, %v2744, %v2746
        %v2760 = vsel %vm939, %v2748, %v2750
        %v2761 = vsel %vm939, %v2752, %v2754
        %v2762 = vsel %vm939, %v2756, %v2758
        %2772 = vset.pattern.permute.xlu0 0
        %2773 = vperm.xlu0 %2772, %v2535
        %v2774 = vpop.permute.xlu0 %2773
        %2777 = vset.pattern.permute.xlu0 0
        %2778 = vperm.xlu0 %2777, %v2536
        %v2779 = vpop.permute.xlu0 %2778
        %2782 = vset.pattern.permute.xlu0 0
        %2783 = vperm.xlu0 %2782, %v2537
        %v2784 = vpop.permute.xlu0 %2783
        %2787 = vset.pattern.permute.xlu0 0
        %2788 = vperm.xlu0 %2787, %v2538
        %v2789 = vpop.permute.xlu0 %2788
        %v2792 = vsel %vm1282, %v2524, 0
        %v2795 = vsel %vm1282, %v2527, 0
        %v2798 = vsel %vm1282, %v2530, 0
        %v2801 = vsel %vm1282, %v2533, 0
        %2803 = vmatprep.subr.mxu0 %v2514
        %2804 = vmatpush1.msra.mxu0 %v2513
        %2805 = vmatprep.subr.mxu0 %v2516
        %2806 = vmatpush1.msra.mxu0 %v2515
        %2807 = vmatprep.subr.mxu0 %v2518
        %2808 = vmatpush1.msra.mxu0 %v2517
        %2809 = vmatprep.subr.mxu0 %v2520
        %2810 = vmatpush1.msra.mxu0 %v2519
        %2811 = vmatprep.subr.mxu0 %v2550
        %2812 = vmatpush1.msra.mxu0 %v2563
        %2813 = vmatprep.subr.mxu0 %v2554
        %2814 = vmatpush1.msra.mxu0 %v2564
        %2815 = vmatprep.subr.mxu0 %v2558
        %2816 = vmatpush1.msra.mxu0 %v2565
        %2817 = vmatprep.subr.mxu0 %v2562
        %2818 = vmatpush1.msra.mxu0 %v2566
        %2819 = vmatprep.subr.mxu0 %v2578
        %2820 = vmatpush1.msra.mxu0 %v2591
        %2821 = vmatprep.subr.mxu0 %v2582
        %2822 = vmatpush1.msra.mxu0 %v2592
        %2823 = vmatprep.subr.mxu0 %v2586
        %2824 = vmatpush1.msra.mxu0 %v2593
        %2825 = vmatprep.subr.mxu0 %v2590
        %2826 = vmatpush1.msra.mxu0 %v2594
        %2827 = vmatprep.subr.mxu0 %v2606
        %2828 = vmatpush1.msra.mxu0 %v2619
        %2829 = vmatprep.subr.mxu0 %v2610
        %2830 = vmatpush1.msra.mxu0 %v2620
        %2831 = vmatprep.subr.mxu0 %v2614
        %2832 = vmatpush1.msra.mxu0 %v2621
        %2833 = vmatprep.subr.mxu0 %v2618
        %2834 = vmatpush1.msra.mxu0 %v2622
        %2835 = vmatprep.subr.mxu0 %v2634
        %2836 = vmatpush1.msra.mxu0 %v2647
        %2837 = vmatprep.subr.mxu0 %v2638
        %2838 = vmatpush1.msra.mxu0 %v2648
        %2839 = vmatprep.subr.mxu0 %v2642
        %2840 = vmatpush1.msra.mxu0 %v2649
        %2841 = vmatprep.subr.mxu0 %v2646
        %2842 = vmatpush1.msra.mxu0 %v2650
        %2843 = vmatprep.subr.mxu0 %v2662
        %2844 = vmatpush1.msra.mxu0 %v2675
        %2845 = vmatprep.subr.mxu0 %v2666
        %2846 = vmatpush1.msra.mxu0 %v2676
        %2847 = vmatprep.subr.mxu0 %v2670
        %2848 = vmatpush1.msra.mxu0 %v2677
        %2849 = vmatprep.subr.mxu0 %v2674
        %2850 = vmatpush1.msra.mxu0 %v2678
        %2851 = vmatprep.subr.mxu0 %v2690
        %2852 = vmatpush1.msra.mxu0 %v2703
        %2853 = vmatprep.subr.mxu0 %v2694
        %2854 = vmatpush1.msra.mxu0 %v2704
        %2855 = vmatprep.subr.mxu0 %v2698
        %2856 = vmatpush1.msra.mxu0 %v2705
        %2857 = vmatprep.subr.mxu0 %v2702
        %2858 = vmatpush1.msra.mxu0 %v2706
        %2859 = vmatprep.subr.mxu0 %v2718
        %2860 = vmatpush1.msra.mxu0 %v2731
        %2861 = vmatprep.subr.mxu0 %v2722
        %2862 = vmatpush1.msra.mxu0 %v2732
        %2863 = vmatprep.subr.mxu0 %v2726
        %2864 = vmatpush1.msra.mxu0 %v2733
        %2865 = vmatprep.subr.mxu0 %v2730
        %2866 = vmatpush1.msra.mxu0 %v2734
        %2867 = vmatprep.mubr.f32.mxu0 %v2523
        %2868 = vmatmul.mubr.f32.gmra.mrb[0].mxu0 %v2522
        %v2869 = vpop.f32.mrb[0].mxu0
        %v2870 = vadd.f32 %v2774, %v2869
        %v2871 = vpop.f32.mrb[0].mxu0
        %v2872 = vadd.f32 %v2774, %v2871
        %2873 = vmatprep.mubr.f32.mxu0 %v2526
        %2874 = vmatmul.mubr.f32.gmra.mrb[0].mxu0 %v2525
        %v2875 = vpop.f32.mrb[0].mxu0
        %v2876 = vadd.f32 %v2779, %v2875
        %v2877 = vpop.f32.mrb[0].mxu0
        %v2878 = vadd.f32 %v2779, %v2877
        %2879 = vmatprep.mubr.f32.mxu0 %v2529
        %2880 = vmatmul.mubr.f32.gmra.mrb[0].mxu0 %v2528
        %v2881 = vpop.f32.mrb[0].mxu0
        %v2882 = vadd.f32 %v2784, %v2881
        %v2883 = vpop.f32.mrb[0].mxu0
        %v2884 = vadd.f32 %v2784, %v2883
        %2885 = vmatprep.mubr.f32.mxu0 %v2532
        %2886 = vmatmul.mubr.f32.gmra.mrb[0].mxu0 %v2531
        %v2887 = vpop.f32.mrb[0].mxu0
        %v2888 = vadd.f32 %v2789, %v2887
        %v2889 = vpop.f32.mrb[0].mxu0
        %v2890 = vadd.f32 %v2789, %v2889
        %2891 = vdwg.mxu0
        %2892 = vmatprep.subr.mxu0 %v2746
        %2893 = vmatpush1.msra.mxu0 %v2759
        %2894 = vmatprep.subr.mxu0 %v2750
        %2895 = vmatpush1.msra.mxu0 %v2760
        %2896 = vmatprep.subr.mxu0 %v2754
        %2897 = vmatpush1.msra.mxu0 %v2761
        %2898 = vmatprep.subr.mxu0 %v2758
        %2899 = vmatpush1.msra.mxu0 %v2762
        %2900 = vmatprep.subr.mxu0 0.0
        %2901 = vmatpush1.msra.mxu0 0.0
        %2902 = vmatprep.subr.mxu0 0.0
        %2903 = vmatpush1.msra.mxu0 0.0
        %2904 = vmatprep.subr.mxu0 0.0
        %2905 = vmatpush1.msra.mxu0 0.0
        %2906 = vmatprep.subr.mxu0 0.0
        %2907 = vmatpush1.msra.mxu0 0.0
        %2908 = vmatprep.subr.mxu0 0.0
        %2909 = vmatpush1.msra.mxu0 0.0
        %2910 = vmatprep.subr.mxu0 0.0
        %2911 = vmatpush1.msra.mxu0 0.0
        %2912 = vmatprep.subr.mxu0 0.0
        %2913 = vmatpush1.msra.mxu0 0.0
        %2914 = vmatprep.subr.mxu0 0.0
        %2915 = vmatpush1.msra.mxu0 0.0
        %2916 = vmatprep.subr.mxu0 0.0
        %2917 = vmatpush1.msra.mxu0 0.0
        %2918 = vmatprep.subr.mxu0 0.0
        %2919 = vmatpush1.msra.mxu0 0.0
        %2920 = vmatprep.subr.mxu0 0.0
        %2921 = vmatpush1.msra.mxu0 0.0
        %2922 = vmatprep.subr.mxu0 0.0
        %2923 = vmatpush1.msra.mxu0 0.0
        %2924 = vmatprep.subr.mxu0 0.0
        %2925 = vmatpush1.msra.mxu0 0.0
        %2926 = vmatprep.subr.mxu0 0.0
        %2927 = vmatpush1.msra.mxu0 0.0
        %2928 = vmatprep.subr.mxu0 0.0
        %2929 = vmatpush1.msra.mxu0 0.0
        %2930 = vmatprep.subr.mxu0 0.0
        %2931 = vmatpush1.msra.mxu0 0.0
        %2932 = vmatprep.subr.mxu0 0.0
        %2933 = vmatpush1.msra.mxu0 0.0
        %2934 = vmatprep.subr.mxu0 0.0
        %2935 = vmatpush1.msra.mxu0 0.0
        %2936 = vmatprep.subr.mxu0 0.0
        %2937 = vmatpush1.msra.mxu0 0.0
        %2938 = vmatprep.subr.mxu0 0.0
        %2939 = vmatpush1.msra.mxu0 0.0
        %2940 = vmatprep.subr.mxu0 0.0
        %2941 = vmatpush1.msra.mxu0 0.0
        %2942 = vmatprep.subr.mxu0 0.0
        %2943 = vmatpush1.msra.mxu0 0.0
        %2944 = vmatprep.subr.mxu0 0.0
        %2945 = vmatpush1.msra.mxu0 0.0
        %2946 = vmatprep.subr.mxu0 0.0
        %2947 = vmatpush1.msra.mxu0 0.0
        %2948 = vmatprep.subr.mxu0 0.0
        %2949 = vmatpush1.msra.mxu0 0.0
        %2950 = vmatprep.subr.mxu0 0.0
        %2951 = vmatpush1.msra.mxu0 0.0
        %2952 = vmatprep.subr.mxu0 0.0
        %2953 = vmatpush1.msra.mxu0 0.0
        %2954 = vmatprep.subr.mxu0 0.0
        %2955 = vmatpush1.msra.mxu0 0.0
        %2956 = vmatprep.mubr.f32.mxu0 0.0
        %2957 = vmatmul.mubr.f32.gmra.mrb[0].mxu0 %v2792
        %v2958 = vpop.f32.mrb[0].mxu0
        %v2959 = vadd.f32 %v2870, %v2958
        %v2960 = vpop.f32.mrb[0].mxu0
        %v2961 = vadd.f32 %v2872, %v2960
        %2962 = vmatprep.mubr.f32.mxu0 0.0
        %2963 = vmatmul.mubr.f32.gmra.mrb[0].mxu0 %v2795
        %v2964 = vpop.f32.mrb[0].mxu0
        %v2965 = vadd.f32 %v2876, %v2964
        %v2966 = vpop.f32.mrb[0].mxu0
        %v2967 = vadd.f32 %v2878, %v2966
        %2968 = vmatprep.mubr.f32.mxu0 0.0
        %2969 = vmatmul.mubr.f32.gmra.mrb[0].mxu0 %v2798
        %v2970 = vpop.f32.mrb[0].mxu0
        %v2971 = vadd.f32 %v2882, %v2970
        %v2972 = vpop.f32.mrb[0].mxu0
        %v2973 = vadd.f32 %v2884, %v2972
        %2974 = vmatprep.mubr.f32.mxu0 0.0
        %2975 = vmatmul.mubr.f32.gmra.mrb[0].mxu0 %v2801
        %v2976 = vpop.f32.mrb[0].mxu0
        %v2977 = vadd.f32 %v2888, %v2976
        %v2978 = vpop.f32.mrb[0].mxu0
        %v2979 = vadd.f32 %v2890, %v2978
        %2980 = vdwg.mxu0
        %v2981 = vmul.f32 %v2959, 0.1
        %v2982 = vmul.f32 %v2961, 0.1
        %v2983 = vmul.f32 %v2965, 0.1
        %v2984 = vmul.f32 %v2967, 0.1
        %v2985 = vmul.f32 %v2971, 0.1
        %v2986 = vmul.f32 %v2973, 0.1
        %v2987 = vmul.f32 %v2977, 0.1
        %v2988 = vmul.f32 %v2979, 0.1
        %v2989 = vadd.f32 %v2981, %v2253
        %v2990 = vadd.f32 %v2982, %v2240
        %v2991 = vadd.f32 %v2983, %v2254
        %v2992 = vadd.f32 %v2984, %v2244
        %v2993 = vadd.f32 %v2985, %v2255
        %v2994 = vadd.f32 %v2986, %v2248
        %v2995 = vadd.f32 %v2987, %v2256
        %v2996 = vadd.f32 %v2988, %v2252
        %s2997 = sadd.s32 %s988, 4294967292
        %v2998 = vstv %s2997
        %v2999 = vadd.s32 %v2998, %v991
        %v3000 = vadd.s32 %v2998, %v992
        %vm3001 = vcmp.ge.s32.totalorder %v2999, 0
        %vm3002 = vcmp.ge.s32.totalorder %v3000, 0
        %vm3003 = vcmp.lt.s32.totalorder %v2999, 400
        %vm3004 = vcmp.lt.s32.totalorder %v3000, 400
        %vm3005 = vmand %vm3001, %vm3003
        %vm3006 = vmand %vm3002, %vm3004
        %v3007 = vsel %vm3005, 1, 0
        %v3008 = vsel %vm3006, 1, 0
        %vm3009 = vcmp.eq.s32.totalorder %v3007, 1
        %vm3010 = vcmp.eq.s32.totalorder %v3008, 1
        %v3011 = vsel %vm3009, %v2989, 0.0
        %v3012 = vsel %vm3010, %v2990, 0.0
        %v3013 = vsel %vm3009, %v2991, 0.0
        %v3014 = vsel %vm3010, %v2992, 0.0
        %v3015 = vsel %vm3009, %v2993, 0.0
        %v3016 = vsel %vm3010, %v2994, 0.0
        %v3017 = vsel %vm3009, %v2995, 0.0
        %v3018 = vsel %vm3010, %v2996, 0.0
        %v3019 = vld [vmem:[%s7] sm:$0xff]
        %v3020 = vld [vmem:[%s7 + $0x8] sm:$0xff]
        %v3021 = vld [vmem:[%s7 + $0x10] sm:$0xff]
        %v3022 = vld [vmem:[%s7 + $0x18] sm:$0xff]
        %v3023 = vld [vmem:[%s7 + $0x20] sm:$0xff]
        %v3024 = vld [vmem:[%s7 + $0x28] sm:$0xff]
        %v3025 = vld [vmem:[%s7 + $0x30] sm:$0xff]
        %v3026 = vld [vmem:[%s7 + $0x38] sm:$0xff]
        %v3027 = vld [vmem:[%s7 + $0x40] sm:$0xff]
        %v3028 = vld [vmem:[%s7 + $0x48] sm:$0xff]
        %v3029 = vld [vmem:[%s7 + $0x50] sm:$0xff]
        %v3030 = vld [vmem:[%s7 + $0x58] sm:$0xff]
        %v3031 = vld [vmem:[%s8] sm:$0xff]
        %v3032 = vld [vmem:[%s8 + $0x8] sm:$0xff]
        %v3033 = vld [vmem:[%s8 + $0x10] sm:$0xff]
        %v3034 = vld [vmem:[%s8 + $0x18] sm:$0xff]
        %3043 = vrot.lane.b32.xlu0 %v3011, 127
        %v3044 = vpop.permute.xlu0 %3043
        %3045 = vrot.lane.b32.xlu0 %v3012, 127
        %v3046 = vpop.permute.xlu0 %3045
        %3047 = vrot.lane.b32.xlu0 %v3013, 127
        %v3048 = vpop.permute.xlu0 %3047
        %3049 = vrot.lane.b32.xlu0 %v3014, 127
        %v3050 = vpop.permute.xlu0 %3049
        %3051 = vrot.lane.b32.xlu0 %v3015, 127
        %v3052 = vpop.permute.xlu0 %3051
        %3053 = vrot.lane.b32.xlu0 %v3016, 127
        %v3054 = vpop.permute.xlu0 %3053
        %3055 = vrot.lane.b32.xlu0 %v3017, 127
        %v3056 = vpop.permute.xlu0 %3055
        %3057 = vrot.lane.b32.xlu0 %v3018, 127
        %v3058 = vpop.permute.xlu0 %3057
        %v3059 = vsel %vm456, %v3044, %v3046
        %v3060 = vsel %vm456, %v3048, %v3050
        %v3061 = vsel %vm456, %v3052, %v3054
        %v3062 = vsel %vm456, %v3056, %v3058
        %3067 = vrot.lane.b32.xlu0 %v3011, 126
        %v3068 = vpop.permute.xlu0 %3067
        %3069 = vrot.lane.b32.xlu0 %v3012, 126
        %v3070 = vpop.permute.xlu0 %3069
        %3071 = vrot.lane.b32.xlu0 %v3013, 126
        %v3072 = vpop.permute.xlu0 %3071
        %3073 = vrot.lane.b32.xlu0 %v3014, 126
        %v3074 = vpop.permute.xlu0 %3073
        %3075 = vrot.lane.b32.xlu0 %v3015, 126
        %v3076 = vpop.permute.xlu0 %3075
        %3077 = vrot.lane.b32.xlu0 %v3016, 126
        %v3078 = vpop.permute.xlu0 %3077
        %3079 = vrot.lane.b32.xlu0 %v3017, 126
        %v3080 = vpop.permute.xlu0 %3079
        %3081 = vrot.lane.b32.xlu0 %v3018, 126
        %v3082 = vpop.permute.xlu0 %3081
        %v3083 = vsel %vm525, %v3068, %v3070
        %v3084 = vsel %vm525, %v3072, %v3074
        %v3085 = vsel %vm525, %v3076, %v3078
        %v3086 = vsel %vm525, %v3080, %v3082
        %3091 = vrot.lane.b32.xlu0 %v3011, 125
        %v3092 = vpop.permute.xlu0 %3091
        %3093 = vrot.lane.b32.xlu0 %v3012, 125
        %v3094 = vpop.permute.xlu0 %3093
        %3095 = vrot.lane.b32.xlu0 %v3013, 125
        %v3096 = vpop.permute.xlu0 %3095
        %3097 = vrot.lane.b32.xlu0 %v3014, 125
        %v3098 = vpop.permute.xlu0 %3097
        %3099 = vrot.lane.b32.xlu0 %v3015, 125
        %v3100 = vpop.permute.xlu0 %3099
        %3101 = vrot.lane.b32.xlu0 %v3016, 125
        %v3102 = vpop.permute.xlu0 %3101
        %3103 = vrot.lane.b32.xlu0 %v3017, 125
        %v3104 = vpop.permute.xlu0 %3103
        %3105 = vrot.lane.b32.xlu0 %v3018, 125
        %v3106 = vpop.permute.xlu0 %3105
        %v3107 = vsel %vm594, %v3092, %v3094
        %v3108 = vsel %vm594, %v3096, %v3098
        %v3109 = vsel %vm594, %v3100, %v3102
        %v3110 = vsel %vm594, %v3104, %v3106
        %3115 = vrot.lane.b32.xlu0 %v3011, 124
        %v3116 = vpop.permute.xlu0 %3115
        %3117 = vrot.lane.b32.xlu0 %v3012, 124
        %v3118 = vpop.permute.xlu0 %3117
        %3119 = vrot.lane.b32.xlu0 %v3013, 124
        %v3120 = vpop.permute.xlu0 %3119
        %3121 = vrot.lane.b32.xlu0 %v3014, 124
        %v3122 = vpop.permute.xlu0 %3121
        %3123 = vrot.lane.b32.xlu0 %v3015, 124
        %v3124 = vpop.permute.xlu0 %3123
        %3125 = vrot.lane.b32.xlu0 %v3016, 124
        %v3126 = vpop.permute.xlu0 %3125
        %3127 = vrot.lane.b32.xlu0 %v3017, 124
        %v3128 = vpop.permute.xlu0 %3127
        %3129 = vrot.lane.b32.xlu0 %v3018, 124
        %v3130 = vpop.permute.xlu0 %3129
        %v3131 = vsel %vm663, %v3116, %v3118
        %v3132 = vsel %vm663, %v3120, %v3122
        %v3133 = vsel %vm663, %v3124, %v3126
        %v3134 = vsel %vm663, %v3128, %v3130
        %3139 = vrot.lane.b32.xlu0 %v3011, 123
        %v3140 = vpop.permute.xlu0 %3139
        %3141 = vrot.lane.b32.xlu0 %v3012, 123
        %v3142 = vpop.permute.xlu0 %3141
        %3143 = vrot.lane.b32.xlu0 %v3013, 123
        %v3144 = vpop.permute.xlu0 %3143
        %3145 = vrot.lane.b32.xlu0 %v3014, 123
        %v3146 = vpop.permute.xlu0 %3145
        %3147 = vrot.lane.b32.xlu0 %v3015, 123
        %v3148 = vpop.permute.xlu0 %3147
        %3149 = vrot.lane.b32.xlu0 %v3016, 123
        %v3150 = vpop.permute.xlu0 %3149
        %3151 = vrot.lane.b32.xlu0 %v3017, 123
        %v3152 = vpop.permute.xlu0 %3151
        %3153 = vrot.lane.b32.xlu0 %v3018, 123
        %v3154 = vpop.permute.xlu0 %3153
        %v3155 = vsel %vm732, %v3140, %v3142
        %v3156 = vsel %vm732, %v3144, %v3146
        %v3157 = vsel %vm732, %v3148, %v3150
        %v3158 = vsel %vm732, %v3152, %v3154
        %3163 = vrot.lane.b32.xlu0 %v3011, 122
        %v3164 = vpop.permute.xlu0 %3163
        %3165 = vrot.lane.b32.xlu0 %v3012, 122
        %v3166 = vpop.permute.xlu0 %3165
        %3167 = vrot.lane.b32.xlu0 %v3013, 122
        %v3168 = vpop.permute.xlu0 %3167
        %3169 = vrot.lane.b32.xlu0 %v3014, 122
        %v3170 = vpop.permute.xlu0 %3169
        %3171 = vrot.lane.b32.xlu0 %v3015, 122
        %v3172 = vpop.permute.xlu0 %3171
        %3173 = vrot.lane.b32.xlu0 %v3016, 122
        %v3174 = vpop.permute.xlu0 %3173
        %3175 = vrot.lane.b32.xlu0 %v3017, 122
        %v3176 = vpop.permute.xlu0 %3175
        %3177 = vrot.lane.b32.xlu0 %v3018, 122
        %v3178 = vpop.permute.xlu0 %3177
        %v3179 = vsel %vm801, %v3164, %v3166
        %v3180 = vsel %vm801, %v3168, %v3170
        %v3181 = vsel %vm801, %v3172, %v3174
        %v3182 = vsel %vm801, %v3176, %v3178
        %3187 = vrot.lane.b32.xlu0 %v3011, 121
        %v3188 = vpop.permute.xlu0 %3187
        %3189 = vrot.lane.b32.xlu0 %v3012, 121
        %v3190 = vpop.permute.xlu0 %3189
        %3191 = vrot.lane.b32.xlu0 %v3013, 121
        %v3192 = vpop.permute.xlu0 %3191
        %3193 = vrot.lane.b32.xlu0 %v3014, 121
        %v3194 = vpop.permute.xlu0 %3193
        %3195 = vrot.lane.b32.xlu0 %v3015, 121
        %v3196 = vpop.permute.xlu0 %3195
        %3197 = vrot.lane.b32.xlu0 %v3016, 121
        %v3198 = vpop.permute.xlu0 %3197
        %3199 = vrot.lane.b32.xlu0 %v3017, 121
        %v3200 = vpop.permute.xlu0 %3199
        %3201 = vrot.lane.b32.xlu0 %v3018, 121
        %v3202 = vpop.permute.xlu0 %3201
        %v3203 = vsel %vm870, %v3188, %v3190
        %v3204 = vsel %vm870, %v3192, %v3194
        %v3205 = vsel %vm870, %v3196, %v3198
        %v3206 = vsel %vm870, %v3200, %v3202
        %3211 = vrot.lane.b32.xlu0 %v3011, 120
        %v3212 = vpop.permute.xlu0 %3211
        %3213 = vrot.lane.b32.xlu0 %v3012, 120
        %v3214 = vpop.permute.xlu0 %3213
        %3215 = vrot.lane.b32.xlu0 %v3013, 120
        %v3216 = vpop.permute.xlu0 %3215
        %3217 = vrot.lane.b32.xlu0 %v3014, 120
        %v3218 = vpop.permute.xlu0 %3217
        %3219 = vrot.lane.b32.xlu0 %v3015, 120
        %v3220 = vpop.permute.xlu0 %3219
        %3221 = vrot.lane.b32.xlu0 %v3016, 120
        %v3222 = vpop.permute.xlu0 %3221
        %3223 = vrot.lane.b32.xlu0 %v3017, 120
        %v3224 = vpop.permute.xlu0 %3223
        %3225 = vrot.lane.b32.xlu0 %v3018, 120
        %v3226 = vpop.permute.xlu0 %3225
        %v3227 = vsel %vm939, %v3212, %v3214
        %v3228 = vsel %vm939, %v3216, %v3218
        %v3229 = vsel %vm939, %v3220, %v3222
        %v3230 = vsel %vm939, %v3224, %v3226
        %3236 = vset.pattern.permute.xlu0 0
        %3237 = vperm.xlu0 %3236, %v3031
        %v3238 = vpop.permute.xlu0 %3237
        %3241 = vset.pattern.permute.xlu0 0
        %3242 = vperm.xlu0 %3241, %v3032
        %v3243 = vpop.permute.xlu0 %3242
        %3246 = vset.pattern.permute.xlu0 0
        %3247 = vperm.xlu0 %3246, %v3033
        %v3248 = vpop.permute.xlu0 %3247
        %3251 = vset.pattern.permute.xlu0 0
        %3252 = vperm.xlu0 %3251, %v3034
        %v3253 = vpop.permute.xlu0 %3252
        %v3256 = vsel %vm1282, %v3021, 0
        %v3259 = vsel %vm1282, %v3024, 0
        %v3262 = vsel %vm1282, %v3027, 0
        %v3265 = vsel %vm1282, %v3030, 0
        %3267 = vmatprep.subr.mxu0 0.0
        %3268 = vmatpush1.msra.mxu0 %v3011
        %3269 = vmatprep.subr.mxu0 0.0
        %3270 = vmatpush1.msra.mxu0 %v3013
        %3271 = vmatprep.subr.mxu0 0.0
        %3272 = vmatpush1.msra.mxu0 %v3015
        %3273 = vmatprep.subr.mxu0 0.0
        %3274 = vmatpush1.msra.mxu0 %v3017
        %3275 = vmatprep.subr.mxu0 0.0
        %3276 = vmatpush1.msra.mxu0 %v3059
        %3277 = vmatprep.subr.mxu0 0.0
        %3278 = vmatpush1.msra.mxu0 %v3060
        %3279 = vmatprep.subr.mxu0 0.0
        %3280 = vmatpush1.msra.mxu0 %v3061
        %3281 = vmatprep.subr.mxu0 0.0
        %3282 = vmatpush1.msra.mxu0 %v3062
        %3283 = vmatprep.subr.mxu0 0.0
        %3284 = vmatpush1.msra.mxu0 %v3083
        %3285 = vmatprep.subr.mxu0 0.0
        %3286 = vmatpush1.msra.mxu0 %v3084
        %3287 = vmatprep.subr.mxu0 0.0
        %3288 = vmatpush1.msra.mxu0 %v3085
        %3289 = vmatprep.subr.mxu0 0.0
        %3290 = vmatpush1.msra.mxu0 %v3086
        %3291 = vmatprep.subr.mxu0 0.0
        %3292 = vmatpush1.msra.mxu0 %v3107
        %3293 = vmatprep.subr.mxu0 0.0
        %3294 = vmatpush1.msra.mxu0 %v3108
        %3295 = vmatprep.subr.mxu0 0.0
        %3296 = vmatpush1.msra.mxu0 %v3109
        %3297 = vmatprep.subr.mxu0 0.0
        %3298 = vmatpush1.msra.mxu0 %v3110
        %3299 = vmatprep.subr.mxu0 0.0
        %3300 = vmatpush1.msra.mxu0 %v3131
        %3301 = vmatprep.subr.mxu0 0.0
        %3302 = vmatpush1.msra.mxu0 %v3132
        %3303 = vmatprep.subr.mxu0 0.0
        %3304 = vmatpush1.msra.mxu0 %v3133
        %3305 = vmatprep.subr.mxu0 0.0
        %3306 = vmatpush1.msra.mxu0 %v3134
        %3307 = vmatprep.subr.mxu0 0.0
        %3308 = vmatpush1.msra.mxu0 %v3155
        %3309 = vmatprep.subr.mxu0 0.0
        %3310 = vmatpush1.msra.mxu0 %v3156
        %3311 = vmatprep.subr.mxu0 0.0
        %3312 = vmatpush1.msra.mxu0 %v3157
        %3313 = vmatprep.subr.mxu0 0.0
        %3314 = vmatpush1.msra.mxu0 %v3158
        %3315 = vmatprep.subr.mxu0 0.0
        %3316 = vmatpush1.msra.mxu0 %v3179
        %3317 = vmatprep.subr.mxu0 0.0
        %3318 = vmatpush1.msra.mxu0 %v3180
        %3319 = vmatprep.subr.mxu0 0.0
        %3320 = vmatpush1.msra.mxu0 %v3181
        %3321 = vmatprep.subr.mxu0 0.0
        %3322 = vmatpush1.msra.mxu0 %v3182
        %3323 = vmatprep.subr.mxu0 0.0
        %3324 = vmatpush1.msra.mxu0 %v3203
        %3325 = vmatprep.subr.mxu0 0.0
        %3326 = vmatpush1.msra.mxu0 %v3204
        %3327 = vmatprep.subr.mxu0 0.0
        %3328 = vmatpush1.msra.mxu0 %v3205
        %3329 = vmatprep.subr.mxu0 0.0
        %3330 = vmatpush1.msra.mxu0 %v3206
        %3331 = vmatprep.mubr.f32.mxu0 %v3020
        %3332 = vmatmul.mubr.f32.gmra.mrb[0].mxu0 %v3019
        %v3333 = vpop.f32.mrb[0].mxu0
        %v3334 = vadd.f32 %v3238, %v3333
        %v3335 = vpop.f32.mrb[0].mxu0
        %3336 = vmatprep.mubr.f32.mxu0 %v3023
        %3337 = vmatmul.mubr.f32.gmra.mrb[0].mxu0 %v3022
        %v3338 = vpop.f32.mrb[0].mxu0
        %v3339 = vadd.f32 %v3243, %v3338
        %v3340 = vpop.f32.mrb[0].mxu0
        %3341 = vmatprep.mubr.f32.mxu0 %v3026
        %3342 = vmatmul.mubr.f32.gmra.mrb[0].mxu0 %v3025
        %v3343 = vpop.f32.mrb[0].mxu0
        %v3344 = vadd.f32 %v3248, %v3343
        %v3345 = vpop.f32.mrb[0].mxu0
        %3346 = vmatprep.mubr.f32.mxu0 %v3029
        %3347 = vmatmul.mubr.f32.gmra.mrb[0].mxu0 %v3028
        %v3348 = vpop.f32.mrb[0].mxu0
        %v3349 = vadd.f32 %v3253, %v3348
        %v3350 = vpop.f32.mrb[0].mxu0
        %3351 = vdwg.mxu0
        %3352 = vmatprep.subr.mxu0 0.0
        %3353 = vmatpush1.msra.mxu0 %v3227
        %3354 = vmatprep.subr.mxu0 0.0
        %3355 = vmatpush1.msra.mxu0 %v3228
        %3356 = vmatprep.subr.mxu0 0.0
        %3357 = vmatpush1.msra.mxu0 %v3229
        %3358 = vmatprep.subr.mxu0 0.0
        %3359 = vmatpush1.msra.mxu0 %v3230
        %3360 = vmatprep.subr.mxu0 0.0
        %3361 = vmatpush1.msra.mxu0 0.0
        %3362 = vmatprep.subr.mxu0 0.0
        %3363 = vmatpush1.msra.mxu0 0.0
        %3364 = vmatprep.subr.mxu0 0.0
        %3365 = vmatpush1.msra.mxu0 0.0
        %3366 = vmatprep.subr.mxu0 0.0
        %3367 = vmatpush1.msra.mxu0 0.0
        %3368 = vmatprep.subr.mxu0 0.0
        %3369 = vmatpush1.msra.mxu0 0.0
        %3370 = vmatprep.subr.mxu0 0.0
        %3371 = vmatpush1.msra.mxu0 0.0
        %3372 = vmatprep.subr.mxu0 0.0
        %3373 = vmatpush1.msra.mxu0 0.0
        %3374 = vmatprep.subr.mxu0 0.0
        %3375 = vmatpush1.msra.mxu0 0.0
        %3376 = vmatprep.subr.mxu0 0.0
        %3377 = vmatpush1.msra.mxu0 0.0
        %3378 = vmatprep.subr.mxu0 0.0
        %3379 = vmatpush1.msra.mxu0 0.0
        %3380 = vmatprep.subr.mxu0 0.0
        %3381 = vmatpush1.msra.mxu0 0.0
        %3382 = vmatprep.subr.mxu0 0.0
        %3383 = vmatpush1.msra.mxu0 0.0
        %3384 = vmatprep.subr.mxu0 0.0
        %3385 = vmatpush1.msra.mxu0 0.0
        %3386 = vmatprep.subr.mxu0 0.0
        %3387 = vmatpush1.msra.mxu0 0.0
        %3388 = vmatprep.subr.mxu0 0.0
        %3389 = vmatpush1.msra.mxu0 0.0
        %3390 = vmatprep.subr.mxu0 0.0
        %3391 = vmatpush1.msra.mxu0 0.0
        %3392 = vmatprep.subr.mxu0 0.0
        %3393 = vmatpush1.msra.mxu0 0.0
        %3394 = vmatprep.subr.mxu0 0.0
        %3395 = vmatpush1.msra.mxu0 0.0
        %3396 = vmatprep.subr.mxu0 0.0
        %3397 = vmatpush1.msra.mxu0 0.0
        %3398 = vmatprep.subr.mxu0 0.0
        %3399 = vmatpush1.msra.mxu0 0.0
        %3400 = vmatprep.subr.mxu0 0.0
        %3401 = vmatpush1.msra.mxu0 0.0
        %3402 = vmatprep.subr.mxu0 0.0
        %3403 = vmatpush1.msra.mxu0 0.0
        %3404 = vmatprep.subr.mxu0 0.0
        %3405 = vmatpush1.msra.mxu0 0.0
        %3406 = vmatprep.subr.mxu0 0.0
        %3407 = vmatpush1.msra.mxu0 0.0
        %3408 = vmatprep.subr.mxu0 0.0
        %3409 = vmatpush1.msra.mxu0 0.0
        %3410 = vmatprep.subr.mxu0 0.0
        %3411 = vmatpush1.msra.mxu0 0.0
        %3412 = vmatprep.subr.mxu0 0.0
        %3413 = vmatpush1.msra.mxu0 0.0
        %3414 = vmatprep.subr.mxu0 0.0
        %3415 = vmatpush1.msra.mxu0 0.0
        %3416 = vmatprep.mubr.f32.mxu0 0.0
        %3417 = vmatmul.mubr.f32.gmra.mrb[0].mxu0 %v3256
        %v3418 = vpop.f32.mrb[0].mxu0
        %v3419 = vadd.f32 %v3334, %v3418
        %v3420 = vpop.f32.mrb[0].mxu0
        %3421 = vmatprep.mubr.f32.mxu0 0.0
        %3422 = vmatmul.mubr.f32.gmra.mrb[0].mxu0 %v3259
        %v3423 = vpop.f32.mrb[0].mxu0
        %v3424 = vadd.f32 %v3339, %v3423
        %v3425 = vpop.f32.mrb[0].mxu0
        %3426 = vmatprep.mubr.f32.mxu0 0.0
        %3427 = vmatmul.mubr.f32.gmra.mrb[0].mxu0 %v3262
        %v3428 = vpop.f32.mrb[0].mxu0
        %v3429 = vadd.f32 %v3344, %v3428
        %v3430 = vpop.f32.mrb[0].mxu0
        %3431 = vmatprep.mubr.f32.mxu0 0.0
        %3432 = vmatmul.mubr.f32.gmra.mrb[0].mxu0 %v3265
        %v3433 = vpop.f32.mrb[0].mxu0
        %v3434 = vadd.f32 %v3349, %v3433
        %v3435 = vpop.f32.mrb[0].mxu0
        %3436 = vdwg.mxu0
        %3437 = vrot.lane.b32.xlu0 %v1006, 108
        %v3438 = vpop.permute.xlu0 %3437
        %3439 = vrot.lane.b32.xlu0 %v1007, 108
        %v3440 = vpop.permute.xlu0 %3439
        %3441 = vrot.lane.b32.xlu0 %v1008, 108
        %v3442 = vpop.permute.xlu0 %3441
        %3443 = vrot.lane.b32.xlu0 %v1009, 108
        %v3444 = vpop.permute.xlu0 %3443
        %3445 = vrot.lane.b32.xlu0 %v1010, 108
        %v3446 = vpop.permute.xlu0 %3445
        %3447 = vrot.lane.b32.xlu0 %v1011, 108
        %v3448 = vpop.permute.xlu0 %3447
        %3449 = vrot.lane.b32.xlu0 %v1012, 108
        %v3450 = vpop.permute.xlu0 %3449
        %3451 = vrot.lane.b32.xlu0 %v1013, 108
        %v3452 = vpop.permute.xlu0 %3451
        %vm3453 = vcmask 883712
        %v3454 = vsel %vm3453, %v3438, %v3440
        %v3455 = vsel %vm3453, %v3442, %v3444
        %v3456 = vsel %vm3453, %v3446, %v3448
        %v3457 = vsel %vm3453, %v3450, %v3452
        %v3462 = vadd.f32 %v3419, %v3454
        %v3463 = vadd.f32 %v3424, %v3455
        %v3464 = vadd.f32 %v3429, %v3456
        %v3465 = vadd.f32 %v3434, %v3457
        %v3466 = vstv %s988
        %v3467 = vadd.s32 %v3466, %v991
        %vm3468 = vcmp.ge.s32.totalorder %v3467, 0
        %vm3469 = vcmp.lt.s32.totalorder %v3467, 400
        %vm3470 = vmand %vm3468, %vm3469
        %v3471 = vsel %vm3470, 1, 0
        %vm3472 = vcmp.eq.s32.totalorder %v3471, 1
        %v3473 = vsel %vm3472, %v3462, 0.0
        %v3474 = vsel %vm3472, %v3463, 0.0
        %v3475 = vsel %vm3472, %v3464, 0.0
        %v3476 = vsel %vm3472, %v3465, 0.0
        %3477 = vst [vmem:[%s343] sm:$0xff] %v3473
        %3478 = vst [vmem:[%s343 + $0x8] sm:$0xff] %v3474
        %3479 = vst [vmem:[%s343 + $0x10] sm:$0xff] %v3475
        %3480 = vst [vmem:[%s343 + $0x18] sm:$0xff] %v3476
        %s3481 = sand.u32 %s238, 1
        %s3482 = sand.u32 %s238, 1
        %s3483 = smul.addr %s3482, 32
        %s3484 = scalar_lea.vmem [#allocation2], %s3483
        // Predicated region
        $region57: #{audio_edsr_forward.2} parent=55 // pred_check
          %p3485 = pneg %p248
        $region58: #{audio_edsr_forward.2} parent=55 // pred_check_branch
          %3487 = sbr.rel (%p3485) target = $region60
        $region59: #{audio_edsr_forward.2} parent=55 // pred_region
          %s3488 = smul.addr %s24, 16
          %s3489 = sadd.s32 %s25, %s3488
          %s3490 = smul.addr %s3489, 8
          %s3491 = scalar_lea.vmem %s9, %s3490
          // Predicated region
          $region61: #{audio_edsr_forward.2} parent=59 // pred_check
            _
          $region62: #{audio_edsr_forward.2} parent=59 // pred_check_branch
            %3493 = sbr.rel (0) target = $region64
          $region63: #{audio_edsr_forward.2} parent=59 // pred_region
            // Predicated region
            $region65: #{audio_edsr_forward.2} parent=63 // pred_check
              _
            $region66: #{audio_edsr_forward.2} parent=63 // pred_check_branch
              %3495 = sbr.rel (0) target = $region68
            $region67: #{audio_edsr_forward.2} parent=63 // pred_region
              // Predicated region
              $region80: #{audio_edsr_forward.2} parent=67 // pred_check
                _
              $region81: #{audio_edsr_forward.2} parent=67 // pred_check_branch
                %3516 = sbr.rel (0) target = $region83
              $region82: #{audio_edsr_forward.2} parent=67 // pred_region
                loop: start=0, step=1, limit=1
                $region84: #{audio_edsr_forward.2} parent=82 // loop_pre_header
                  _
                $region85: #{audio_edsr_forward.2} parent=82 // loop_header
                  %s3518 = sphi 0, %s3522
                  %p3519 = scmp.ge.s32.totalorder %s3518, 1
                  %s3523 = sphi %s3484, %s3484
                  %s3524 = sphi %s3491, %s3491
                $region86: #{audio_edsr_forward.2} parent=82 // loop_header_branch
                  %3521 = sbr.rel (%p3519) target = $region90
                $region87: #{audio_edsr_forward.2} parent=82 // loop_body
                  %v3525 = vld [vmem:[%s3523] sm:$0xff]
                  %3526 = vst [vmem:[%s3524] sm:$0xff] %v3525
                  %v3527 = vld [vmem:[%s3523 + $0x8] sm:$0xff]
                  %3528 = vst [vmem:[%s3524 + $0x20] sm:$0xff] %v3527
                  %v3529 = vld [vmem:[%s3523 + $0x10] sm:$0xff]
                  %3530 = vst [vmem:[%s3524 + $0x40] sm:$0xff] %v3529
                  %v3531 = vld [vmem:[%s3523 + $0x18] sm:$0xff]
                  %3532 = vst [vmem:[%s3524 + $0x60] sm:$0xff] %v3531
                $region88: #{audio_edsr_forward.2} parent=82 // loop_footer
                  %s3522 = sadd.s32 1, %s3518
                $region89: #{audio_edsr_forward.2} parent=82 // loop_footer_branch
                  %3517 = sbr.rel target = $region85
                $region90: #{audio_edsr_forward.2} parent=82 // loop_exit
                  _
              $region83: #{audio_edsr_forward.2} parent=67 // pred_fallthru
                _
              // Predicated region
              $region91: #{audio_edsr_forward.2} parent=67 // pred_check
                _
              $region92: #{audio_edsr_forward.2} parent=67 // pred_check_branch
                %3534 = sbr.rel target = $region94
              $region93: #{audio_edsr_forward.2} parent=67 // pred_region
                _
              $region94: #{audio_edsr_forward.2} parent=67 // pred_fallthru
                _
            $region68: #{audio_edsr_forward.2} parent=63 // pred_fallthru
              _
            // Predicated region
            $region69: #{audio_edsr_forward.2} parent=63 // pred_check
              _
            $region70: #{audio_edsr_forward.2} parent=63 // pred_check_branch
              %3497 = sbr.rel target = $region72
            $region71: #{audio_edsr_forward.2} parent=63 // pred_region
              loop: start=0, step=1, limit=1
              $region73: #{audio_edsr_forward.2} parent=71 // loop_pre_header
                _
              $region74: #{audio_edsr_forward.2} parent=71 // loop_header
                %s3500 = sphi 0, %s3504
                %p3501 = scmp.ge.s32.totalorder %s3500, 1
                %s3505 = sphi %s3484, %s3484
                %s3506 = sphi %s3491, %s3491
              $region75: #{audio_edsr_forward.2} parent=71 // loop_header_branch
                %3503 = sbr.rel (%p3501) target = $region79
              $region76: #{audio_edsr_forward.2} parent=71 // loop_body
                %v3507 = vld [vmem:[%s3505] sm:$0xff]
                %3508 = vst [vmem:[%s3506] sm:$0xff] %v3507
                %v3509 = vld [vmem:[%s3505 + $0x8] sm:$0xff]
                %3510 = vst [vmem:[%s3506 + $0x20] sm:$0xff] %v3509
                %v3511 = vld [vmem:[%s3505 + $0x10] sm:$0xff]
                %3512 = vst [vmem:[%s3506 + $0x40] sm:$0xff] %v3511
                %v3513 = vld [vmem:[%s3505 + $0x18] sm:$0xff]
                %3514 = vst [vmem:[%s3506 + $0x60] sm:$0xff] %v3513
              $region77: #{audio_edsr_forward.2} parent=71 // loop_footer
                %s3504 = sadd.s32 1, %s3500
              $region78: #{audio_edsr_forward.2} parent=71 // loop_footer_branch
                %3499 = sbr.rel target = $region74
              $region79: #{audio_edsr_forward.2} parent=71 // loop_exit
                _
            $region72: #{audio_edsr_forward.2} parent=63 // pred_fallthru
              _
          $region64: #{audio_edsr_forward.2} parent=59 // pred_fallthru
            _
          %3535 = vnop
        $region60: #{audio_edsr_forward.2} parent=55 // pred_fallthru
          _
      $region56: #{audio_edsr_forward.2} parent=5 // pred_fallthru
        _
      %p3536 = scmp.le.s32.totalorder 2, %s15
      // Predicated region
      $region95: #{audio_edsr_forward.2} parent=5 // pred_check
        %p3537 = pneg %p3536
      $region96: #{audio_edsr_forward.2} parent=5 // pred_check_branch
        %3539 = sbr.rel (%p3537) target = $region98
      $region97: #{audio_edsr_forward.2} parent=5 // pred_region
        %s3540 = ssub.s32 %s15, 2
        // Predicated region
        $region99: #{audio_edsr_forward.2} parent=97 // pred_check
          %p3541 = pneg %p254
        $region100: #{audio_edsr_forward.2} parent=97 // pred_check_branch
          %3543 = sbr.rel (%p3541) target = $region102
        $region101: #{audio_edsr_forward.2} parent=97 // pred_region
          %s3544 = sand.u32 %s239, 1
          %s3545 = sand.u32 %s239, 1
          %s3546 = smul.addr %s3545, 32
          %s3547 = scalar_lea.vmem [#allocation2], %s3546
        $region102: #{audio_edsr_forward.2} parent=97 // pred_fallthru
          _
      $region98: #{audio_edsr_forward.2} parent=5 // pred_fallthru
        _
    $region6: #{audio_edsr_forward.2} parent=1 // loop_footer
      %s19 = sadd.s32 1, %s15
    $region7: #{audio_edsr_forward.2} parent=1 // loop_footer_branch
      %14 = sbr.rel target = $region3
    $region8: #{audio_edsr_forward.2} parent=1 // loop_exit
      _

</llo_original>
